<compile_context>
chip_gen: v7x
topology: tpu7x:2x2x1
jax: 0.10.0
libtpu: 0.0.40
codegen_flags: <defaults>
</compile_context>

<pallas_src>
import jax
import jax.numpy as jnp
from jax import lax
from jax.experimental import pallas as pl
from jax.experimental.pallas import tpu as pltpu

# ---------------- configuration ----------------
IMAGE_SIZE = 16
PATCH_SIZE = 4
CHANNELS = 4
DIM = 32
HEADS = 8
DIM_HEAD = DIM // HEADS                         # 4
DEPTH = 12
LINF_K = 64
NUM_PATCHES = (IMAGE_SIZE // PATCH_SIZE) ** 2   # 16
SEQ_LEN = NUM_PATCHES + 1                       # 17 (cls token)
PATCH_DIM = CHANNELS * PATCH_SIZE ** 2          # 64
FF_HID = DIM * 4                                # 128
HK = HEADS * LINF_K                             # 512 (lane-dense score width)
OUT_PAD = 128                                   # lane-dense final store width
LN_EPS = 1e-5


# ---------------- in-kernel helpers ----------------
def _layer_norm(x, g, b):
    # PyTorch nn.LayerNorm: biased variance, eps=1e-5, affine.
    mu = jnp.mean(x, axis=-1, keepdims=True)
    xc = x - mu
    var = jnp.mean(xc * xc, axis=-1, keepdims=True)
    return xc * lax.rsqrt(var + LN_EPS) * g + b


def _gelu_exact(x):
    # nn.GELU default (erf-based)
    return 0.5 * x * (1.0 + lax.erf(x * (2.0 ** -0.5)))


# ---------------- fused whole-network kernel ----------------
def vit_fused_kernel(
        patches_ref, pw_ref, addt_ref, mk_ref, mv_ref, gmat_ref, gmatt_ref,
        g1_ref, be1_ref, wq_ref, wk_ref, wv_ref, pk_ref, pv_ref, wo_ref, bo_ref,
        g2_ref, be2_ref, w1_ref, bf1_ref, w2_ref, bf2_ref,
        o_ref, act_ref):
    d = pl.program_id(1)
    bb = act_ref.shape[0]

    # ---- depth-0 prologue: patch embed + cls token + positional embedding ----
    # patches row 0 is zero-padded, so row 0 becomes cls + pos[0] via add_term.
    @pl.when(d == 0)
    def _():
        for b in range(bb):
            emb = jnp.dot(patches_ref[b], pw_ref[...],
                          preferred_element_type=jnp.float32)    # (SEQ, DIM)
            act_ref[b] = emb + addt_ref[0]

    # per-layer weights (depth-indexed blocks, squeezed to 2-D)
    mk = mk_ref[...]          # (DIM, HK)   block-diagonal mask for keys
    mv = mv_ref[...]          # (HK, DIM)   block-diagonal mask for values
    gmat = gmat_ref[...]      # (HK, HEADS) 0/1 group-sum matrix
    gmatt = gmatt_ref[...]    # (HEADS, HK) its transpose (group broadcast)
    pk = pk_ref[0]            # (K, SEQ)
    pv = pv_ref[0]            # (K, SEQ)
    wq = wq_ref[0]            # (DIM, DIM) pre-scaled by 1/sqrt(dim_head)
    wk = wk_ref[0]
    wv = wv_ref[0]
    wo = wo_ref[0]
    g1 = g1_ref[0]
    be1 = be1_ref[0]
    bo = bo_ref[0]
    g2 = g2_ref[0]
    be2 = be2_ref[0]
    w1 = w1_ref[0]
    bf1 = bf1_ref[0]
    w2 = w2_ref[0]
    bf2 = bf2_ref[0]

    for b in range(bb):
        x = act_ref[b]                                            # (SEQ, DIM)

        # ---- PreNorm + Linformer self-attention (single-softmax form) ----
        h = _layer_norm(x, g1, be1)
        q = jnp.dot(h, wq, preferred_element_type=jnp.float32)    # (SEQ, DIM)
        ks = jnp.dot(h, wk, preferred_element_type=jnp.float32)
        vs = jnp.dot(h, wv, preferred_element_type=jnp.float32)

        # Linformer seq projection:
        #   keysT[d, k] = sum_n pk[k, n] * ks[n, d]   -> keys^T directly
        #   vals [k, d] = sum_n pv[k, n] * vs[n, d]
        keysT = lax.dot_general(ks, pk, (((0,), (1,)), ((), ())),
                                preferred_element_type=jnp.float32)   # (DIM, K)
        vals = lax.dot_general(pv, vs, (((1,), (0,)), ((), ())),
                               preferred_element_type=jnp.float32)    # (K, DIM)

        # Block-diagonal expansion: head h occupies lane block [h*K, (h+1)*K).
        k_bd = jnp.concatenate([keysT] * HEADS, axis=1) * mk      # (DIM, HK)
        v_bd = jnp.concatenate([vals] * HEADS, axis=0) * mv       # (HK, DIM)

        # One lane-dense score matmul for all heads (scale folded into wq).
        s = jnp.dot(q, k_bd, preferred_element_type=jnp.float32)  # (SEQ, HK)

        # Grouped softmax over each 64-lane head block.
        # Shared per-row max is >= every group max: exact (shift invariance)
        # and overflow-safe; group sums/broadcast via two tiny 0/1 matmuls.
        m = jnp.max(s, axis=-1, keepdims=True)
        e = jnp.exp(s - m)
        gsum = jnp.dot(e, gmat, preferred_element_type=jnp.float32)      # (SEQ, HEADS)
        denom = jnp.dot(gsum, gmatt, preferred_element_type=jnp.float32)  # (SEQ, HK)
        attn = e / denom

        ctx = jnp.dot(attn, v_bd, preferred_element_type=jnp.float32)    # (SEQ, DIM)
        x = x + jnp.dot(ctx, wo, preferred_element_type=jnp.float32) + bo

        # ---- PreNorm + FeedForward (exact GELU) ----
        h2 = _layer_norm(x, g2, be2)
        f = jnp.dot(h2, w1, preferred_element_type=jnp.float32) + bf1
        f = _gelu_exact(f)
        f = jnp.dot(f, w2, preferred_element_type=jnp.float32) + bf2
        x = x + f

        act_ref[b] = x

        # ---- final-layer epilogue: lane-dense (128-wide) cls-row store ----
        @pl.when(d == DEPTH - 1)
        def _():
            o_ref[b] = jnp.concatenate(
                [x[0:1, :], jnp.zeros((1, OUT_PAD - DIM), jnp.float32)], axis=-1)


# ---------------- wrapper: one fused pallas_call ----------------
def vit_forward(img, packed, batch_blocks=None):
    B, C, H, W = img.shape
    p = PATCH_SIZE
    # Rearrange 'b c (h p1) (w p2) -> b (h w) (p1 p2 c)'
    x = img.reshape(B, C, H // p, p, W // p, p)
    x = x.transpose(0, 2, 4, 3, 5, 1)
    x = x.reshape(B, NUM_PATCHES, PATCH_DIM)
    # zero row 0 so the single fused embed matmul also covers the cls position
    x = jnp.concatenate(
        [jnp.zeros((B, 1, PATCH_DIM), x.dtype), x], axis=1)        # (B, SEQ, PD)

    if batch_blocks is None:
        batch_blocks = 2 if (B >= 2 and B % 2 == 0) else 1         # v7x: 2 cores
    assert B % batch_blocks == 0
    bb = B // batch_blocks

    def batch_map(b, d):
        return (b, 0, 0)

    def const2(b, d):
        return (0, 0)

    def const3(b, d):
        return (0, 0, 0)

    def depth3(b, d):
        return (d, 0, 0)

    in_specs = [
        pl.BlockSpec((bb, SEQ_LEN, PATCH_DIM), batch_map),   # patches (0-padded)
        pl.BlockSpec((PATCH_DIM, DIM), const2),              # patch_w
        pl.BlockSpec((1, SEQ_LEN, DIM), const3),             # add_term
        pl.BlockSpec((DIM, HK), const2),                     # mask_k
        pl.BlockSpec((HK, DIM), const2),                     # mask_v
        pl.BlockSpec((HK, HEADS), const2),                   # gmat
        pl.BlockSpec((HEADS, HK), const2),                   # gmat_t
        pl.BlockSpec((1, 1, DIM), depth3),                   # g1
        pl.BlockSpec((1, 1, DIM), depth3),                   # be1
        pl.BlockSpec((1, DIM, DIM), depth3),                 # wq (pre-scaled)
        pl.BlockSpec((1, DIM, DIM), depth3),                 # wk
        pl.BlockSpec((1, DIM, DIM), depth3),                 # wv
        pl.BlockSpec((1, LINF_K, SEQ_LEN), depth3),          # pk_t
        pl.BlockSpec((1, LINF_K, SEQ_LEN), depth3),          # pv_t
        pl.BlockSpec((1, DIM, DIM), depth3),                 # wo
        pl.BlockSpec((1, 1, DIM), depth3),                   # bo
        pl.BlockSpec((1, 1, DIM), depth3),                   # g2
        pl.BlockSpec((1, 1, DIM), depth3),                   # be2
        pl.BlockSpec((1, DIM, FF_HID), depth3),              # w1
        pl.BlockSpec((1, 1, FF_HID), depth3),                # bf1
        pl.BlockSpec((1, FF_HID, DIM), depth3),              # w2
        pl.BlockSpec((1, 1, DIM), depth3),                   # bf2
    ]

    out = pl.pallas_call(
        vit_fused_kernel,
        out_shape=jax.ShapeDtypeStruct((B, 1, OUT_PAD), jnp.float32),
        grid=(batch_blocks, DEPTH),
        in_specs=in_specs,
        out_specs=pl.BlockSpec((bb, 1, OUT_PAD), batch_map),
        scratch_shapes=[pltpu.VMEM((bb, SEQ_LEN, DIM), jnp.float32)],
        compiler_params=pltpu.CompilerParams(
            dimension_semantics=("parallel", "arbitrary")),
    )(x, packed["patch_w"], packed["add_term"],
      packed["mask_k"], packed["mask_v"], packed["gmat"], packed["gmat_t"],
      packed["g1"], packed["be1"], packed["wq"], packed["wk"], packed["wv"],
      packed["pk"], packed["pv"], packed["wo"], packed["bo"],
      packed["g2"], packed["be2"], packed["w1"], packed["bf1"],
      packed["w2"], packed["bf2"])

    return out[:, 0, :DIM]                                   # pool == 'cls'


# ---------------- parameter packing (done once, outside jit) ----------------
def pack_params(params):
    layers = params["layers"]

    def stack(k):
        return jnp.stack([l[k] for l in layers], axis=0)

    scale = DIM_HEAD ** -0.5
    packed = {
        "patch_w": params["patch_w"],
        "g1": stack("g1"), "be1": stack("be1"),
        "wq": stack("wq") * scale,                 # fold attention scale into wq
        "wk": stack("wk"), "wv": stack("wv"),
        "pk": stack("pk_t"), "pv": stack("pv_t"),
        "wo": stack("wo"), "bo": stack("bo"),
        "g2": stack("g2"), "be2": stack("be2"),
        "w1": stack("w1"), "bf1": stack("bf1"),
        "w2": stack("w2"), "bf2": stack("bf2"),
    }

    # cls / pos / patch-bias folded into one additive term:
    #   row 0      : cls_token + pos[0]           (no patch bias on cls)
    #   rows 1..16 : pos[i] + patch_b
    pos = params["pos_emb"][:, :SEQ_LEN]                      # (1, SEQ, DIM)
    cls_row = params["cls_token"][:, 0] + pos[:, 0]           # (1, DIM)
    rest = pos[:, 1:] + params["patch_b"][:, None, :]         # (1, 16, DIM)
    packed["add_term"] = jnp.concatenate([cls_row[:, None, :], rest], axis=1)

    # block-diagonal head masks and 0/1 group matrices (constants)
    d_idx = jnp.arange(DIM)[:, None] // DIM_HEAD              # (DIM, 1)
    m_idx = jnp.arange(HK)[None, :] // LINF_K                 # (1, HK)
    mask_k = (d_idx == m_idx).astype(jnp.float32)             # (DIM, HK)
    packed["mask_k"] = mask_k
    packed["mask_v"] = mask_k.T                               # (HK, DIM)
    g_m = jnp.arange(HK)[:, None] // LINF_K                   # (HK, 1)
    g_h = jnp.arange(HEADS)[None, :]                          # (1, HEADS)
    gmat = (g_m == g_h).astype(jnp.float32)                   # (HK, HEADS)
    packed["gmat"] = gmat
    packed["gmat_t"] = gmat.T                                 # (HEADS, HK)
    return packed


# ---------------- deterministic parameter init (matches the module) ----------------
def init_params(key):
    keys = iter(jax.random.split(key, 256))

    def nrm(shape, scale=0.02):
        return (scale * jax.random.normal(next(keys), shape)).astype(jnp.float32)

    params = {
        "patch_w": nrm((PATCH_DIM, DIM)),
        "patch_b": nrm((1, DIM)),
        "pos_emb": nrm((1, SEQ_LEN, DIM), scale=1.0),
        "cls_token": nrm((1, 1, DIM), scale=1.0),
    }
    layers = []
    for _ in range(DEPTH):
        layers.append(dict(
            g1=jnp.ones((1, DIM), jnp.float32),
            be1=jnp.zeros((1, DIM), jnp.float32),
            wq=nrm((DIM, DIM)),
            wk=nrm((DIM, DIM)),
            wv=nrm((DIM, DIM)),
            pk_t=nrm((LINF_K, SEQ_LEN)),   # transpose of torch proj_k (seq_len, k)
            pv_t=nrm((LINF_K, SEQ_LEN)),
            wo=nrm((DIM, DIM)),
            bo=nrm((1, DIM)),
            g2=jnp.ones((1, DIM), jnp.float32),
            be2=jnp.zeros((1, DIM), jnp.float32),
            w1=nrm((DIM, DIM * 4)),
            bf1=nrm((1, DIM * 4)),
            w2=nrm((DIM * 4, DIM)),
            bf2=nrm((1, DIM)),
        ))
    params["layers"] = layers
    return params


# ---------------- plain-JAX reference (for a self-check) ----------------
def vit_reference(img, params):
    B = img.shape[0]
    p = PATCH_SIZE
    x = img.reshape(B, CHANNELS, IMAGE_SIZE // p, p, IMAGE_SIZE // p, p)
    x = x.transpose(0, 2, 4, 3, 5, 1).reshape(B, NUM_PATCHES, PATCH_DIM)
    x = x @ params["patch_w"] + params["patch_b"]
    cls = jnp.broadcast_to(params["cls_token"], (B, 1, DIM))
    x = jnp.concatenate([cls, x], axis=1) + params["pos_emb"][:, :SEQ_LEN]
    scale = DIM_HEAD ** -0.5
    for l in params["layers"]:
        h = _layer_norm(x, l["g1"], l["be1"])
        q = h @ l["wq"]; ks = h @ l["wk"]; vs = h @ l["wv"]
        keys = jnp.einsum('kn,bnd->bkd', l["pk_t"], ks)
        vals = jnp.einsum('kn,bnd->bkd', l["pv_t"], vs)
        qh = q.reshape(B, SEQ_LEN, HEADS, DIM_HEAD)
        kh = keys.reshape(B, LINF_K, HEADS, DIM_HEAD)
        vh = vals.reshape(B, LINF_K, HEADS, DIM_HEAD)
        s = jnp.einsum('bnhe,bkhe->bhnk', qh, kh) * scale
        a = jax.nn.softmax(s, axis=-1)
        o = jnp.einsum('bhnk,bkhe->bnhe', a, vh).reshape(B, SEQ_LEN, DIM)
        x = x + o @ l["wo"] + l["bo"]
        h2 = _layer_norm(x, l["g2"], l["be2"])
        f = jax.nn.gelu(h2 @ l["w1"] + l["bf1"], approximate=False)
        x = x + f @ l["w2"] + l["bf2"]
    return x[:, 0]


if __name__ == "__main__":
    key = jax.random.PRNGKey(0)
    pkey, xkey = jax.random.split(key)
    params = init_params(pkey)
    packed = pack_params(params)
    img = jax.random.normal(xkey, (2, CHANNELS, IMAGE_SIZE, IMAGE_SIZE), jnp.float32)

    fwd = jax.jit(vit_forward)
    out = jax.block_until_ready(fwd(img, packed))
    assert out.shape == (2, DIM) and out.dtype == jnp.float32

    ref = jax.block_until_ready(jax.jit(vit_reference)(img, params))
    err = float(jnp.max(jnp.abs(out - ref)))
    assert err < 1e-3, f"mismatch vs reference: {err}"

    print("KERNEL_OK")
</pallas_src>

<mosaic_0001>
module attributes {stable_mosaic.version = 11 : i64} {
  func.func @vit_fused_kernel(%arg0: i32, %arg1: i32, %arg2: memref<1x17x64xf32, #tpu.memory_space<vmem>>, %arg3: memref<64x32xf32, #tpu.memory_space<vmem>>, %arg4: memref<1x17x32xf32, #tpu.memory_space<vmem>>, %arg5: memref<32x512xf32, #tpu.memory_space<vmem>>, %arg6: memref<512x32xf32, #tpu.memory_space<vmem>>, %arg7: memref<512x8xf32, #tpu.memory_space<vmem>>, %arg8: memref<8x512xf32, #tpu.memory_space<vmem>>, %arg9: memref<1x1x32xf32, #tpu.memory_space<vmem>>, %arg10: memref<1x1x32xf32, #tpu.memory_space<vmem>>, %arg11: memref<1x32x32xf32, #tpu.memory_space<vmem>>, %arg12: memref<1x32x32xf32, #tpu.memory_space<vmem>>, %arg13: memref<1x32x32xf32, #tpu.memory_space<vmem>>, %arg14: memref<1x64x17xf32, #tpu.memory_space<vmem>>, %arg15: memref<1x64x17xf32, #tpu.memory_space<vmem>>, %arg16: memref<1x32x32xf32, #tpu.memory_space<vmem>>, %arg17: memref<1x1x32xf32, #tpu.memory_space<vmem>>, %arg18: memref<1x1x32xf32, #tpu.memory_space<vmem>>, %arg19: memref<1x1x32xf32, #tpu.memory_space<vmem>>, %arg20: memref<1x32x128xf32, #tpu.memory_space<vmem>>, %arg21: memref<1x1x128xf32, #tpu.memory_space<vmem>>, %arg22: memref<1x128x32xf32, #tpu.memory_space<vmem>>, %arg23: memref<1x1x32xf32, #tpu.memory_space<vmem>>, %arg24: memref<1x1x128xf32, #tpu.memory_space<vmem>>, %arg25: memref<1x17x32xf32, #tpu.memory_space<vmem>>) attributes {dimension_semantics = [#tpu.dimension_semantics<parallel>, #tpu.dimension_semantics<arbitrary>], iteration_bounds = array<i64: 2, 12>, scalar_prefetch = 0 : i64, scratch_operands = 1 : i64, tpu.core_type = #tpu.core_type<tc>, window_params = [{transform_indices = @transform_0, window_bounds = array<i64: 1, 17, 64>}, {pipeline_mode = #tpu.pipeline_mode<synchronous>, transform_indices = @transform_1, window_bounds = array<i64: 64, 32>}, {pipeline_mode = #tpu.pipeline_mode<synchronous>, transform_indices = @transform_2, window_bounds = array<i64: 1, 17, 32>}, {pipeline_mode = #tpu.pipeline_mode<synchronous>, transform_indices = @transform_3, window_bounds = array<i64: 32, 512>}, {pipeline_mode = #tpu.pipeline_mode<synchronous>, transform_indices = @transform_4, window_bounds = array<i64: 512, 32>}, {pipeline_mode = #tpu.pipeline_mode<synchronous>, transform_indices = @transform_5, window_bounds = array<i64: 512, 8>}, {pipeline_mode = #tpu.pipeline_mode<synchronous>, transform_indices = @transform_6, window_bounds = array<i64: 8, 512>}, {transform_indices = @transform_7, window_bounds = array<i64: 1, 1, 32>}, {transform_indices = @transform_8, window_bounds = array<i64: 1, 1, 32>}, {transform_indices = @transform_9, window_bounds = array<i64: 1, 32, 32>}, {transform_indices = @transform_10, window_bounds = array<i64: 1, 32, 32>}, {transform_indices = @transform_11, window_bounds = array<i64: 1, 32, 32>}, {transform_indices = @transform_12, window_bounds = array<i64: 1, 64, 17>}, {transform_indices = @transform_13, window_bounds = array<i64: 1, 64, 17>}, {transform_indices = @transform_14, window_bounds = array<i64: 1, 32, 32>}, {transform_indices = @transform_15, window_bounds = array<i64: 1, 1, 32>}, {transform_indices = @transform_16, window_bounds = array<i64: 1, 1, 32>}, {transform_indices = @transform_17, window_bounds = array<i64: 1, 1, 32>}, {transform_indices = @transform_18, window_bounds = array<i64: 1, 32, 128>}, {transform_indices = @transform_19, window_bounds = array<i64: 1, 1, 128>}, {transform_indices = @transform_20, window_bounds = array<i64: 1, 128, 32>}, {transform_indices = @transform_21, window_bounds = array<i64: 1, 1, 32>}, {transform_indices = @transform_22, window_bounds = array<i64: 1, 1, 128>}]} {
    %c0_i32 = arith.constant 0 : i32
    %0 = arith.cmpi eq, %arg1, %c0_i32 : i32
    %1 = arith.extui %0 : i1 to i32
    %c0_i32_0 = arith.constant 0 : i32
    %2 = arith.cmpi ne, %1, %c0_i32_0 : i32
    scf.if %2 {
      %c0_85 = arith.constant 0 : index
      %c0_86 = arith.constant 0 : index
      %c0_87 = arith.constant 0 : index
      %123 = vector.load %arg2[%c0_85, %c0_86, %c0_87] : memref<1x17x64xf32, #tpu.memory_space<vmem>>, vector<1x17x64xf32>
      %124 = vector.shape_cast %123 : vector<1x17x64xf32> to vector<17x64xf32>
      %c0_88 = arith.constant 0 : index
      %c0_89 = arith.constant 0 : index
      %125 = vector.load %arg3[%c0_88, %c0_89] : memref<64x32xf32, #tpu.memory_space<vmem>>, vector<64x32xf32>
      %cst_90 = arith.constant dense<0.000000e+00> : vector<17x32xf32>
      %126 = tpu.matmul %124, %125, %cst_90 {dimension_numbers = #tpu.dot_dimension_numbers<[1], [0], [0], [1], [0, 0, 1, 1], [], []>} : vector<17x64xf32>, vector<64x32xf32>, vector<17x32xf32> -> vector<17x32xf32>
      %c0_91 = arith.constant 0 : index
      %c0_92 = arith.constant 0 : index
      %c0_93 = arith.constant 0 : index
      %127 = vector.load %arg4[%c0_91, %c0_92, %c0_93] : memref<1x17x32xf32, #tpu.memory_space<vmem>>, vector<1x17x32xf32>
      %128 = vector.shape_cast %127 : vector<1x17x32xf32> to vector<17x32xf32>
      %129 = arith.addf %126, %128 : vector<17x32xf32>
      %c0_94 = arith.constant 0 : index
      %c0_95 = arith.constant 0 : index
      %c0_96 = arith.constant 0 : index
      %130 = vector.load %arg25[%c0_94, %c0_95, %c0_96] : memref<1x17x32xf32, #tpu.memory_space<vmem>>, vector<1x17x32xf32>
      %131 = vector.shape_cast %130 : vector<1x17x32xf32> to vector<17x32xf32>
      %132 = vector.shape_cast %129 : vector<17x32xf32> to vector<1x17x32xf32>
      tpu.vector_store %arg25[%c0_94, %c0_95, %c0_96], %132 {strides = array<i32>} : memref<1x17x32xf32, #tpu.memory_space<vmem>>, vector<1x17x32xf32>,
    } else {
    }
    %c0 = arith.constant 0 : index
    %c0_1 = arith.constant 0 : index
    %3 = vector.load %arg5[%c0, %c0_1] : memref<32x512xf32, #tpu.memory_space<vmem>>, vector<32x512xf32>
    %c0_2 = arith.constant 0 : index
    %c0_3 = arith.constant 0 : index
    %4 = vector.load %arg6[%c0_2, %c0_3] : memref<512x32xf32, #tpu.memory_space<vmem>>, vector<512x32xf32>
    %c0_4 = arith.constant 0 : index
    %c0_5 = arith.constant 0 : index
    %5 = vector.load %arg7[%c0_4, %c0_5] : memref<512x8xf32, #tpu.memory_space<vmem>>, vector<512x8xf32>
    %c0_6 = arith.constant 0 : index
    %c0_7 = arith.constant 0 : index
    %6 = vector.load %arg8[%c0_6, %c0_7] : memref<8x512xf32, #tpu.memory_space<vmem>>, vector<8x512xf32>
    %c0_8 = arith.constant 0 : index
    %c0_9 = arith.constant 0 : index
    %c0_10 = arith.constant 0 : index
    %7 = vector.load %arg14[%c0_8, %c0_9, %c0_10] : memref<1x64x17xf32, #tpu.memory_space<vmem>>, vector<1x64x17xf32>
    %8 = vector.shape_cast %7 : vector<1x64x17xf32> to vector<64x17xf32>
    %c0_11 = arith.constant 0 : index
    %c0_12 = arith.constant 0 : index
    %c0_13 = arith.constant 0 : index
    %9 = vector.load %arg15[%c0_11, %c0_12, %c0_13] : memref<1x64x17xf32, #tpu.memory_space<vmem>>, vector<1x64x17xf32>
    %10 = vector.shape_cast %9 : vector<1x64x17xf32> to vector<64x17xf32>
    %c0_14 = arith.constant 0 : index
    %c0_15 = arith.constant 0 : index
    %c0_16 = arith.constant 0 : index
    %11 = vector.load %arg11[%c0_14, %c0_15, %c0_16] : memref<1x32x32xf32, #tpu.memory_space<vmem>>, vector<1x32x32xf32>
    %12 = vector.shape_cast %11 : vector<1x32x32xf32> to vector<32x32xf32>
    %c0_17 = arith.constant 0 : index
    %c0_18 = arith.constant 0 : index
    %c0_19 = arith.constant 0 : index
    %13 = vector.load %arg12[%c0_17, %c0_18, %c0_19] : memref<1x32x32xf32, #tpu.memory_space<vmem>>, vector<1x32x32xf32>
    %14 = vector.shape_cast %13 : vector<1x32x32xf32> to vector<32x32xf32>
    %c0_20 = arith.constant 0 : index
    %c0_21 = arith.constant 0 : index
    %c0_22 = arith.constant 0 : index
    %15 = vector.load %arg13[%c0_20, %c0_21, %c0_22] : memref<1x32x32xf32, #tpu.memory_space<vmem>>, vector<1x32x32xf32>
    %16 = vector.shape_cast %15 : vector<1x32x32xf32> to vector<32x32xf32>
    %c0_23 = arith.constant 0 : index
    %c0_24 = arith.constant 0 : index
    %c0_25 = arith.constant 0 : index
    %17 = vector.load %arg16[%c0_23, %c0_24, %c0_25] : memref<1x32x32xf32, #tpu.memory_space<vmem>>, vector<1x32x32xf32>
    %18 = vector.shape_cast %17 : vector<1x32x32xf32> to vector<32x32xf32>
    %c0_26 = arith.constant 0 : index
    %c0_27 = arith.constant 0 : index
    %c0_28 = arith.constant 0 : index
    %19 = vector.load %arg9[%c0_26, %c0_27, %c0_28] : memref<1x1x32xf32, #tpu.memory_space<vmem>>, vector<1x1x32xf32>
    %20 = vector.shape_cast %19 : vector<1x1x32xf32> to vector<1x32xf32>
    %c0_29 = arith.constant 0 : index
    %c0_30 = arith.constant 0 : index
    %c0_31 = arith.constant 0 : index
    %21 = vector.load %arg10[%c0_29, %c0_30, %c0_31] : memref<1x1x32xf32, #tpu.memory_space<vmem>>, vector<1x1x32xf32>
    %22 = vector.shape_cast %21 : vector<1x1x32xf32> to vector<1x32xf32>
    %c0_32 = arith.constant 0 : index
    %c0_33 = arith.constant 0 : index
    %c0_34 = arith.constant 0 : index
    %23 = vector.load %arg17[%c0_32, %c0_33, %c0_34] : memref<1x1x32xf32, #tpu.memory_space<vmem>>, vector<1x1x32xf32>
    %24 = vector.shape_cast %23 : vector<1x1x32xf32> to vector<1x32xf32>
    %c0_35 = arith.constant 0 : index
    %c0_36 = arith.constant 0 : index
    %c0_37 = arith.constant 0 : index
    %25 = vector.load %arg18[%c0_35, %c0_36, %c0_37] : memref<1x1x32xf32, #tpu.memory_space<vmem>>, vector<1x1x32xf32>
    %26 = vector.shape_cast %25 : vector<1x1x32xf32> to vector<1x32xf32>
    %c0_38 = arith.constant 0 : index
    %c0_39 = arith.constant 0 : index
    %c0_40 = arith.constant 0 : index
    %27 = vector.load %arg19[%c0_38, %c0_39, %c0_40] : memref<1x1x32xf32, #tpu.memory_space<vmem>>, vector<1x1x32xf32>
    %28 = vector.shape_cast %27 : vector<1x1x32xf32> to vector<1x32xf32>
    %c0_41 = arith.constant 0 : index
    %c0_42 = arith.constant 0 : index
    %c0_43 = arith.constant 0 : index
    %29 = vector.load %arg20[%c0_41, %c0_42, %c0_43] : memref<1x32x128xf32, #tpu.memory_space<vmem>>, vector<1x32x128xf32>
    %30 = vector.shape_cast %29 : vector<1x32x128xf32> to vector<32x128xf32>
    %c0_44 = arith.constant 0 : index
    %c0_45 = arith.constant 0 : index
    %c0_46 = arith.constant 0 : index
    %31 = vector.load %arg21[%c0_44, %c0_45, %c0_46] : memref<1x1x128xf32, #tpu.memory_space<vmem>>, vector<1x1x128xf32>
    %32 = vector.shape_cast %31 : vector<1x1x128xf32> to vector<1x128xf32>
    %c0_47 = arith.constant 0 : index
    %c0_48 = arith.constant 0 : index
    %c0_49 = arith.constant 0 : index
    %33 = vector.load %arg22[%c0_47, %c0_48, %c0_49] : memref<1x128x32xf32, #tpu.memory_space<vmem>>, vector<1x128x32xf32>
    %34 = vector.shape_cast %33 : vector<1x128x32xf32> to vector<128x32xf32>
    %c0_50 = arith.constant 0 : index
    %c0_51 = arith.constant 0 : index
    %c0_52 = arith.constant 0 : index
    %35 = vector.load %arg23[%c0_50, %c0_51, %c0_52] : memref<1x1x32xf32, #tpu.memory_space<vmem>>, vector<1x1x32xf32>
    %36 = vector.shape_cast %35 : vector<1x1x32xf32> to vector<1x32xf32>
    %c0_53 = arith.constant 0 : index
    %c0_54 = arith.constant 0 : index
    %c0_55 = arith.constant 0 : index
    %37 = vector.load %arg25[%c0_53, %c0_54, %c0_55] : memref<1x17x32xf32, #tpu.memory_space<vmem>>, vector<1x17x32xf32>
    %38 = vector.shape_cast %37 : vector<1x17x32xf32> to vector<17x32xf32>
    %cst = arith.constant dense<0.000000e+00> : vector<17xf32>
    %39 = vector.multi_reduction <add>, %38, %cst [1] : vector<17x32xf32> to vector<17xf32>
    %40 = vector.shape_cast %39 : vector<17xf32> to vector<17x1xf32>
    %cst_56 = arith.constant 3.200000e+01 : f32
    %41 = vector.broadcast %cst_56 : f32 to vector<17x1xf32>
    %42 = arith.divf %40, %41 : vector<17x1xf32>
    %43 = vector.broadcast %42 : vector<17x1xf32> to vector<17x32xf32>
    %44 = arith.subf %38, %43 : vector<17x32xf32>
    %45 = arith.mulf %44, %44 : vector<17x32xf32>
    %cst_57 = arith.constant dense<0.000000e+00> : vector<17xf32>
    %46 = vector.multi_reduction <add>, %45, %cst_57 [1] : vector<17x32xf32> to vector<17xf32>
    %47 = vector.shape_cast %46 : vector<17xf32> to vector<17x1xf32>
    %cst_58 = arith.constant 3.200000e+01 : f32
    %48 = vector.broadcast %cst_58 : f32 to vector<17x1xf32>
    %49 = arith.divf %47, %48 : vector<17x1xf32>
    %cst_59 = arith.constant 9.99999974E-6 : f32
    %50 = vector.broadcast %cst_59 : f32 to vector<17x1xf32>
    %51 = arith.addf %49, %50 : vector<17x1xf32>
    %52 = math.rsqrt %51 : vector<17x1xf32>
    %53 = vector.broadcast %52 : vector<17x1xf32> to vector<17x32xf32>
    %54 = arith.mulf %44, %53 : vector<17x32xf32>
    %55 = vector.broadcast %20 : vector<1x32xf32> to vector<17x32xf32>
    %56 = arith.mulf %54, %55 : vector<17x32xf32>
    %57 = vector.broadcast %22 : vector<1x32xf32> to vector<17x32xf32>
    %58 = arith.addf %56, %57 : vector<17x32xf32>
    %cst_60 = arith.constant dense<0.000000e+00> : vector<17x32xf32>
    %59 = tpu.matmul %58, %12, %cst_60 {dimension_numbers = #tpu.dot_dimension_numbers<[1], [0], [0], [1], [0, 0, 1, 1], [], []>} : vector<17x32xf32>, vector<32x32xf32>, vector<17x32xf32> -> vector<17x32xf32>
    %cst_61 = arith.constant dense<0.000000e+00> : vector<17x32xf32>
    %60 = tpu.matmul %58, %14, %cst_61 {dimension_numbers = #tpu.dot_dimension_numbers<[1], [0], [0], [1], [0, 0, 1, 1], [], []>} : vector<17x32xf32>, vector<32x32xf32>, vector<17x32xf32> -> vector<17x32xf32>
    %cst_62 = arith.constant dense<0.000000e+00> : vector<17x32xf32>
    %61 = tpu.matmul %58, %16, %cst_62 {dimension_numbers = #tpu.dot_dimension_numbers<[1], [0], [0], [1], [0, 0, 1, 1], [], []>} : vector<17x32xf32>, vector<32x32xf32>, vector<17x32xf32> -> vector<17x32xf32>
    %cst_63 = arith.constant dense<0.000000e+00> : vector<32x64xf32>
    %62 = tpu.matmul %60, %8, %cst_63 {dimension_numbers = #tpu.dot_dimension_numbers<[0], [1], [1], [0], [0, 1, 1, 0], [], []>} : vector<17x32xf32>, vector<64x17xf32>, vector<32x64xf32> -> vector<32x64xf32>
    %cst_64 = arith.constant dense<0.000000e+00> : vector<64x32xf32>
    %63 = tpu.matmul %10, %61, %cst_64 {dimension_numbers = #tpu.dot_dimension_numbers<[1], [0], [0], [1], [0, 0, 1, 1], [], []>} : vector<64x17xf32>, vector<17x32xf32>, vector<64x32xf32> -> vector<64x32xf32>
    %64 = tpu.concatenate %62, %62, %62, %62, %62, %62, %62, %62 in 1 : vector<32x64xf32>, vector<32x64xf32>, vector<32x64xf32>, vector<32x64xf32>, vector<32x64xf32>, vector<32x64xf32>, vector<32x64xf32>, vector<32x64xf32> -> vector<32x512xf32>
    %65 = arith.mulf %64, %3 : vector<32x512xf32>
    %66 = tpu.concatenate %63, %63, %63, %63, %63, %63, %63, %63 in 0 : vector<64x32xf32>, vector<64x32xf32>, vector<64x32xf32>, vector<64x32xf32>, vector<64x32xf32>, vector<64x32xf32>, vector<64x32xf32>, vector<64x32xf32> -> vector<512x32xf32>
    %67 = arith.mulf %66, %4 : vector<512x32xf32>
    %cst_65 = arith.constant dense<0.000000e+00> : vector<17x512xf32>
    %68 = tpu.matmul %59, %65, %cst_65 {dimension_numbers = #tpu.dot_dimension_numbers<[1], [0], [0], [1], [0, 0, 1, 1], [], []>} : vector<17x32xf32>, vector<32x512xf32>, vector<17x512xf32> -> vector<17x512xf32>
    %cst_66 = arith.constant dense<0xFF800000> : vector<17xf32>
    %69 = vector.multi_reduction <maximumf>, %68, %cst_66 [1] : vector<17x512xf32> to vector<17xf32>
    %70 = vector.shape_cast %69 : vector<17xf32> to vector<17x1xf32>
    %71 = vector.broadcast %70 : vector<17x1xf32> to vector<17x512xf32>
    %72 = arith.subf %68, %71 : vector<17x512xf32>
    %73 = math.exp %72 : vector<17x512xf32>
    %cst_67 = arith.constant dense<0.000000e+00> : vector<17x8xf32>
    %74 = tpu.matmul %73, %5, %cst_67 {dimension_numbers = #tpu.dot_dimension_numbers<[1], [0], [0], [1], [0, 0, 1, 1], [], []>} : vector<17x512xf32>, vector<512x8xf32>, vector<17x8xf32> -> vector<17x8xf32>
    %cst_68 = arith.constant dense<0.000000e+00> : vector<17x512xf32>
    %75 = tpu.matmul %74, %6, %cst_68 {dimension_numbers = #tpu.dot_dimension_numbers<[1], [0], [0], [1], [0, 0, 1, 1], [], []>} : vector<17x8xf32>, vector<8x512xf32>, vector<17x512xf32> -> vector<17x512xf32>
    %76 = arith.divf %73, %75 : vector<17x512xf32>
    %cst_69 = arith.constant dense<0.000000e+00> : vector<17x32xf32>
    %77 = tpu.matmul %76, %67, %cst_69 {dimension_numbers = #tpu.dot_dimension_numbers<[1], [0], [0], [1], [0, 0, 1, 1], [], []>} : vector<17x512xf32>, vector<512x32xf32>, vector<17x32xf32> -> vector<17x32xf32>
    %cst_70 = arith.constant dense<0.000000e+00> : vector<17x32xf32>
    %78 = tpu.matmul %77, %18, %cst_70 {dimension_numbers = #tpu.dot_dimension_numbers<[1], [0], [0], [1], [0, 0, 1, 1], [], []>} : vector<17x32xf32>, vector<32x32xf32>, vector<17x32xf32> -> vector<17x32xf32>
    %79 = arith.addf %38, %78 : vector<17x32xf32>
    %80 = vector.broadcast %24 : vector<1x32xf32> to vector<17x32xf32>
    %81 = arith.addf %79, %80 : vector<17x32xf32>
    %cst_71 = arith.constant dense<0.000000e+00> : vector<17xf32>
    %82 = vector.multi_reduction <add>, %81, %cst_71 [1] : vector<17x32xf32> to vector<17xf32>
    %83 = vector.shape_cast %82 : vector<17xf32> to vector<17x1xf32>
    %cst_72 = arith.constant 3.200000e+01 : f32
    %84 = vector.broadcast %cst_72 : f32 to vector<17x1xf32>
    %85 = arith.divf %83, %84 : vector<17x1xf32>
    %86 = vector.broadcast %85 : vector<17x1xf32> to vector<17x32xf32>
    %87 = arith.subf %81, %86 : vector<17x32xf32>
    %88 = arith.mulf %87, %87 : vector<17x32xf32>
    %cst_73 = arith.constant dense<0.000000e+00> : vector<17xf32>
    %89 = vector.multi_reduction <add>, %88, %cst_73 [1] : vector<17x32xf32> to vector<17xf32>
    %90 = vector.shape_cast %89 : vector<17xf32> to vector<17x1xf32>
    %cst_74 = arith.constant 3.200000e+01 : f32
    %91 = vector.broadcast %cst_74 : f32 to vector<17x1xf32>
    %92 = arith.divf %90, %91 : vector<17x1xf32>
    %cst_75 = arith.constant 9.99999974E-6 : f32
    %93 = vector.broadcast %cst_75 : f32 to vector<17x1xf32>
    %94 = arith.addf %92, %93 : vector<17x1xf32>
    %95 = math.rsqrt %94 : vector<17x1xf32>
    %96 = vector.broadcast %95 : vector<17x1xf32> to vector<17x32xf32>
    %97 = arith.mulf %87, %96 : vector<17x32xf32>
    %98 = vector.broadcast %26 : vector<1x32xf32> to vector<17x32xf32>
    %99 = arith.mulf %97, %98 : vector<17x32xf32>
    %100 = vector.broadcast %28 : vector<1x32xf32> to vector<17x32xf32>
    %101 = arith.addf %99, %100 : vector<17x32xf32>
    %cst_76 = arith.constant dense<0.000000e+00> : vector<17x128xf32>
    %102 = tpu.matmul %101, %30, %cst_76 {dimension_numbers = #tpu.dot_dimension_numbers<[1], [0], [0], [1], [0, 0, 1, 1], [], []>} : vector<17x32xf32>, vector<32x128xf32>, vector<17x128xf32> -> vector<17x128xf32>
    %103 = vector.broadcast %32 : vector<1x128xf32> to vector<17x128xf32>
    %104 = arith.addf %102, %103 : vector<17x128xf32>
    %cst_77 = arith.constant 5.000000e-01 : f32
    %105 = vector.broadcast %cst_77 : f32 to vector<17x128xf32>
    %106 = arith.mulf %105, %104 : vector<17x128xf32>
    %cst_78 = arith.constant 0.707106769 : f32
    %107 = vector.broadcast %cst_78 : f32 to vector<17x128xf32>
    %108 = arith.mulf %104, %107 : vector<17x128xf32>
    %109 = math.erf %108 : vector<17x128xf32>
    %cst_79 = arith.constant 1.000000e+00 : f32
    %110 = vector.broadcast %cst_79 : f32 to vector<17x128xf32>
    %111 = arith.addf %110, %109 : vector<17x128xf32>
    %112 = arith.mulf %106, %111 : vector<17x128xf32>
    %cst_80 = arith.constant dense<0.000000e+00> : vector<17x32xf32>
    %113 = tpu.matmul %112, %34, %cst_80 {dimension_numbers = #tpu.dot_dimension_numbers<[1], [0], [0], [1], [0, 0, 1, 1], [], []>} : vector<17x128xf32>, vector<128x32xf32>, vector<17x32xf32> -> vector<17x32xf32>
    %114 = vector.broadcast %36 : vector<1x32xf32> to vector<17x32xf32>
    %115 = arith.addf %113, %114 : vector<17x32xf32>
    %116 = arith.addf %81, %115 : vector<17x32xf32>
    %c0_81 = arith.constant 0 : index
    %c0_82 = arith.constant 0 : index
    %c0_83 = arith.constant 0 : index
    %117 = vector.load %arg25[%c0_81, %c0_82, %c0_83] : memref<1x17x32xf32, #tpu.memory_space<vmem>>, vector<1x17x32xf32>
    %118 = vector.shape_cast %117 : vector<1x17x32xf32> to vector<17x32xf32>
    %119 = vector.shape_cast %116 : vector<17x32xf32> to vector<1x17x32xf32>
    tpu.vector_store %arg25[%c0_81, %c0_82, %c0_83], %119 {strides = array<i32>} : memref<1x17x32xf32, #tpu.memory_space<vmem>>, vector<1x17x32xf32>,
    %c11_i32 = arith.constant 11 : i32
    %120 = arith.cmpi eq, %arg1, %c11_i32 : i32
    %121 = arith.extui %120 : i1 to i32
    %c0_i32_84 = arith.constant 0 : i32
    %122 = arith.cmpi ne, %121, %c0_i32_84 : i32
    scf.if %122 {
      %123 = vector.extract_strided_slice %116 {offsets = [0, 0], sizes = [1, 32], strides = [1, 1]} : vector<17x32xf32> to vector<1x32xf32>
      %cst_85 = arith.constant 0.000000e+00 : f32
      %124 = vector.broadcast %cst_85 : f32 to vector<1x96xf32>
      %125 = tpu.concatenate %123, %124 in 1 : vector<1x32xf32>, vector<1x96xf32> -> vector<1x128xf32>
      %c0_86 = arith.constant 0 : index
      %c0_87 = arith.constant 0 : index
      %c0_88 = arith.constant 0 : index
      %126 = vector.load %arg24[%c0_86, %c0_87, %c0_88] : memref<1x1x128xf32, #tpu.memory_space<vmem>>, vector<1x1x128xf32>
      %127 = vector.shape_cast %126 : vector<1x1x128xf32> to vector<1x128xf32>
      %128 = vector.shape_cast %125 : vector<1x128xf32> to vector<1x1x128xf32>
      tpu.vector_store %arg24[%c0_86, %c0_87, %c0_88], %128 {strides = array<i32>} : memref<1x1x128xf32, #tpu.memory_space<vmem>>, vector<1x1x128xf32>,
    } else {
    }
    return
  }
  func.func @transform_0(%arg0: i32, %arg1: i32) -> (i32, i32, i32) {
    %c0_i32 = arith.constant 0 : i32
    %c0_i32_0 = arith.constant 0 : i32
    %c0_i32_1 = arith.constant 0 : i32
    return %arg0, %c0_i32, %c0_i32_0 : i32, i32, i32
  }
  func.func @transform_1(%arg0: i32, %arg1: i32) -> (i32, i32) {
    %c0_i32 = arith.constant 0 : i32
    %c0_i32_0 = arith.constant 0 : i32
    %c0_i32_1 = arith.constant 0 : i32
    return %c0_i32, %c0_i32_0 : i32, i32
  }
  func.func @transform_2(%arg0: i32, %arg1: i32) -> (i32, i32, i32) {
    %c0_i32 = arith.constant 0 : i32
    %c0_i32_0 = arith.constant 0 : i32
    %c0_i32_1 = arith.constant 0 : i32
    %c0_i32_2 = arith.constant 0 : i32
    return %c0_i32, %c0_i32_0, %c0_i32_1 : i32, i32, i32
  }
  func.func @transform_3(%arg0: i32, %arg1: i32) -> (i32, i32) {
    %c0_i32 = arith.constant 0 : i32
    %c0_i32_0 = arith.constant 0 : i32
    %c0_i32_1 = arith.constant 0 : i32
    return %c0_i32, %c0_i32_0 : i32, i32
  }
  func.func @transform_4(%arg0: i32, %arg1: i32) -> (i32, i32) {
    %c0_i32 = arith.constant 0 : i32
    %c0_i32_0 = arith.constant 0 : i32
    %c0_i32_1 = arith.constant 0 : i32
    return %c0_i32, %c0_i32_0 : i32, i32
  }
  func.func @transform_5(%arg0: i32, %arg1: i32) -> (i32, i32) {
    %c0_i32 = arith.constant 0 : i32
    %c0_i32_0 = arith.constant 0 : i32
    %c0_i32_1 = arith.constant 0 : i32
    return %c0_i32, %c0_i32_0 : i32, i32
  }
  func.func @transform_6(%arg0: i32, %arg1: i32) -> (i32, i32) {
    %c0_i32 = arith.constant 0 : i32
    %c0_i32_0 = arith.constant 0 : i32
    %c0_i32_1 = arith.constant 0 : i32
    return %c0_i32, %c0_i32_0 : i32, i32
  }
  func.func @transform_7(%arg0: i32, %arg1: i32) -> (i32, i32, i32) {
    %c0_i32 = arith.constant 0 : i32
    %c0_i32_0 = arith.constant 0 : i32
    %c0_i32_1 = arith.constant 0 : i32
    return %arg1, %c0_i32, %c0_i32_0 : i32, i32, i32
  }
  func.func @transform_8(%arg0: i32, %arg1: i32) -> (i32, i32, i32) {
    %c0_i32 = arith.constant 0 : i32
    %c0_i32_0 = arith.constant 0 : i32
    %c0_i32_1 = arith.constant 0 : i32
    return %arg1, %c0_i32, %c0_i32_0 : i32, i32, i32
  }
  func.func @transform_9(%arg0: i32, %arg1: i32) -> (i32, i32, i32) {
    %c0_i32 = arith.constant 0 : i32
    %c0_i32_0 = arith.constant 0 : i32
    %c0_i32_1 = arith.constant 0 : i32
    return %arg1, %c0_i32, %c0_i32_0 : i32, i32, i32
  }
  func.func @transform_10(%arg0: i32, %arg1: i32) -> (i32, i32, i32) {
    %c0_i32 = arith.constant 0 : i32
    %c0_i32_0 = arith.constant 0 : i32
    %c0_i32_1 = arith.constant 0 : i32
    return %arg1, %c0_i32, %c0_i32_0 : i32, i32, i32
  }
  func.func @transform_11(%arg0: i32, %arg1: i32) -> (i32, i32, i32) {
    %c0_i32 = arith.constant 0 : i32
    %c0_i32_0 = arith.constant 0 : i32
    %c0_i32_1 = arith.constant 0 : i32
    return %arg1, %c0_i32, %c0_i32_0 : i32, i32, i32
  }
  func.func @transform_12(%arg0: i32, %arg1: i32) -> (i32, i32, i32) {
    %c0_i32 = arith.constant 0 : i32
    %c0_i32_0 = arith.constant 0 : i32
    %c0_i32_1 = arith.constant 0 : i32
    return %arg1, %c0_i32, %c0_i32_0 : i32, i32, i32
  }
  func.func @transform_13(%arg0: i32, %arg1: i32) -> (i32, i32, i32) {
    %c0_i32 = arith.constant 0 : i32
    %c0_i32_0 = arith.constant 0 : i32
    %c0_i32_1 = arith.constant 0 : i32
    return %arg1, %c0_i32, %c0_i32_0 : i32, i32, i32
  }
  func.func @transform_14(%arg0: i32, %arg1: i32) -> (i32, i32, i32) {
    %c0_i32 = arith.constant 0 : i32
    %c0_i32_0 = arith.constant 0 : i32
    %c0_i32_1 = arith.constant 0 : i32
    return %arg1, %c0_i32, %c0_i32_0 : i32, i32, i32
  }
  func.func @transform_15(%arg0: i32, %arg1: i32) -> (i32, i32, i32) {
    %c0_i32 = arith.constant 0 : i32
    %c0_i32_0 = arith.constant 0 : i32
    %c0_i32_1 = arith.constant 0 : i32
    return %arg1, %c0_i32, %c0_i32_0 : i32, i32, i32
  }
  func.func @transform_16(%arg0: i32, %arg1: i32) -> (i32, i32, i32) {
    %c0_i32 = arith.constant 0 : i32
    %c0_i32_0 = arith.constant 0 : i32
    %c0_i32_1 = arith.constant 0 : i32
    return %arg1, %c0_i32, %c0_i32_0 : i32, i32, i32
  }
  func.func @transform_17(%arg0: i32, %arg1: i32) -> (i32, i32, i32) {
    %c0_i32 = arith.constant 0 : i32
    %c0_i32_0 = arith.constant 0 : i32
    %c0_i32_1 = arith.constant 0 : i32
    return %arg1, %c0_i32, %c0_i32_0 : i32, i32, i32
  }
  func.func @transform_18(%arg0: i32, %arg1: i32) -> (i32, i32, i32) {
    %c0_i32 = arith.constant 0 : i32
    %c0_i32_0 = arith.constant 0 : i32
    %c0_i32_1 = arith.constant 0 : i32
    return %arg1, %c0_i32, %c0_i32_0 : i32, i32, i32
  }
  func.func @transform_19(%arg0: i32, %arg1: i32) -> (i32, i32, i32) {
    %c0_i32 = arith.constant 0 : i32
    %c0_i32_0 = arith.constant 0 : i32
    %c0_i32_1 = arith.constant 0 : i32
    return %arg1, %c0_i32, %c0_i32_0 : i32, i32, i32
  }
  func.func @transform_20(%arg0: i32, %arg1: i32) -> (i32, i32, i32) {
    %c0_i32 = arith.constant 0 : i32
    %c0_i32_0 = arith.constant 0 : i32
    %c0_i32_1 = arith.constant 0 : i32
    return %arg1, %c0_i32, %c0_i32_0 : i32, i32, i32
  }
  func.func @transform_21(%arg0: i32, %arg1: i32) -> (i32, i32, i32) {
    %c0_i32 = arith.constant 0 : i32
    %c0_i32_0 = arith.constant 0 : i32
    %c0_i32_1 = arith.constant 0 : i32
    return %arg1, %c0_i32, %c0_i32_0 : i32, i32, i32
  }
  func.func @transform_22(%arg0: i32, %arg1: i32) -> (i32, i32, i32) {
    %c0_i32 = arith.constant 0 : i32
    %c0_i32_0 = arith.constant 0 : i32
    %c0_i32_1 = arith.constant 0 : i32
    return %arg0, %c0_i32, %c0_i32_0 : i32, i32, i32
  }
}

</mosaic_0001>

<llo_original>
// kernel: vit_forward.1
$region0: #{vit_forward.1}
  #allocation0 [shape = 'u32[]', space=smem, size = 0x4, offset = 0x4, fixed_abs, tag = 'smem constant byte address 0x4 - core index']
  #allocation1 [shape = 'u32[144,128]{1,0:T(1,128)}', space=vmem, size = 0x12000, scoped, tag = 'internal scratch']
  #allocation2 [shape = 'f32[1,17,32]{2,1,0:T(8,128)}', space=vmem, size = 0x3000, scoped, tag = 'scratch operand']
  %s0 = inlined_call_operand.vmem [shape: f32[2,17,64], index: 0, kind: input, shape index: {}]
  %s1 = inlined_call_operand.vmem [shape: f32[64,32], index: 1, kind: input, shape index: {}]
  %s2 = inlined_call_operand.vmem [shape: f32[1,17,32], index: 2, kind: input, shape index: {}]
  %s3 = inlined_call_operand.vmem [shape: f32[32,512], index: 3, kind: input, shape index: {}]
  %s4 = inlined_call_operand.vmem [shape: f32[512,32], index: 4, kind: input, shape index: {}]
  %s5 = inlined_call_operand.vmem [shape: f32[512,8], index: 5, kind: input, shape index: {}]
  %s6 = inlined_call_operand.vmem [shape: f32[8,512], index: 6, kind: input, shape index: {}]
  %s7 = inlined_call_operand.vmem [shape: f32[12,1,32], index: 7, kind: input, shape index: {}]
  %s8 = inlined_call_operand.vmem [shape: f32[12,1,32], index: 8, kind: input, shape index: {}]
  %s9 = inlined_call_operand.vmem [shape: f32[12,32,32], index: 9, kind: input, shape index: {}]
  %s10 = inlined_call_operand.vmem [shape: f32[12,32,32], index: 10, kind: input, shape index: {}]
  %s11 = inlined_call_operand.vmem [shape: f32[12,32,32], index: 11, kind: input, shape index: {}]
  %s12 = inlined_call_operand.vmem [shape: f32[12,64,17], index: 12, kind: input, shape index: {}]
  %s13 = inlined_call_operand.vmem [shape: f32[12,64,17], index: 13, kind: input, shape index: {}]
  %s14 = inlined_call_operand.vmem [shape: f32[12,32,32], index: 14, kind: input, shape index: {}]
  %s15 = inlined_call_operand.vmem [shape: f32[12,1,32], index: 15, kind: input, shape index: {}]
  %s16 = inlined_call_operand.vmem [shape: f32[12,1,32], index: 16, kind: input, shape index: {}]
  %s17 = inlined_call_operand.vmem [shape: f32[12,1,32], index: 17, kind: input, shape index: {}]
  %s18 = inlined_call_operand.vmem [shape: f32[12,32,128], index: 18, kind: input, shape index: {}]
  %s19 = inlined_call_operand.vmem [shape: f32[12,1,128], index: 19, kind: input, shape index: {}]
  %s20 = inlined_call_operand.vmem [shape: f32[12,128,32], index: 20, kind: input, shape index: {}]
  %s21 = inlined_call_operand.vmem [shape: f32[12,1,32], index: 21, kind: input, shape index: {}]
  %s22 = inlined_call_operand.hbm [shape: f32[2,1,128], index: 22, kind: output, shape index: {}]
  %s23 = sld [smem:[#allocation0]]
  $region129: #{vit_forward.1} parent=0
    _
  %s25 = ssub.s32 1, %s23
  %s26 = scalar_select 0, %s25, %s23
  $region1: #{vit_forward.1} parent=0
    #allocation3 [shape = 'u8[1024]{0}', space=vmem, size = 0x400, scoped, tag = 'output window, operand 0']
    #allocation4 [shape = 's32[2]{0}', space=sflag, size = 0x8, scoped, tag = 'scoped memory for vit_forward.1']
    %27 = vsyncpa [#allocation4], 0
    %s28 = scalar_lea.sflag [#allocation4], 1
    %29 = vsyncpa %s28, 0
    loop: start=0, step=1, limit=26
    $region2: #{vit_forward.1} parent=1 // loop_pre_header
      _
    $region3: #{vit_forward.1} parent=1 // loop_header
      %s31 = sphi 0, %s35
      %p32 = scmp.ge.s32.totalorder %s31, 26
      %s38 = sphi 0, %s50
      %s39 = sphi 0, %s46
      %s40 = sphi 0, %s38
      %s41 = sphi 0, %s39
      %s42 = sphi 0, %s40
      %s43 = sphi 0, %s41
      %s53 = sphi 0, %s55
      %s56 = sphi 0, %s53
      %s57 = sphi 0, %s56
      %s73 = sphi 0, %s57
      %s77 = sphi 0, %s77
      %s79 = sphi 0, %s77
      %s80 = sphi 0, %s79
      %s94 = sphi 0, %s80
      %s98 = sphi 0, %s98
      %s100 = sphi 0, %s98
      %s101 = sphi 0, %s100
      %s115 = sphi 0, %s101
      %s119 = sphi 0, %s119
      %s121 = sphi 0, %s119
      %s122 = sphi 0, %s121
      %s136 = sphi 0, %s122
      %s140 = sphi 0, %s140
      %s142 = sphi 0, %s140
      %s143 = sphi 0, %s142
      %s157 = sphi 0, %s143
      %s161 = sphi 0, %s161
      %s163 = sphi 0, %s161
      %s164 = sphi 0, %s163
      %s178 = sphi 0, %s164
      %s182 = sphi 0, %s182
      %s184 = sphi 0, %s182
      %s185 = sphi 0, %s184
      %s199 = sphi 0, %s185
      %s205 = sphi 0, %s207
      %s208 = sphi 0, %s205
      %s209 = sphi 0, %s208
      %s225 = sphi 0, %s209
      %s231 = sphi 0, %s233
      %s234 = sphi 0, %s231
      %s235 = sphi 0, %s234
      %s251 = sphi 0, %s235
      %s257 = sphi 0, %s259
      %s260 = sphi 0, %s257
      %s261 = sphi 0, %s260
      %s277 = sphi 0, %s261
      %s283 = sphi 0, %s285
      %s286 = sphi 0, %s283
      %s287 = sphi 0, %s286
      %s303 = sphi 0, %s287
      %s309 = sphi 0, %s311
      %s312 = sphi 0, %s309
      %s313 = sphi 0, %s312
      %s329 = sphi 0, %s313
      %s335 = sphi 0, %s337
      %s338 = sphi 0, %s335
      %s339 = sphi 0, %s338
      %s355 = sphi 0, %s339
      %s361 = sphi 0, %s363
      %s364 = sphi 0, %s361
      %s365 = sphi 0, %s364
      %s381 = sphi 0, %s365
      %s387 = sphi 0, %s389
      %s390 = sphi 0, %s387
      %s391 = sphi 0, %s390
      %s407 = sphi 0, %s391
      %s413 = sphi 0, %s415
      %s416 = sphi 0, %s413
      %s417 = sphi 0, %s416
      %s433 = sphi 0, %s417
      %s439 = sphi 0, %s441
      %s442 = sphi 0, %s439
      %s443 = sphi 0, %s442
      %s459 = sphi 0, %s443
      %s465 = sphi 0, %s467
      %s468 = sphi 0, %s465
      %s469 = sphi 0, %s468
      %s485 = sphi 0, %s469
      %s491 = sphi 0, %s493
      %s494 = sphi 0, %s491
      %s495 = sphi 0, %s494
      %s511 = sphi 0, %s495
      %s517 = sphi 0, %s519
      %s520 = sphi 0, %s517
      %s521 = sphi 0, %s520
      %s537 = sphi 0, %s521
      %s543 = sphi 0, %s545
      %s546 = sphi 0, %s543
      %s547 = sphi 0, %s546
      %s563 = sphi 0, %s547
      %s569 = sphi 0, %s571
      %s572 = sphi 0, %s569
      %s573 = sphi 0, %s572
      %s589 = sphi 0, %s573
      %s595 = sphi 0, %s597
      %s598 = sphi 0, %s595
      %s599 = sphi 0, %s598
      %s615 = sphi 0, %s599
    $region4: #{vit_forward.1} parent=1 // loop_header_branch
      %34 = sbr.rel (%p32) target = $region8
    $region5: #{vit_forward.1} parent=1 // loop_body
      %s36 = ssub.s32 %s31, 1
      %s37 = ssub.s32 %s31, 2
      %s44 = sadd.s32 1, %s39
      %p45 = scmp.ge.s32.totalorder %s44, 12
      %s46 = scalar_select %p45, 0, %s44
      %s47 = sadd.s32 1, %s38
      %s48 = scalar_select %p45, %s47, %s38
      %p49 = scmp.ge.s32.totalorder %s48, 2
      %s50 = scalar_select %p49, 0, %s48
      %s51 = ssub.s32 %s38, %s50
      %p52 = scmp.eq.s32.totalorder %s51, 0
      %s54 = sadd.s32 %s53, 1
      %s55 = scalar_select %p52, %s53, %s54
      %p58 = pneg %p52
      %p59 = scmp.eq.s32.totalorder %s31, 23
      %p60 = por %p58, %p59
      %p61 = scmp.ne.s32.totalorder %s53, %s56
      %p62 = scmp.eq.s32.totalorder %s31, 0
      %p63 = por %p61, %p62
      %p64 = scmp.ne.s32.totalorder %s53, %s56
      %p65 = scmp.eq.s32.totalorder %s36, 23
      %p66 = por %p64, %p65
      %p67 = scmp.ne.s32.totalorder %s56, %s57
      %p68 = scmp.eq.s32.totalorder %s36, 0
      %p69 = por %p67, %p68
      %p70 = scmp.ne.s32.totalorder %s56, %s57
      %p71 = scmp.eq.s32.totalorder %s37, 23
      %p72 = por %p70, %p71
      %p74 = scmp.ne.s32.totalorder %s57, %s73
      %p75 = scmp.eq.s32.totalorder %s37, 0
      %p76 = por %p74, %p75
      %s78 = sadd.s32 %s77, 1
      %p81 = scmp.eq.s32.totalorder %s31, 23
      %p82 = scmp.ne.s32.totalorder %s77, %s79
      %p83 = scmp.eq.s32.totalorder %s31, 0
      %p84 = por %p82, %p83
      %p85 = scmp.ne.s32.totalorder %s77, %s79
      %p86 = scmp.eq.s32.totalorder %s36, 23
      %p87 = por %p85, %p86
      %p88 = scmp.ne.s32.totalorder %s79, %s80
      %p89 = scmp.eq.s32.totalorder %s36, 0
      %p90 = por %p88, %p89
      %p91 = scmp.ne.s32.totalorder %s79, %s80
      %p92 = scmp.eq.s32.totalorder %s37, 23
      %p93 = por %p91, %p92
      %p95 = scmp.ne.s32.totalorder %s80, %s94
      %p96 = scmp.eq.s32.totalorder %s37, 0
      %p97 = por %p95, %p96
      %s99 = sadd.s32 %s98, 1
      %p102 = scmp.eq.s32.totalorder %s31, 23
      %p103 = scmp.ne.s32.totalorder %s98, %s100
      %p104 = scmp.eq.s32.totalorder %s31, 0
      %p105 = por %p103, %p104
      %p106 = scmp.ne.s32.totalorder %s98, %s100
      %p107 = scmp.eq.s32.totalorder %s36, 23
      %p108 = por %p106, %p107
      %p109 = scmp.ne.s32.totalorder %s100, %s101
      %p110 = scmp.eq.s32.totalorder %s36, 0
      %p111 = por %p109, %p110
      %p112 = scmp.ne.s32.totalorder %s100, %s101
      %p113 = scmp.eq.s32.totalorder %s37, 23
      %p114 = por %p112, %p113
      %p116 = scmp.ne.s32.totalorder %s101, %s115
      %p117 = scmp.eq.s32.totalorder %s37, 0
      %p118 = por %p116, %p117
      %s120 = sadd.s32 %s119, 1
      %p123 = scmp.eq.s32.totalorder %s31, 23
      %p124 = scmp.ne.s32.totalorder %s119, %s121
      %p125 = scmp.eq.s32.totalorder %s31, 0
      %p126 = por %p124, %p125
      %p127 = scmp.ne.s32.totalorder %s119, %s121
      %p128 = scmp.eq.s32.totalorder %s36, 23
      %p129 = por %p127, %p128
      %p130 = scmp.ne.s32.totalorder %s121, %s122
      %p131 = scmp.eq.s32.totalorder %s36, 0
      %p132 = por %p130, %p131
      %p133 = scmp.ne.s32.totalorder %s121, %s122
      %p134 = scmp.eq.s32.totalorder %s37, 23
      %p135 = por %p133, %p134
      %p137 = scmp.ne.s32.totalorder %s122, %s136
      %p138 = scmp.eq.s32.totalorder %s37, 0
      %p139 = por %p137, %p138
      %s141 = sadd.s32 %s140, 1
      %p144 = scmp.eq.s32.totalorder %s31, 23
      %p145 = scmp.ne.s32.totalorder %s140, %s142
      %p146 = scmp.eq.s32.totalorder %s31, 0
      %p147 = por %p145, %p146
      %p148 = scmp.ne.s32.totalorder %s140, %s142
      %p149 = scmp.eq.s32.totalorder %s36, 23
      %p150 = por %p148, %p149
      %p151 = scmp.ne.s32.totalorder %s142, %s143
      %p152 = scmp.eq.s32.totalorder %s36, 0
      %p153 = por %p151, %p152
      %p154 = scmp.ne.s32.totalorder %s142, %s143
      %p155 = scmp.eq.s32.totalorder %s37, 23
      %p156 = por %p154, %p155
      %p158 = scmp.ne.s32.totalorder %s143, %s157
      %p159 = scmp.eq.s32.totalorder %s37, 0
      %p160 = por %p158, %p159
      %s162 = sadd.s32 %s161, 1
      %p165 = scmp.eq.s32.totalorder %s31, 23
      %p166 = scmp.ne.s32.totalorder %s161, %s163
      %p167 = scmp.eq.s32.totalorder %s31, 0
      %p168 = por %p166, %p167
      %p169 = scmp.ne.s32.totalorder %s161, %s163
      %p170 = scmp.eq.s32.totalorder %s36, 23
      %p171 = por %p169, %p170
      %p172 = scmp.ne.s32.totalorder %s163, %s164
      %p173 = scmp.eq.s32.totalorder %s36, 0
      %p174 = por %p172, %p173
      %p175 = scmp.ne.s32.totalorder %s163, %s164
      %p176 = scmp.eq.s32.totalorder %s37, 23
      %p177 = por %p175, %p176
      %p179 = scmp.ne.s32.totalorder %s164, %s178
      %p180 = scmp.eq.s32.totalorder %s37, 0
      %p181 = por %p179, %p180
      %s183 = sadd.s32 %s182, 1
      %p186 = scmp.eq.s32.totalorder %s31, 23
      %p187 = scmp.ne.s32.totalorder %s182, %s184
      %p188 = scmp.eq.s32.totalorder %s31, 0
      %p189 = por %p187, %p188
      %p190 = scmp.ne.s32.totalorder %s182, %s184
      %p191 = scmp.eq.s32.totalorder %s36, 23
      %p192 = por %p190, %p191
      %p193 = scmp.ne.s32.totalorder %s184, %s185
      %p194 = scmp.eq.s32.totalorder %s36, 0
      %p195 = por %p193, %p194
      %p196 = scmp.ne.s32.totalorder %s184, %s185
      %p197 = scmp.eq.s32.totalorder %s37, 23
      %p198 = por %p196, %p197
      %p200 = scmp.ne.s32.totalorder %s185, %s199
      %p201 = scmp.eq.s32.totalorder %s37, 0
      %p202 = por %p200, %p201
      %s203 = ssub.s32 %s39, %s46
      %p204 = scmp.eq.s32.totalorder %s203, 0
      %s206 = sadd.s32 %s205, 1
      %s207 = scalar_select %p204, %s205, %s206
      %p210 = pneg %p204
      %p211 = scmp.eq.s32.totalorder %s31, 23
      %p212 = por %p210, %p211
      %p213 = scmp.ne.s32.totalorder %s205, %s208
      %p214 = scmp.eq.s32.totalorder %s31, 0
      %p215 = por %p213, %p214
      %p216 = scmp.ne.s32.totalorder %s205, %s208
      %p217 = scmp.eq.s32.totalorder %s36, 23
      %p218 = por %p216, %p217
      %p219 = scmp.ne.s32.totalorder %s208, %s209
      %p220 = scmp.eq.s32.totalorder %s36, 0
      %p221 = por %p219, %p220
      %p222 = scmp.ne.s32.totalorder %s208, %s209
      %p223 = scmp.eq.s32.totalorder %s37, 23
      %p224 = por %p222, %p223
      %p226 = scmp.ne.s32.totalorder %s209, %s225
      %p227 = scmp.eq.s32.totalorder %s37, 0
      %p228 = por %p226, %p227
      %s229 = ssub.s32 %s39, %s46
      %p230 = scmp.eq.s32.totalorder %s229, 0
      %s232 = sadd.s32 %s231, 1
      %s233 = scalar_select %p230, %s231, %s232
      %p236 = pneg %p230
      %p237 = scmp.eq.s32.totalorder %s31, 23
      %p238 = por %p236, %p237
      %p239 = scmp.ne.s32.totalorder %s231, %s234
      %p240 = scmp.eq.s32.totalorder %s31, 0
      %p241 = por %p239, %p240
      %p242 = scmp.ne.s32.totalorder %s231, %s234
      %p243 = scmp.eq.s32.totalorder %s36, 23
      %p244 = por %p242, %p243
      %p245 = scmp.ne.s32.totalorder %s234, %s235
      %p246 = scmp.eq.s32.totalorder %s36, 0
      %p247 = por %p245, %p246
      %p248 = scmp.ne.s32.totalorder %s234, %s235
      %p249 = scmp.eq.s32.totalorder %s37, 23
      %p250 = por %p248, %p249
      %p252 = scmp.ne.s32.totalorder %s235, %s251
      %p253 = scmp.eq.s32.totalorder %s37, 0
      %p254 = por %p252, %p253
      %s255 = ssub.s32 %s39, %s46
      %p256 = scmp.eq.s32.totalorder %s255, 0
      %s258 = sadd.s32 %s257, 1
      %s259 = scalar_select %p256, %s257, %s258
      %p262 = pneg %p256
      %p263 = scmp.eq.s32.totalorder %s31, 23
      %p264 = por %p262, %p263
      %p265 = scmp.ne.s32.totalorder %s257, %s260
      %p266 = scmp.eq.s32.totalorder %s31, 0
      %p267 = por %p265, %p266
      %p268 = scmp.ne.s32.totalorder %s257, %s260
      %p269 = scmp.eq.s32.totalorder %s36, 23
      %p270 = por %p268, %p269
      %p271 = scmp.ne.s32.totalorder %s260, %s261
      %p272 = scmp.eq.s32.totalorder %s36, 0
      %p273 = por %p271, %p272
      %p274 = scmp.ne.s32.totalorder %s260, %s261
      %p275 = scmp.eq.s32.totalorder %s37, 23
      %p276 = por %p274, %p275
      %p278 = scmp.ne.s32.totalorder %s261, %s277
      %p279 = scmp.eq.s32.totalorder %s37, 0
      %p280 = por %p278, %p279
      %s281 = ssub.s32 %s39, %s46
      %p282 = scmp.eq.s32.totalorder %s281, 0
      %s284 = sadd.s32 %s283, 1
      %s285 = scalar_select %p282, %s283, %s284
      %p288 = pneg %p282
      %p289 = scmp.eq.s32.totalorder %s31, 23
      %p290 = por %p288, %p289
      %p291 = scmp.ne.s32.totalorder %s283, %s286
      %p292 = scmp.eq.s32.totalorder %s31, 0
      %p293 = por %p291, %p292
      %p294 = scmp.ne.s32.totalorder %s283, %s286
      %p295 = scmp.eq.s32.totalorder %s36, 23
      %p296 = por %p294, %p295
      %p297 = scmp.ne.s32.totalorder %s286, %s287
      %p298 = scmp.eq.s32.totalorder %s36, 0
      %p299 = por %p297, %p298
      %p300 = scmp.ne.s32.totalorder %s286, %s287
      %p301 = scmp.eq.s32.totalorder %s37, 23
      %p302 = por %p300, %p301
      %p304 = scmp.ne.s32.totalorder %s287, %s303
      %p305 = scmp.eq.s32.totalorder %s37, 0
      %p306 = por %p304, %p305
      %s307 = ssub.s32 %s39, %s46
      %p308 = scmp.eq.s32.totalorder %s307, 0
      %s310 = sadd.s32 %s309, 1
      %s311 = scalar_select %p308, %s309, %s310
      %p314 = pneg %p308
      %p315 = scmp.eq.s32.totalorder %s31, 23
      %p316 = por %p314, %p315
      %p317 = scmp.ne.s32.totalorder %s309, %s312
      %p318 = scmp.eq.s32.totalorder %s31, 0
      %p319 = por %p317, %p318
      %p320 = scmp.ne.s32.totalorder %s309, %s312
      %p321 = scmp.eq.s32.totalorder %s36, 23
      %p322 = por %p320, %p321
      %p323 = scmp.ne.s32.totalorder %s312, %s313
      %p324 = scmp.eq.s32.totalorder %s36, 0
      %p325 = por %p323, %p324
      %p326 = scmp.ne.s32.totalorder %s312, %s313
      %p327 = scmp.eq.s32.totalorder %s37, 23
      %p328 = por %p326, %p327
      %p330 = scmp.ne.s32.totalorder %s313, %s329
      %p331 = scmp.eq.s32.totalorder %s37, 0
      %p332 = por %p330, %p331
      %s333 = ssub.s32 %s39, %s46
      %p334 = scmp.eq.s32.totalorder %s333, 0
      %s336 = sadd.s32 %s335, 1
      %s337 = scalar_select %p334, %s335, %s336
      %p340 = pneg %p334
      %p341 = scmp.eq.s32.totalorder %s31, 23
      %p342 = por %p340, %p341
      %p343 = scmp.ne.s32.totalorder %s335, %s338
      %p344 = scmp.eq.s32.totalorder %s31, 0
      %p345 = por %p343, %p344
      %p346 = scmp.ne.s32.totalorder %s335, %s338
      %p347 = scmp.eq.s32.totalorder %s36, 23
      %p348 = por %p346, %p347
      %p349 = scmp.ne.s32.totalorder %s338, %s339
      %p350 = scmp.eq.s32.totalorder %s36, 0
      %p351 = por %p349, %p350
      %p352 = scmp.ne.s32.totalorder %s338, %s339
      %p353 = scmp.eq.s32.totalorder %s37, 23
      %p354 = por %p352, %p353
      %p356 = scmp.ne.s32.totalorder %s339, %s355
      %p357 = scmp.eq.s32.totalorder %s37, 0
      %p358 = por %p356, %p357
      %s359 = ssub.s32 %s39, %s46
      %p360 = scmp.eq.s32.totalorder %s359, 0
      %s362 = sadd.s32 %s361, 1
      %s363 = scalar_select %p360, %s361, %s362
      %p366 = pneg %p360
      %p367 = scmp.eq.s32.totalorder %s31, 23
      %p368 = por %p366, %p367
      %p369 = scmp.ne.s32.totalorder %s361, %s364
      %p370 = scmp.eq.s32.totalorder %s31, 0
      %p371 = por %p369, %p370
      %p372 = scmp.ne.s32.totalorder %s361, %s364
      %p373 = scmp.eq.s32.totalorder %s36, 23
      %p374 = por %p372, %p373
      %p375 = scmp.ne.s32.totalorder %s364, %s365
      %p376 = scmp.eq.s32.totalorder %s36, 0
      %p377 = por %p375, %p376
      %p378 = scmp.ne.s32.totalorder %s364, %s365
      %p379 = scmp.eq.s32.totalorder %s37, 23
      %p380 = por %p378, %p379
      %p382 = scmp.ne.s32.totalorder %s365, %s381
      %p383 = scmp.eq.s32.totalorder %s37, 0
      %p384 = por %p382, %p383
      %s385 = ssub.s32 %s39, %s46
      %p386 = scmp.eq.s32.totalorder %s385, 0
      %s388 = sadd.s32 %s387, 1
      %s389 = scalar_select %p386, %s387, %s388
      %p392 = pneg %p386
      %p393 = scmp.eq.s32.totalorder %s31, 23
      %p394 = por %p392, %p393
      %p395 = scmp.ne.s32.totalorder %s387, %s390
      %p396 = scmp.eq.s32.totalorder %s31, 0
      %p397 = por %p395, %p396
      %p398 = scmp.ne.s32.totalorder %s387, %s390
      %p399 = scmp.eq.s32.totalorder %s36, 23
      %p400 = por %p398, %p399
      %p401 = scmp.ne.s32.totalorder %s390, %s391
      %p402 = scmp.eq.s32.totalorder %s36, 0
      %p403 = por %p401, %p402
      %p404 = scmp.ne.s32.totalorder %s390, %s391
      %p405 = scmp.eq.s32.totalorder %s37, 23
      %p406 = por %p404, %p405
      %p408 = scmp.ne.s32.totalorder %s391, %s407
      %p409 = scmp.eq.s32.totalorder %s37, 0
      %p410 = por %p408, %p409
      %s411 = ssub.s32 %s39, %s46
      %p412 = scmp.eq.s32.totalorder %s411, 0
      %s414 = sadd.s32 %s413, 1
      %s415 = scalar_select %p412, %s413, %s414
      %p418 = pneg %p412
      %p419 = scmp.eq.s32.totalorder %s31, 23
      %p420 = por %p418, %p419
      %p421 = scmp.ne.s32.totalorder %s413, %s416
      %p422 = scmp.eq.s32.totalorder %s31, 0
      %p423 = por %p421, %p422
      %p424 = scmp.ne.s32.totalorder %s413, %s416
      %p425 = scmp.eq.s32.totalorder %s36, 23
      %p426 = por %p424, %p425
      %p427 = scmp.ne.s32.totalorder %s416, %s417
      %p428 = scmp.eq.s32.totalorder %s36, 0
      %p429 = por %p427, %p428
      %p430 = scmp.ne.s32.totalorder %s416, %s417
      %p431 = scmp.eq.s32.totalorder %s37, 23
      %p432 = por %p430, %p431
      %p434 = scmp.ne.s32.totalorder %s417, %s433
      %p435 = scmp.eq.s32.totalorder %s37, 0
      %p436 = por %p434, %p435
      %s437 = ssub.s32 %s39, %s46
      %p438 = scmp.eq.s32.totalorder %s437, 0
      %s440 = sadd.s32 %s439, 1
      %s441 = scalar_select %p438, %s439, %s440
      %p444 = pneg %p438
      %p445 = scmp.eq.s32.totalorder %s31, 23
      %p446 = por %p444, %p445
      %p447 = scmp.ne.s32.totalorder %s439, %s442
      %p448 = scmp.eq.s32.totalorder %s31, 0
      %p449 = por %p447, %p448
      %p450 = scmp.ne.s32.totalorder %s439, %s442
      %p451 = scmp.eq.s32.totalorder %s36, 23
      %p452 = por %p450, %p451
      %p453 = scmp.ne.s32.totalorder %s442, %s443
      %p454 = scmp.eq.s32.totalorder %s36, 0
      %p455 = por %p453, %p454
      %p456 = scmp.ne.s32.totalorder %s442, %s443
      %p457 = scmp.eq.s32.totalorder %s37, 23
      %p458 = por %p456, %p457
      %p460 = scmp.ne.s32.totalorder %s443, %s459
      %p461 = scmp.eq.s32.totalorder %s37, 0
      %p462 = por %p460, %p461
      %s463 = ssub.s32 %s39, %s46
      %p464 = scmp.eq.s32.totalorder %s463, 0
      %s466 = sadd.s32 %s465, 1
      %s467 = scalar_select %p464, %s465, %s466
      %p470 = pneg %p464
      %p471 = scmp.eq.s32.totalorder %s31, 23
      %p472 = por %p470, %p471
      %p473 = scmp.ne.s32.totalorder %s465, %s468
      %p474 = scmp.eq.s32.totalorder %s31, 0
      %p475 = por %p473, %p474
      %p476 = scmp.ne.s32.totalorder %s465, %s468
      %p477 = scmp.eq.s32.totalorder %s36, 23
      %p478 = por %p476, %p477
      %p479 = scmp.ne.s32.totalorder %s468, %s469
      %p480 = scmp.eq.s32.totalorder %s36, 0
      %p481 = por %p479, %p480
      %p482 = scmp.ne.s32.totalorder %s468, %s469
      %p483 = scmp.eq.s32.totalorder %s37, 23
      %p484 = por %p482, %p483
      %p486 = scmp.ne.s32.totalorder %s469, %s485
      %p487 = scmp.eq.s32.totalorder %s37, 0
      %p488 = por %p486, %p487
      %s489 = ssub.s32 %s39, %s46
      %p490 = scmp.eq.s32.totalorder %s489, 0
      %s492 = sadd.s32 %s491, 1
      %s493 = scalar_select %p490, %s491, %s492
      %p496 = pneg %p490
      %p497 = scmp.eq.s32.totalorder %s31, 23
      %p498 = por %p496, %p497
      %p499 = scmp.ne.s32.totalorder %s491, %s494
      %p500 = scmp.eq.s32.totalorder %s31, 0
      %p501 = por %p499, %p500
      %p502 = scmp.ne.s32.totalorder %s491, %s494
      %p503 = scmp.eq.s32.totalorder %s36, 23
      %p504 = por %p502, %p503
      %p505 = scmp.ne.s32.totalorder %s494, %s495
      %p506 = scmp.eq.s32.totalorder %s36, 0
      %p507 = por %p505, %p506
      %p508 = scmp.ne.s32.totalorder %s494, %s495
      %p509 = scmp.eq.s32.totalorder %s37, 23
      %p510 = por %p508, %p509
      %p512 = scmp.ne.s32.totalorder %s495, %s511
      %p513 = scmp.eq.s32.totalorder %s37, 0
      %p514 = por %p512, %p513
      %s515 = ssub.s32 %s39, %s46
      %p516 = scmp.eq.s32.totalorder %s515, 0
      %s518 = sadd.s32 %s517, 1
      %s519 = scalar_select %p516, %s517, %s518
      %p522 = pneg %p516
      %p523 = scmp.eq.s32.totalorder %s31, 23
      %p524 = por %p522, %p523
      %p525 = scmp.ne.s32.totalorder %s517, %s520
      %p526 = scmp.eq.s32.totalorder %s31, 0
      %p527 = por %p525, %p526
      %p528 = scmp.ne.s32.totalorder %s517, %s520
      %p529 = scmp.eq.s32.totalorder %s36, 23
      %p530 = por %p528, %p529
      %p531 = scmp.ne.s32.totalorder %s520, %s521
      %p532 = scmp.eq.s32.totalorder %s36, 0
      %p533 = por %p531, %p532
      %p534 = scmp.ne.s32.totalorder %s520, %s521
      %p535 = scmp.eq.s32.totalorder %s37, 23
      %p536 = por %p534, %p535
      %p538 = scmp.ne.s32.totalorder %s521, %s537
      %p539 = scmp.eq.s32.totalorder %s37, 0
      %p540 = por %p538, %p539
      %s541 = ssub.s32 %s39, %s46
      %p542 = scmp.eq.s32.totalorder %s541, 0
      %s544 = sadd.s32 %s543, 1
      %s545 = scalar_select %p542, %s543, %s544
      %p548 = pneg %p542
      %p549 = scmp.eq.s32.totalorder %s31, 23
      %p550 = por %p548, %p549
      %p551 = scmp.ne.s32.totalorder %s543, %s546
      %p552 = scmp.eq.s32.totalorder %s31, 0
      %p553 = por %p551, %p552
      %p554 = scmp.ne.s32.totalorder %s543, %s546
      %p555 = scmp.eq.s32.totalorder %s36, 23
      %p556 = por %p554, %p555
      %p557 = scmp.ne.s32.totalorder %s546, %s547
      %p558 = scmp.eq.s32.totalorder %s36, 0
      %p559 = por %p557, %p558
      %p560 = scmp.ne.s32.totalorder %s546, %s547
      %p561 = scmp.eq.s32.totalorder %s37, 23
      %p562 = por %p560, %p561
      %p564 = scmp.ne.s32.totalorder %s547, %s563
      %p565 = scmp.eq.s32.totalorder %s37, 0
      %p566 = por %p564, %p565
      %s567 = ssub.s32 %s39, %s46
      %p568 = scmp.eq.s32.totalorder %s567, 0
      %s570 = sadd.s32 %s569, 1
      %s571 = scalar_select %p568, %s569, %s570
      %p574 = pneg %p568
      %p575 = scmp.eq.s32.totalorder %s31, 23
      %p576 = por %p574, %p575
      %p577 = scmp.ne.s32.totalorder %s569, %s572
      %p578 = scmp.eq.s32.totalorder %s31, 0
      %p579 = por %p577, %p578
      %p580 = scmp.ne.s32.totalorder %s569, %s572
      %p581 = scmp.eq.s32.totalorder %s36, 23
      %p582 = por %p580, %p581
      %p583 = scmp.ne.s32.totalorder %s572, %s573
      %p584 = scmp.eq.s32.totalorder %s36, 0
      %p585 = por %p583, %p584
      %p586 = scmp.ne.s32.totalorder %s572, %s573
      %p587 = scmp.eq.s32.totalorder %s37, 23
      %p588 = por %p586, %p587
      %p590 = scmp.ne.s32.totalorder %s573, %s589
      %p591 = scmp.eq.s32.totalorder %s37, 0
      %p592 = por %p590, %p591
      %s593 = ssub.s32 %s38, %s50
      %p594 = scmp.eq.s32.totalorder %s593, 0
      %s596 = sadd.s32 %s595, 1
      %s597 = scalar_select %p594, %s595, %s596
      %p600 = pneg %p594
      %p601 = scmp.eq.s32.totalorder %s31, 23
      %p602 = por %p600, %p601
      %p603 = scmp.ne.s32.totalorder %s595, %s598
      %p604 = scmp.eq.s32.totalorder %s31, 0
      %p605 = por %p603, %p604
      %p606 = scmp.ne.s32.totalorder %s595, %s598
      %p607 = scmp.eq.s32.totalorder %s36, 23
      %p608 = por %p606, %p607
      %p609 = scmp.ne.s32.totalorder %s598, %s599
      %p610 = scmp.eq.s32.totalorder %s36, 0
      %p611 = por %p609, %p610
      %p612 = scmp.ne.s32.totalorder %s598, %s599
      %p613 = scmp.eq.s32.totalorder %s37, 23
      %p614 = por %p612, %p613
      %p616 = scmp.ne.s32.totalorder %s599, %s615
      %p617 = scmp.eq.s32.totalorder %s37, 0
      %p618 = por %p616, %p617
      %p619 = scmp.le.s32.totalorder 1, %s31
      %p620 = scmp.lt.s32.totalorder %s31, 25
      %p621 = pnand %p619, %p620
      %p622 = pneg %p621
      // Predicated region
      $region9: #{vit_forward.1} parent=5 // pred_check
        _
      $region10: #{vit_forward.1} parent=5 // pred_check_branch
        %624 = sbr.rel (%p621) target = $region12
      $region11: #{vit_forward.1} parent=5 // pred_region
        %s625 = ssub.s32 %s31, 1
        // Predicated region
        $region13: #{vit_forward.1} parent=11 // pred_check
          %p626 = pneg %p90
        $region14: #{vit_forward.1} parent=11 // pred_check_branch
          %628 = sbr.rel (%p626) target = $region16
        $region15: #{vit_forward.1} parent=11 // pred_region
          _
        $region16: #{vit_forward.1} parent=11 // pred_fallthru
          _
        // Predicated region
        $region17: #{vit_forward.1} parent=11 // pred_check
          %p629 = pneg %p111
        $region18: #{vit_forward.1} parent=11 // pred_check_branch
          %631 = sbr.rel (%p629) target = $region20
        $region19: #{vit_forward.1} parent=11 // pred_region
          _
        $region20: #{vit_forward.1} parent=11 // pred_fallthru
          _
        // Predicated region
        $region21: #{vit_forward.1} parent=11 // pred_check
          %p632 = pneg %p132
        $region22: #{vit_forward.1} parent=11 // pred_check_branch
          %634 = sbr.rel (%p632) target = $region24
        $region23: #{vit_forward.1} parent=11 // pred_region
          _
        $region24: #{vit_forward.1} parent=11 // pred_fallthru
          _
        // Predicated region
        $region25: #{vit_forward.1} parent=11 // pred_check
          %p635 = pneg %p153
        $region26: #{vit_forward.1} parent=11 // pred_check_branch
          %637 = sbr.rel (%p635) target = $region28
        $region27: #{vit_forward.1} parent=11 // pred_region
          _
        $region28: #{vit_forward.1} parent=11 // pred_fallthru
          _
        // Predicated region
        $region29: #{vit_forward.1} parent=11 // pred_check
          %p638 = pneg %p174
        $region30: #{vit_forward.1} parent=11 // pred_check_branch
          %640 = sbr.rel (%p638) target = $region32
        $region31: #{vit_forward.1} parent=11 // pred_region
          _
        $region32: #{vit_forward.1} parent=11 // pred_fallthru
          _
        // Predicated region
        $region33: #{vit_forward.1} parent=11 // pred_check
          %p641 = pneg %p195
        $region34: #{vit_forward.1} parent=11 // pred_check_branch
          %643 = sbr.rel (%p641) target = $region36
        $region35: #{vit_forward.1} parent=11 // pred_region
          _
        $region36: #{vit_forward.1} parent=11 // pred_fallthru
          _
      $region12: #{vit_forward.1} parent=5 // pred_fallthru
        _
      %p644 = scmp.lt.s32.totalorder %s31, 24
      // Predicated region
      $region37: #{vit_forward.1} parent=5 // pred_check
        %p645 = pneg %p644
      $region38: #{vit_forward.1} parent=5 // pred_check_branch
        %647 = sbr.rel (%p645) target = $region40
      $region39: #{vit_forward.1} parent=5 // pred_region
        // Predicated region
        $region41: #{vit_forward.1} parent=39 // pred_check
          %p648 = pneg %p63
        $region42: #{vit_forward.1} parent=39 // pred_check_branch
          %650 = sbr.rel (%p648) target = $region44
        $region43: #{vit_forward.1} parent=39 // pred_region
          %p651 = scmp.lt.s32.totalorder %s38, 1
          %s652 = scalar_select %p651, %s38, 1
          %s653 = smul.addr %s652, 3
          %s654 = smul.addr %s653, 8
          %s655 = scalar_lea.vmem %s0, %s654
        $region44: #{vit_forward.1} parent=39 // pred_fallthru
          _
        // Predicated region
        $region45: #{vit_forward.1} parent=39 // pred_check
          %p656 = pneg %p215
        $region46: #{vit_forward.1} parent=39 // pred_check_branch
          %658 = sbr.rel (%p656) target = $region48
        $region47: #{vit_forward.1} parent=39 // pred_region
          %p659 = scmp.lt.s32.totalorder %s39, 11
          %s660 = scalar_select %p659, %s39, 11
          %s661 = scalar_lea.vmem %s7, %s660
        $region48: #{vit_forward.1} parent=39 // pred_fallthru
          _
        // Predicated region
        $region49: #{vit_forward.1} parent=39 // pred_check
          %p662 = pneg %p241
        $region50: #{vit_forward.1} parent=39 // pred_check_branch
          %664 = sbr.rel (%p662) target = $region52
        $region51: #{vit_forward.1} parent=39 // pred_region
          %p665 = scmp.lt.s32.totalorder %s39, 11
          %s666 = scalar_select %p665, %s39, 11
          %s667 = scalar_lea.vmem %s8, %s666
        $region52: #{vit_forward.1} parent=39 // pred_fallthru
          _
        // Predicated region
        $region53: #{vit_forward.1} parent=39 // pred_check
          %p668 = pneg %p267
        $region54: #{vit_forward.1} parent=39 // pred_check_branch
          %670 = sbr.rel (%p668) target = $region56
        $region55: #{vit_forward.1} parent=39 // pred_region
          %p671 = scmp.lt.s32.totalorder %s39, 11
          %s672 = scalar_select %p671, %s39, 11
          %s673 = smul.addr %s672, 4
          %s674 = smul.addr %s673, 8
          %s675 = scalar_lea.vmem %s9, %s674
        $region56: #{vit_forward.1} parent=39 // pred_fallthru
          _
        // Predicated region
        $region57: #{vit_forward.1} parent=39 // pred_check
          %p676 = pneg %p293
        $region58: #{vit_forward.1} parent=39 // pred_check_branch
          %678 = sbr.rel (%p676) target = $region60
        $region59: #{vit_forward.1} parent=39 // pred_region
          %p679 = scmp.lt.s32.totalorder %s39, 11
          %s680 = scalar_select %p679, %s39, 11
          %s681 = smul.addr %s680, 4
          %s682 = smul.addr %s681, 8
          %s683 = scalar_lea.vmem %s10, %s682
        $region60: #{vit_forward.1} parent=39 // pred_fallthru
          _
        // Predicated region
        $region61: #{vit_forward.1} parent=39 // pred_check
          %p684 = pneg %p319
        $region62: #{vit_forward.1} parent=39 // pred_check_branch
          %686 = sbr.rel (%p684) target = $region64
        $region63: #{vit_forward.1} parent=39 // pred_region
          %p687 = scmp.lt.s32.totalorder %s39, 11
          %s688 = scalar_select %p687, %s39, 11
          %s689 = smul.addr %s688, 4
          %s690 = smul.addr %s689, 8
          %s691 = scalar_lea.vmem %s11, %s690
        $region64: #{vit_forward.1} parent=39 // pred_fallthru
          _
        // Predicated region
        $region65: #{vit_forward.1} parent=39 // pred_check
          %p692 = pneg %p345
        $region66: #{vit_forward.1} parent=39 // pred_check_branch
          %694 = sbr.rel (%p692) target = $region68
        $region67: #{vit_forward.1} parent=39 // pred_region
          %p695 = scmp.lt.s32.totalorder %s39, 11
          %s696 = scalar_select %p695, %s39, 11
          %s697 = smul.addr %s696, 8
          %s698 = smul.addr %s697, 8
          %s699 = scalar_lea.vmem %s12, %s698
        $region68: #{vit_forward.1} parent=39 // pred_fallthru
          _
        // Predicated region
        $region69: #{vit_forward.1} parent=39 // pred_check
          %p700 = pneg %p371
        $region70: #{vit_forward.1} parent=39 // pred_check_branch
          %702 = sbr.rel (%p700) target = $region72
        $region71: #{vit_forward.1} parent=39 // pred_region
          %p703 = scmp.lt.s32.totalorder %s39, 11
          %s704 = scalar_select %p703, %s39, 11
          %s705 = smul.addr %s704, 8
          %s706 = smul.addr %s705, 8
          %s707 = scalar_lea.vmem %s13, %s706
        $region72: #{vit_forward.1} parent=39 // pred_fallthru
          _
        // Predicated region
        $region73: #{vit_forward.1} parent=39 // pred_check
          %p708 = pneg %p397
        $region74: #{vit_forward.1} parent=39 // pred_check_branch
          %710 = sbr.rel (%p708) target = $region76
        $region75: #{vit_forward.1} parent=39 // pred_region
          %p711 = scmp.lt.s32.totalorder %s39, 11
          %s712 = scalar_select %p711, %s39, 11
          %s713 = smul.addr %s712, 4
          %s714 = smul.addr %s713, 8
          %s715 = scalar_lea.vmem %s14, %s714
        $region76: #{vit_forward.1} parent=39 // pred_fallthru
          _
        // Predicated region
        $region77: #{vit_forward.1} parent=39 // pred_check
          %p716 = pneg %p423
        $region78: #{vit_forward.1} parent=39 // pred_check_branch
          %718 = sbr.rel (%p716) target = $region80
        $region79: #{vit_forward.1} parent=39 // pred_region
          %p719 = scmp.lt.s32.totalorder %s39, 11
          %s720 = scalar_select %p719, %s39, 11
          %s721 = scalar_lea.vmem %s15, %s720
        $region80: #{vit_forward.1} parent=39 // pred_fallthru
          _
        // Predicated region
        $region81: #{vit_forward.1} parent=39 // pred_check
          %p722 = pneg %p449
        $region82: #{vit_forward.1} parent=39 // pred_check_branch
          %724 = sbr.rel (%p722) target = $region84
        $region83: #{vit_forward.1} parent=39 // pred_region
          %p725 = scmp.lt.s32.totalorder %s39, 11
          %s726 = scalar_select %p725, %s39, 11
          %s727 = scalar_lea.vmem %s16, %s726
        $region84: #{vit_forward.1} parent=39 // pred_fallthru
          _
        // Predicated region
        $region85: #{vit_forward.1} parent=39 // pred_check
          %p728 = pneg %p475
        $region86: #{vit_forward.1} parent=39 // pred_check_branch
          %730 = sbr.rel (%p728) target = $region88
        $region87: #{vit_forward.1} parent=39 // pred_region
          %p731 = scmp.lt.s32.totalorder %s39, 11
          %s732 = scalar_select %p731, %s39, 11
          %s733 = scalar_lea.vmem %s17, %s732
        $region88: #{vit_forward.1} parent=39 // pred_fallthru
          _
        // Predicated region
        $region89: #{vit_forward.1} parent=39 // pred_check
          %p734 = pneg %p501
        $region90: #{vit_forward.1} parent=39 // pred_check_branch
          %736 = sbr.rel (%p734) target = $region92
        $region91: #{vit_forward.1} parent=39 // pred_region
          %p737 = scmp.lt.s32.totalorder %s39, 11
          %s738 = scalar_select %p737, %s39, 11
          %s739 = smul.addr %s738, 4
          %s740 = smul.addr %s739, 8
          %s741 = scalar_lea.vmem %s18, %s740
        $region92: #{vit_forward.1} parent=39 // pred_fallthru
          _
        // Predicated region
        $region93: #{vit_forward.1} parent=39 // pred_check
          %p742 = pneg %p527
        $region94: #{vit_forward.1} parent=39 // pred_check_branch
          %744 = sbr.rel (%p742) target = $region96
        $region95: #{vit_forward.1} parent=39 // pred_region
          %p745 = scmp.lt.s32.totalorder %s39, 11
          %s746 = scalar_select %p745, %s39, 11
          %s747 = scalar_lea.vmem %s19, %s746
        $region96: #{vit_forward.1} parent=39 // pred_fallthru
          _
        // Predicated region
        $region97: #{vit_forward.1} parent=39 // pred_check
          %p748 = pneg %p553
        $region98: #{vit_forward.1} parent=39 // pred_check_branch
          %750 = sbr.rel (%p748) target = $region100
        $region99: #{vit_forward.1} parent=39 // pred_region
          %p751 = scmp.lt.s32.totalorder %s39, 11
          %s752 = scalar_select %p751, %s39, 11
          %s753 = smul.addr %s752, 16
          %s754 = smul.addr %s753, 8
          %s755 = scalar_lea.vmem %s20, %s754
        $region100: #{vit_forward.1} parent=39 // pred_fallthru
          _
        // Predicated region
        $region101: #{vit_forward.1} parent=39 // pred_check
          %p756 = pneg %p579
        $region102: #{vit_forward.1} parent=39 // pred_check_branch
          %758 = sbr.rel (%p756) target = $region104
        $region103: #{vit_forward.1} parent=39 // pred_region
          %p759 = scmp.lt.s32.totalorder %s39, 11
          %s760 = scalar_select %p759, %s39, 11
          %s761 = scalar_lea.vmem %s21, %s760
        $region104: #{vit_forward.1} parent=39 // pred_fallthru
          _
      $region40: #{vit_forward.1} parent=5 // pred_fallthru
        _
      %p762 = scmp.le.s32.totalorder 1, %s31
      %p763 = scmp.lt.s32.totalorder %s31, 25
      %p764 = pnand %p762, %p763
      %p765 = pneg %p764
      // Predicated region
      $region105: #{vit_forward.1} parent=5 // pred_check
        _
      $region106: #{vit_forward.1} parent=5 // pred_check_branch
        %767 = sbr.rel (%p764) target = $region108
      $region107: #{vit_forward.1} parent=5 // pred_region
        %s768 = ssub.s32 %s31, 1
        %p769 = scmp.lt.s32.totalorder %s40, 1
        %s770 = scalar_select %p769, %s40, 1
        %s771 = smul.addr %s770, 3
        %s772 = smul.addr %s771, 8
        %s773 = scalar_lea.vmem %s0, %s772
        %p774 = pneg %p69
        %p775 = pneg %p66
        %p776 = pneg %p90
        %p777 = pneg %p87
        %p778 = pneg %p111
        %p779 = pneg %p108
        %p780 = pneg %p132
        %p781 = pneg %p129
        %p782 = pneg %p153
        %p783 = pneg %p150
        %p784 = pneg %p174
        %p785 = pneg %p171
        %p786 = pneg %p195
        %p787 = pneg %p192
        %p788 = scmp.lt.s32.totalorder %s41, 11
        %s789 = scalar_select %p788, %s41, 11
        %s790 = scalar_lea.vmem %s7, %s789
        %p791 = pneg %p221
        %p792 = pneg %p218
        %p793 = scmp.lt.s32.totalorder %s41, 11
        %s794 = scalar_select %p793, %s41, 11
        %s795 = scalar_lea.vmem %s8, %s794
        %p796 = pneg %p247
        %p797 = pneg %p244
        %p798 = scmp.lt.s32.totalorder %s41, 11
        %s799 = scalar_select %p798, %s41, 11
        %s800 = smul.addr %s799, 4
        %s801 = smul.addr %s800, 8
        %s802 = scalar_lea.vmem %s9, %s801
        %p803 = pneg %p273
        %p804 = pneg %p270
        %p805 = scmp.lt.s32.totalorder %s41, 11
        %s806 = scalar_select %p805, %s41, 11
        %s807 = smul.addr %s806, 4
        %s808 = smul.addr %s807, 8
        %s809 = scalar_lea.vmem %s10, %s808
        %p810 = pneg %p299
        %p811 = pneg %p296
        %p812 = scmp.lt.s32.totalorder %s41, 11
        %s813 = scalar_select %p812, %s41, 11
        %s814 = smul.addr %s813, 4
        %s815 = smul.addr %s814, 8
        %s816 = scalar_lea.vmem %s11, %s815
        %p817 = pneg %p325
        %p818 = pneg %p322
        %p819 = scmp.lt.s32.totalorder %s41, 11
        %s820 = scalar_select %p819, %s41, 11
        %s821 = smul.addr %s820, 8
        %s822 = smul.addr %s821, 8
        %s823 = scalar_lea.vmem %s12, %s822
        %p824 = pneg %p351
        %p825 = pneg %p348
        %p826 = scmp.lt.s32.totalorder %s41, 11
        %s827 = scalar_select %p826, %s41, 11
        %s828 = smul.addr %s827, 8
        %s829 = smul.addr %s828, 8
        %s830 = scalar_lea.vmem %s13, %s829
        %p831 = pneg %p377
        %p832 = pneg %p374
        %p833 = scmp.lt.s32.totalorder %s41, 11
        %s834 = scalar_select %p833, %s41, 11
        %s835 = smul.addr %s834, 4
        %s836 = smul.addr %s835, 8
        %s837 = scalar_lea.vmem %s14, %s836
        %p838 = pneg %p403
        %p839 = pneg %p400
        %p840 = scmp.lt.s32.totalorder %s41, 11
        %s841 = scalar_select %p840, %s41, 11
        %s842 = scalar_lea.vmem %s15, %s841
        %p843 = pneg %p429
        %p844 = pneg %p426
        %p845 = scmp.lt.s32.totalorder %s41, 11
        %s846 = scalar_select %p845, %s41, 11
        %s847 = scalar_lea.vmem %s16, %s846
        %p848 = pneg %p455
        %p849 = pneg %p452
        %p850 = scmp.lt.s32.totalorder %s41, 11
        %s851 = scalar_select %p850, %s41, 11
        %s852 = scalar_lea.vmem %s17, %s851
        %p853 = pneg %p481
        %p854 = pneg %p478
        %p855 = scmp.lt.s32.totalorder %s41, 11
        %s856 = scalar_select %p855, %s41, 11
        %s857 = smul.addr %s856, 4
        %s858 = smul.addr %s857, 8
        %s859 = scalar_lea.vmem %s18, %s858
        %p860 = pneg %p507
        %p861 = pneg %p504
        %p862 = scmp.lt.s32.totalorder %s41, 11
        %s863 = scalar_select %p862, %s41, 11
        %s864 = scalar_lea.vmem %s19, %s863
        %p865 = pneg %p533
        %p866 = pneg %p530
        %p867 = scmp.lt.s32.totalorder %s41, 11
        %s868 = scalar_select %p867, %s41, 11
        %s869 = smul.addr %s868, 16
        %s870 = smul.addr %s869, 8
        %s871 = scalar_lea.vmem %s20, %s870
        %p872 = pneg %p559
        %p873 = pneg %p556
        %p874 = scmp.lt.s32.totalorder %s41, 11
        %s875 = scalar_select %p874, %s41, 11
        %s876 = scalar_lea.vmem %s21, %s875
        %p877 = pneg %p585
        %p878 = pneg %p582
        %p879 = pneg %p611
        %p880 = pneg %p608
        %s881 = sand.u32 %s598, 1
        %s882 = scalar_lea.sflag [#allocation4], %s881
        %s883 = sand.u32 %s598, 1
        %s884 = scalar_lea.vmem [#allocation3], %s883
        %p885 = scmp.lt.s32.totalorder %s40, 1
        %s886 = scalar_select %p885, %s40, 1
        %s887 = smul.addr %s886, 3
        %s888 = smul.addr %s887, 8
        %s889 = scalar_lea.vmem %s0, %s888
        %p890 = scmp.lt.s32.totalorder %s41, 11
        %s891 = scalar_select %p890, %s41, 11
        %s892 = scalar_lea.vmem %s7, %s891
        %p893 = scmp.lt.s32.totalorder %s41, 11
        %s894 = scalar_select %p893, %s41, 11
        %s895 = scalar_lea.vmem %s8, %s894
        %p896 = scmp.lt.s32.totalorder %s41, 11
        %s897 = scalar_select %p896, %s41, 11
        %s898 = smul.addr %s897, 4
        %s899 = smul.addr %s898, 8
        %s900 = scalar_lea.vmem %s9, %s899
        %p901 = scmp.lt.s32.totalorder %s41, 11
        %s902 = scalar_select %p901, %s41, 11
        %s903 = smul.addr %s902, 4
        %s904 = smul.addr %s903, 8
        %s905 = scalar_lea.vmem %s10, %s904
        %p906 = scmp.lt.s32.totalorder %s41, 11
        %s907 = scalar_select %p906, %s41, 11
        %s908 = smul.addr %s907, 4
        %s909 = smul.addr %s908, 8
        %s910 = scalar_lea.vmem %s11, %s909
        %p911 = scmp.lt.s32.totalorder %s41, 11
        %s912 = scalar_select %p911, %s41, 11
        %s913 = smul.addr %s912, 8
        %s914 = smul.addr %s913, 8
        %s915 = scalar_lea.vmem %s12, %s914
        %p916 = scmp.lt.s32.totalorder %s41, 11
        %s917 = scalar_select %p916, %s41, 11
        %s918 = smul.addr %s917, 8
        %s919 = smul.addr %s918, 8
        %s920 = scalar_lea.vmem %s13, %s919
        %p921 = scmp.lt.s32.totalorder %s41, 11
        %s922 = scalar_select %p921, %s41, 11
        %s923 = smul.addr %s922, 4
        %s924 = smul.addr %s923, 8
        %s925 = scalar_lea.vmem %s14, %s924
        %p926 = scmp.lt.s32.totalorder %s41, 11
        %s927 = scalar_select %p926, %s41, 11
        %s928 = scalar_lea.vmem %s15, %s927
        %p929 = scmp.lt.s32.totalorder %s41, 11
        %s930 = scalar_select %p929, %s41, 11
        %s931 = scalar_lea.vmem %s16, %s930
        %p932 = scmp.lt.s32.totalorder %s41, 11
        %s933 = scalar_select %p932, %s41, 11
        %s934 = scalar_lea.vmem %s17, %s933
        %p935 = scmp.lt.s32.totalorder %s41, 11
        %s936 = scalar_select %p935, %s41, 11
        %s937 = smul.addr %s936, 4
        %s938 = smul.addr %s937, 8
        %s939 = scalar_lea.vmem %s18, %s938
        %p940 = scmp.lt.s32.totalorder %s41, 11
        %s941 = scalar_select %p940, %s41, 11
        %s942 = scalar_lea.vmem %s19, %s941
        %p943 = scmp.lt.s32.totalorder %s41, 11
        %s944 = scalar_select %p943, %s41, 11
        %s945 = smul.addr %s944, 16
        %s946 = smul.addr %s945, 8
        %s947 = scalar_lea.vmem %s20, %s946
        %p948 = scmp.lt.s32.totalorder %s41, 11
        %s949 = scalar_select %p948, %s41, 11
        %s950 = scalar_lea.vmem %s21, %s949
        %p951 = scmp.eq.s32.totalorder %s41, 0
        // Predicated region
        $region109: #{vit_forward.1} parent=107 // pred_check
          %p952 = pneg %p951
        $region110: #{vit_forward.1} parent=107 // pred_check_branch
          %954 = sbr.rel (%p952) target = $region112
        $region111: #{vit_forward.1} parent=107 // pred_region
          %v955 = vld [vmem:[%s889] sm:$0xff]
          %v956 = vld [vmem:[%s889 + $0x8] sm:$0xff]
          %v957 = vld [vmem:[%s889 + $0x10] sm:$0x1]
          %v958 = vld [vmem:[%s1] sm:$0xff]
          %v959 = vld [vmem:[%s1 + $0x8] sm:$0xff]
          %v960 = vld [vmem:[%s1 + $0x10] sm:$0xff]
          %v961 = vld [vmem:[%s1 + $0x18] sm:$0xff]
          %v962 = vld [vmem:[%s1 + $0x20] sm:$0xff]
          %v963 = vld [vmem:[%s1 + $0x28] sm:$0xff]
          %v964 = vld [vmem:[%s1 + $0x30] sm:$0xff]
          %v965 = vld [vmem:[%s1 + $0x38] sm:$0xff]
          %v966 = vld [vmem:[%s2] sm:$0xff]
          %v967 = vld [vmem:[%s2 + $0x8] sm:$0xff]
          %v968 = vld [vmem:[%s2 + $0x10] sm:$0x1]
          %vm969 = vcmask 523264
          %v971 = vsel %vm969, %v955, 0
          %v974 = vsel %vm969, %v956, 0
          %v977 = vsel %vm969, %v957, 0
          %979 = vmatprep.subr.mxu0 0.0
          %980 = vmatpush1.msra.mxu0 %v958
          %981 = vmatprep.subr.mxu0 0.0
          %982 = vmatpush1.msra.mxu0 %v959
          %983 = vmatprep.subr.mxu0 0.0
          %984 = vmatpush1.msra.mxu0 %v960
          %985 = vmatprep.subr.mxu0 0.0
          %986 = vmatpush1.msra.mxu0 %v961
          %987 = vmatprep.subr.mxu0 0.0
          %988 = vmatpush1.msra.mxu0 %v962
          %989 = vmatprep.subr.mxu0 0.0
          %990 = vmatpush1.msra.mxu0 %v963
          %991 = vmatprep.subr.mxu0 0.0
          %992 = vmatpush1.msra.mxu0 %v964
          %993 = vmatprep.subr.mxu0 0.0
          %994 = vmatpush1.msra.mxu0 %v965
          %995 = vmatprep.subr.mxu0 0.0
          %996 = vmatpush1.msra.mxu0 0.0
          %997 = vmatprep.subr.mxu0 0.0
          %998 = vmatpush1.msra.mxu0 0.0
          %999 = vmatprep.subr.mxu0 0.0
          %1000 = vmatpush1.msra.mxu0 0.0
          %1001 = vmatprep.subr.mxu0 0.0
          %1002 = vmatpush1.msra.mxu0 0.0
          %1003 = vmatprep.subr.mxu0 0.0
          %1004 = vmatpush1.msra.mxu0 0.0
          %1005 = vmatprep.subr.mxu0 0.0
          %1006 = vmatpush1.msra.mxu0 0.0
          %1007 = vmatprep.subr.mxu0 0.0
          %1008 = vmatpush1.msra.mxu0 0.0
          %1009 = vmatprep.subr.mxu0 0.0
          %1010 = vmatpush1.msra.mxu0 0.0
          %1011 = vmatprep.subr.mxu0 0.0
          %1012 = vmatpush1.msra.mxu0 0.0
          %1013 = vmatprep.subr.mxu0 0.0
          %1014 = vmatpush1.msra.mxu0 0.0
          %1015 = vmatprep.subr.mxu0 0.0
          %1016 = vmatpush1.msra.mxu0 0.0
          %1017 = vmatprep.subr.mxu0 0.0
          %1018 = vmatpush1.msra.mxu0 0.0
          %1019 = vmatprep.subr.mxu0 0.0
          %1020 = vmatpush1.msra.mxu0 0.0
          %1021 = vmatprep.subr.mxu0 0.0
          %1022 = vmatpush1.msra.mxu0 0.0
          %1023 = vmatprep.subr.mxu0 0.0
          %1024 = vmatpush1.msra.mxu0 0.0
          %1025 = vmatprep.subr.mxu0 0.0
          %1026 = vmatpush1.msra.mxu0 0.0
          %1027 = vmatprep.subr.mxu0 0.0
          %1028 = vmatpush1.msra.mxu0 0.0
          %1029 = vmatprep.subr.mxu0 0.0
          %1030 = vmatpush1.msra.mxu0 0.0
          %1031 = vmatprep.subr.mxu0 0.0
          %1032 = vmatpush1.msra.mxu0 0.0
          %1033 = vmatprep.subr.mxu0 0.0
          %1034 = vmatpush1.msra.mxu0 0.0
          %1035 = vmatprep.subr.mxu0 0.0
          %1036 = vmatpush1.msra.mxu0 0.0
          %1037 = vmatprep.subr.mxu0 0.0
          %1038 = vmatpush1.msra.mxu0 0.0
          %1039 = vmatprep.subr.mxu0 0.0
          %1040 = vmatpush1.msra.mxu0 0.0
          %1041 = vmatprep.subr.mxu0 0.0
          %1042 = vmatpush1.msra.mxu0 0.0
          %1043 = vmatprep.mubr.f32.mxu0 0.0
          %1044 = vmatmul.mubr.f32.gmra.mrb[0].mxu0 %v971
          %v1045 = vpop.f32.mrb[0].mxu0
          %v1046 = vadd.f32 %v966, %v1045
          %v1047 = vpop.f32.mrb[0].mxu0
          %1048 = vmatprep.mubr.f32.mxu0 0.0
          %1049 = vmatmul.mubr.f32.gmra.mrb[0].mxu0 %v974
          %v1050 = vpop.f32.mrb[0].mxu0
          %v1051 = vadd.f32 %v967, %v1050
          %v1052 = vpop.f32.mrb[0].mxu0
          %1053 = vmatprep.mubr.f32.mxu0 0.0
          %1054 = vmatmul.mubr.f32.gmra.mrb[0].mxu0 %v977
          %v1055 = vpop.f32.mrb[0].mxu0
          %v1056 = vadd.f32 %v968, %v1055
          %v1057 = vpop.f32.mrb[0].mxu0
          %1058 = vdwg.mxu0
          %vm1059 = vcmask 261120
          %1060 = vst.msk [vmem:[#allocation2] sm:$0xff] %vm1059, %v1046
          %1061 = vst.msk [vmem:[#allocation2 + $0x8] sm:$0xff] %vm1059, %v1051
          %vm1062 = vcmask 253952
          %1063 = vst.msk [vmem:[#allocation2 + $0x10] sm:$0x1] %vm1062, %v1056
        $region112: #{vit_forward.1} parent=107 // pred_fallthru
          _
        %v1064 = vld [vmem:[%s3] sm:$0xff]
        %v1065 = vld [vmem:[%s3 + $0x8] sm:$0xff]
        %v1066 = vld [vmem:[%s3 + $0x10] sm:$0xff]
        %v1067 = vld [vmem:[%s3 + $0x18] sm:$0xff]
        %v1068 = vld [vmem:[%s3 + $0x20] sm:$0xff]
        %v1069 = vld [vmem:[%s3 + $0x28] sm:$0xff]
        %v1070 = vld [vmem:[%s3 + $0x30] sm:$0xff]
        %v1071 = vld [vmem:[%s3 + $0x38] sm:$0xff]
        %v1072 = vld [vmem:[%s3 + $0x40] sm:$0xff]
        %v1073 = vld [vmem:[%s3 + $0x48] sm:$0xff]
        %v1074 = vld [vmem:[%s3 + $0x50] sm:$0xff]
        %v1075 = vld [vmem:[%s3 + $0x58] sm:$0xff]
        %v1076 = vld [vmem:[%s3 + $0x60] sm:$0xff]
        %v1077 = vld [vmem:[%s3 + $0x68] sm:$0xff]
        %v1078 = vld [vmem:[%s3 + $0x70] sm:$0xff]
        %v1079 = vld [vmem:[%s3 + $0x78] sm:$0xff]
        %v1080 = vld [vmem:[%s4] sm:$0xff]
        %v1081 = vld [vmem:[%s4 + $0x8] sm:$0xff]
        %v1082 = vld [vmem:[%s4 + $0x10] sm:$0xff]
        %v1083 = vld [vmem:[%s4 + $0x18] sm:$0xff]
        %v1084 = vld [vmem:[%s4 + $0x20] sm:$0xff]
        %v1085 = vld [vmem:[%s4 + $0x28] sm:$0xff]
        %v1086 = vld [vmem:[%s4 + $0x30] sm:$0xff]
        %v1087 = vld [vmem:[%s4 + $0x38] sm:$0xff]
        %v1088 = vld [vmem:[%s4 + $0x40] sm:$0xff]
        %v1089 = vld [vmem:[%s4 + $0x48] sm:$0xff]
        %v1090 = vld [vmem:[%s4 + $0x50] sm:$0xff]
        %v1091 = vld [vmem:[%s4 + $0x58] sm:$0xff]
        %v1092 = vld [vmem:[%s4 + $0x60] sm:$0xff]
        %v1093 = vld [vmem:[%s4 + $0x68] sm:$0xff]
        %v1094 = vld [vmem:[%s4 + $0x70] sm:$0xff]
        %v1095 = vld [vmem:[%s4 + $0x78] sm:$0xff]
        %v1096 = vld [vmem:[%s4 + $0x80] sm:$0xff]
        %v1097 = vld [vmem:[%s4 + $0x88] sm:$0xff]
        %v1098 = vld [vmem:[%s4 + $0x90] sm:$0xff]
        %v1099 = vld [vmem:[%s4 + $0x98] sm:$0xff]
        %v1100 = vld [vmem:[%s4 + $0xa0] sm:$0xff]
        %v1101 = vld [vmem:[%s4 + $0xa8] sm:$0xff]
        %v1102 = vld [vmem:[%s4 + $0xb0] sm:$0xff]
        %v1103 = vld [vmem:[%s4 + $0xb8] sm:$0xff]
        %v1104 = vld [vmem:[%s4 + $0xc0] sm:$0xff]
        %v1105 = vld [vmem:[%s4 + $0xc8] sm:$0xff]
        %v1106 = vld [vmem:[%s4 + $0xd0] sm:$0xff]
        %v1107 = vld [vmem:[%s4 + $0xd8] sm:$0xff]
        %v1108 = vld [vmem:[%s4 + $0xe0] sm:$0xff]
        %v1109 = vld [vmem:[%s4 + $0xe8] sm:$0xff]
        %v1110 = vld [vmem:[%s4 + $0xf0] sm:$0xff]
        %v1111 = vld [vmem:[%s4 + $0xf8] sm:$0xff]
        %v1112 = vld [vmem:[%s4 + $0x100] sm:$0xff]
        %v1113 = vld [vmem:[%s4 + $0x108] sm:$0xff]
        %v1114 = vld [vmem:[%s4 + $0x110] sm:$0xff]
        %v1115 = vld [vmem:[%s4 + $0x118] sm:$0xff]
        %v1116 = vld [vmem:[%s4 + $0x120] sm:$0xff]
        %v1117 = vld [vmem:[%s4 + $0x128] sm:$0xff]
        %v1118 = vld [vmem:[%s4 + $0x130] sm:$0xff]
        %v1119 = vld [vmem:[%s4 + $0x138] sm:$0xff]
        %v1120 = vld [vmem:[%s4 + $0x140] sm:$0xff]
        %v1121 = vld [vmem:[%s4 + $0x148] sm:$0xff]
        %v1122 = vld [vmem:[%s4 + $0x150] sm:$0xff]
        %v1123 = vld [vmem:[%s4 + $0x158] sm:$0xff]
        %v1124 = vld [vmem:[%s4 + $0x160] sm:$0xff]
        %v1125 = vld [vmem:[%s4 + $0x168] sm:$0xff]
        %v1126 = vld [vmem:[%s4 + $0x170] sm:$0xff]
        %v1127 = vld [vmem:[%s4 + $0x178] sm:$0xff]
        %v1128 = vld [vmem:[%s4 + $0x180] sm:$0xff]
        %v1129 = vld [vmem:[%s4 + $0x188] sm:$0xff]
        %v1130 = vld [vmem:[%s4 + $0x190] sm:$0xff]
        %v1131 = vld [vmem:[%s4 + $0x198] sm:$0xff]
        %v1132 = vld [vmem:[%s4 + $0x1a0] sm:$0xff]
        %v1133 = vld [vmem:[%s4 + $0x1a8] sm:$0xff]
        %v1134 = vld [vmem:[%s4 + $0x1b0] sm:$0xff]
        %v1135 = vld [vmem:[%s4 + $0x1b8] sm:$0xff]
        %v1136 = vld [vmem:[%s4 + $0x1c0] sm:$0xff]
        %v1137 = vld [vmem:[%s4 + $0x1c8] sm:$0xff]
        %v1138 = vld [vmem:[%s4 + $0x1d0] sm:$0xff]
        %v1139 = vld [vmem:[%s4 + $0x1d8] sm:$0xff]
        %v1140 = vld [vmem:[%s4 + $0x1e0] sm:$0xff]
        %v1141 = vld [vmem:[%s4 + $0x1e8] sm:$0xff]
        %v1142 = vld [vmem:[%s4 + $0x1f0] sm:$0xff]
        %v1143 = vld [vmem:[%s4 + $0x1f8] sm:$0xff]
        %v1144 = vld [vmem:[%s5] sm:$0xff]
        %v1145 = vld [vmem:[%s5 + $0x8] sm:$0xff]
        %v1146 = vld [vmem:[%s5 + $0x10] sm:$0xff]
        %v1147 = vld [vmem:[%s5 + $0x18] sm:$0xff]
        %v1148 = vld [vmem:[%s5 + $0x20] sm:$0xff]
        %v1149 = vld [vmem:[%s5 + $0x28] sm:$0xff]
        %v1150 = vld [vmem:[%s5 + $0x30] sm:$0xff]
        %v1151 = vld [vmem:[%s5 + $0x38] sm:$0xff]
        %v1152 = vld [vmem:[%s5 + $0x40] sm:$0xff]
        %v1153 = vld [vmem:[%s5 + $0x48] sm:$0xff]
        %v1154 = vld [vmem:[%s5 + $0x50] sm:$0xff]
        %v1155 = vld [vmem:[%s5 + $0x58] sm:$0xff]
        %v1156 = vld [vmem:[%s5 + $0x60] sm:$0xff]
        %v1157 = vld [vmem:[%s5 + $0x68] sm:$0xff]
        %v1158 = vld [vmem:[%s5 + $0x70] sm:$0xff]
        %v1159 = vld [vmem:[%s5 + $0x78] sm:$0xff]
        %v1160 = vld [vmem:[%s5 + $0x80] sm:$0xff]
        %v1161 = vld [vmem:[%s5 + $0x88] sm:$0xff]
        %v1162 = vld [vmem:[%s5 + $0x90] sm:$0xff]
        %v1163 = vld [vmem:[%s5 + $0x98] sm:$0xff]
        %v1164 = vld [vmem:[%s5 + $0xa0] sm:$0xff]
        %v1165 = vld [vmem:[%s5 + $0xa8] sm:$0xff]
        %v1166 = vld [vmem:[%s5 + $0xb0] sm:$0xff]
        %v1167 = vld [vmem:[%s5 + $0xb8] sm:$0xff]
        %v1168 = vld [vmem:[%s5 + $0xc0] sm:$0xff]
        %v1169 = vld [vmem:[%s5 + $0xc8] sm:$0xff]
        %v1170 = vld [vmem:[%s5 + $0xd0] sm:$0xff]
        %v1171 = vld [vmem:[%s5 + $0xd8] sm:$0xff]
        %v1172 = vld [vmem:[%s5 + $0xe0] sm:$0xff]
        %v1173 = vld [vmem:[%s5 + $0xe8] sm:$0xff]
        %v1174 = vld [vmem:[%s5 + $0xf0] sm:$0xff]
        %v1175 = vld [vmem:[%s5 + $0xf8] sm:$0xff]
        %v1176 = vld [vmem:[%s5 + $0x100] sm:$0xff]
        %v1177 = vld [vmem:[%s5 + $0x108] sm:$0xff]
        %v1178 = vld [vmem:[%s5 + $0x110] sm:$0xff]
        %v1179 = vld [vmem:[%s5 + $0x118] sm:$0xff]
        %v1180 = vld [vmem:[%s5 + $0x120] sm:$0xff]
        %v1181 = vld [vmem:[%s5 + $0x128] sm:$0xff]
        %v1182 = vld [vmem:[%s5 + $0x130] sm:$0xff]
        %v1183 = vld [vmem:[%s5 + $0x138] sm:$0xff]
        %v1184 = vld [vmem:[%s5 + $0x140] sm:$0xff]
        %v1185 = vld [vmem:[%s5 + $0x148] sm:$0xff]
        %v1186 = vld [vmem:[%s5 + $0x150] sm:$0xff]
        %v1187 = vld [vmem:[%s5 + $0x158] sm:$0xff]
        %v1188 = vld [vmem:[%s5 + $0x160] sm:$0xff]
        %v1189 = vld [vmem:[%s5 + $0x168] sm:$0xff]
        %v1190 = vld [vmem:[%s5 + $0x170] sm:$0xff]
        %v1191 = vld [vmem:[%s5 + $0x178] sm:$0xff]
        %v1192 = vld [vmem:[%s5 + $0x180] sm:$0xff]
        %v1193 = vld [vmem:[%s5 + $0x188] sm:$0xff]
        %v1194 = vld [vmem:[%s5 + $0x190] sm:$0xff]
        %v1195 = vld [vmem:[%s5 + $0x198] sm:$0xff]
        %v1196 = vld [vmem:[%s5 + $0x1a0] sm:$0xff]
        %v1197 = vld [vmem:[%s5 + $0x1a8] sm:$0xff]
        %v1198 = vld [vmem:[%s5 + $0x1b0] sm:$0xff]
        %v1199 = vld [vmem:[%s5 + $0x1b8] sm:$0xff]
        %v1200 = vld [vmem:[%s5 + $0x1c0] sm:$0xff]
        %v1201 = vld [vmem:[%s5 + $0x1c8] sm:$0xff]
        %v1202 = vld [vmem:[%s5 + $0x1d0] sm:$0xff]
        %v1203 = vld [vmem:[%s5 + $0x1d8] sm:$0xff]
        %v1204 = vld [vmem:[%s5 + $0x1e0] sm:$0xff]
        %v1205 = vld [vmem:[%s5 + $0x1e8] sm:$0xff]
        %v1206 = vld [vmem:[%s5 + $0x1f0] sm:$0xff]
        %v1207 = vld [vmem:[%s5 + $0x1f8] sm:$0xff]
        %v1208 = vld [vmem:[%s6] sm:$0xff]
        %v1209 = vld [vmem:[%s6 + $0x8] sm:$0xff]
        %v1210 = vld [vmem:[%s6 + $0x10] sm:$0xff]
        %v1211 = vld [vmem:[%s6 + $0x18] sm:$0xff]
        %v1212 = vld [vmem:[%s915] sm:$0xff]
        %v1213 = vld [vmem:[%s915 + $0x8] sm:$0xff]
        %v1214 = vld [vmem:[%s915 + $0x10] sm:$0xff]
        %v1215 = vld [vmem:[%s915 + $0x18] sm:$0xff]
        %v1216 = vld [vmem:[%s915 + $0x20] sm:$0xff]
        %v1217 = vld [vmem:[%s915 + $0x28] sm:$0xff]
        %v1218 = vld [vmem:[%s915 + $0x30] sm:$0xff]
        %v1219 = vld [vmem:[%s915 + $0x38] sm:$0xff]
        %v1220 = vld [vmem:[%s920] sm:$0xff]
        %v1221 = vld [vmem:[%s920 + $0x8] sm:$0xff]
        %v1222 = vld [vmem:[%s920 + $0x10] sm:$0xff]
        %v1223 = vld [vmem:[%s920 + $0x18] sm:$0xff]
        %v1224 = vld [vmem:[%s920 + $0x20] sm:$0xff]
        %v1225 = vld [vmem:[%s920 + $0x28] sm:$0xff]
        %v1226 = vld [vmem:[%s920 + $0x30] sm:$0xff]
        %v1227 = vld [vmem:[%s920 + $0x38] sm:$0xff]
        %v1228 = vld [vmem:[%s900] sm:$0xff]
        %v1229 = vld [vmem:[%s900 + $0x8] sm:$0xff]
        %v1230 = vld [vmem:[%s900 + $0x10] sm:$0xff]
        %v1231 = vld [vmem:[%s900 + $0x18] sm:$0xff]
        %v1232 = vld [vmem:[%s905] sm:$0xff]
        %v1233 = vld [vmem:[%s905 + $0x8] sm:$0xff]
        %v1234 = vld [vmem:[%s905 + $0x10] sm:$0xff]
        %v1235 = vld [vmem:[%s905 + $0x18] sm:$0xff]
        %v1236 = vld [vmem:[%s910] sm:$0xff]
        %v1237 = vld [vmem:[%s910 + $0x8] sm:$0xff]
        %v1238 = vld [vmem:[%s910 + $0x10] sm:$0xff]
        %v1239 = vld [vmem:[%s910 + $0x18] sm:$0xff]
        %v1240 = vld [vmem:[%s925] sm:$0xff]
        %v1241 = vld [vmem:[%s925 + $0x8] sm:$0xff]
        %v1242 = vld [vmem:[%s925 + $0x10] sm:$0xff]
        %v1243 = vld [vmem:[%s925 + $0x18] sm:$0xff]
        %v1244 = vld [vmem:[%s892] sm:$0x1]
        %v1245 = vld [vmem:[%s895] sm:$0x1]
        %v1246 = vld [vmem:[%s928] sm:$0x1]
        %v1247 = vld [vmem:[%s931] sm:$0x1]
        %v1248 = vld [vmem:[%s934] sm:$0x1]
        %v1249 = vld [vmem:[%s939] sm:$0xff]
        %v1250 = vld [vmem:[%s939 + $0x8] sm:$0xff]
        %v1251 = vld [vmem:[%s939 + $0x10] sm:$0xff]
        %v1252 = vld [vmem:[%s939 + $0x18] sm:$0xff]
        %v1253 = vld [vmem:[%s942] sm:$0x1]
        %v1254 = vld [vmem:[%s947] sm:$0xff]
        %v1255 = vld [vmem:[%s947 + $0x8] sm:$0xff]
        %v1256 = vld [vmem:[%s947 + $0x10] sm:$0xff]
        %v1257 = vld [vmem:[%s947 + $0x18] sm:$0xff]
        %v1258 = vld [vmem:[%s947 + $0x20] sm:$0xff]
        %v1259 = vld [vmem:[%s947 + $0x28] sm:$0xff]
        %v1260 = vld [vmem:[%s947 + $0x30] sm:$0xff]
        %v1261 = vld [vmem:[%s947 + $0x38] sm:$0xff]
        %v1262 = vld [vmem:[%s947 + $0x40] sm:$0xff]
        %v1263 = vld [vmem:[%s947 + $0x48] sm:$0xff]
        %v1264 = vld [vmem:[%s947 + $0x50] sm:$0xff]
        %v1265 = vld [vmem:[%s947 + $0x58] sm:$0xff]
        %v1266 = vld [vmem:[%s947 + $0x60] sm:$0xff]
        %v1267 = vld [vmem:[%s947 + $0x68] sm:$0xff]
        %v1268 = vld [vmem:[%s947 + $0x70] sm:$0xff]
        %v1269 = vld [vmem:[%s947 + $0x78] sm:$0xff]
        %v1270 = vld [vmem:[%s950] sm:$0x1]
        %v1271 = vld [vmem:[#allocation2] sm:$0xff]
        %v1272 = vld [vmem:[#allocation2 + $0x8] sm:$0xff]
        %v1273 = vld [vmem:[#allocation2 + $0x10] sm:$0x1]
        %vm1274 = vcmask 261120
        %v1275 = vsel %vm1274, %v1271, 0.0
        %1276 = vadd.xlane.f32.xlu0 %v1275
        %v1277 = vpop.xlane.xlu0 %1276
        %v1278 = vsel %vm1274, %v1272, 0.0
        %1279 = vadd.xlane.f32.xlu0 %v1278
        %v1280 = vpop.xlane.xlu0 %1279
        %vm1281 = vcmask 253952
        %v1282 = vsel %vm1281, %v1273, 0.0
        %1283 = vadd.xlane.f32.xlu0 %v1282
        %v1284 = vpop.xlane.xlu0 %1283
        %v1285 = vrcp.pop 32.0
        %v1286 = vmul.f32 %v1277, %v1285
        %v1287 = vmul.f32 %v1280, %v1285
        %v1288 = vmul.f32 %v1284, %v1285
        %v1289 = vsub.f32 %v1271, %v1286
        %v1290 = vsub.f32 %v1272, %v1287
        %v1291 = vsub.f32 %v1273, %v1288
        %v1292 = vmul.f32 %v1289, %v1289
        %v1293 = vmul.f32 %v1290, %v1290
        %v1294 = vmul.f32 %v1291, %v1291
        %v1295 = vsel %vm1274, %v1292, 0.0
        %1296 = vadd.xlane.f32.xlu0 %v1295
        %v1297 = vpop.xlane.xlu0 %1296
        %v1298 = vsel %vm1274, %v1293, 0.0
        %1299 = vadd.xlane.f32.xlu0 %v1298
        %v1300 = vpop.xlane.xlu0 %1299
        %v1301 = vsel %vm1281, %v1294, 0.0
        %1302 = vadd.xlane.f32.xlu0 %v1301
        %v1303 = vpop.xlane.xlu0 %1302
        %v1304 = vmul.f32 %v1297, %v1285
        %v1305 = vmul.f32 %v1300, %v1285
        %v1306 = vmul.f32 %v1303, %v1285
        %v1307 = vadd.f32 %v1304, 1e-05
        %v1308 = vadd.f32 %v1305, 1e-05
        %v1309 = vadd.f32 %v1306, 1e-05
        %v1310 = vrsqrt.pop %v1307
        %v1311 = vrsqrt.pop %v1308
        %v1312 = vrsqrt.pop %v1309
        %v1313 = vmul.f32 %v1289, %v1310
        %v1314 = vmul.f32 %v1290, %v1311
        %v1315 = vmul.f32 %v1291, %v1312
        %v1317 = vlaneseq
        %v1318 = vshrl.u32 %v1317, 7
        %v1319 = vsub.s32 0, %v1318
        %v1320 = vrot.slane %v1244, %v1319
        %v1322 = vmul.f32 %v1313, %v1320
        %v1323 = vmul.f32 %v1314, %v1320
        %v1324 = vmul.f32 %v1315, %v1320
        %v1326 = vlaneseq
        %v1327 = vshrl.u32 %v1326, 7
        %v1328 = vsub.s32 0, %v1327
        %v1329 = vrot.slane %v1245, %v1328
        %v1331 = vadd.f32 %v1322, %v1329
        %v1332 = vadd.f32 %v1323, %v1329
        %v1333 = vadd.f32 %v1324, %v1329
        %v1335 = vsel %vm1274, %v1331, 0
        %v1338 = vsel %vm1274, %v1332, 0
        %v1341 = vsel %vm1274, %v1333, 0
        %1343 = vmatprep.subr.mxu0 0.0
        %1344 = vmatpush1.msra.mxu0 %v1228
        %1345 = vmatprep.subr.mxu0 0.0
        %1346 = vmatpush1.msra.mxu0 %v1229
        %1347 = vmatprep.subr.mxu0 0.0
        %1348 = vmatpush1.msra.mxu0 %v1230
        %1349 = vmatprep.subr.mxu0 0.0
        %1350 = vmatpush1.msra.mxu0 %v1231
        %1351 = vmatprep.subr.mxu0 0.0
        %1352 = vmatpush1.msra.mxu0 0.0
        %1353 = vmatprep.subr.mxu0 0.0
        %1354 = vmatpush1.msra.mxu0 0.0
        %1355 = vmatprep.subr.mxu0 0.0
        %1356 = vmatpush1.msra.mxu0 0.0
        %1357 = vmatprep.subr.mxu0 0.0
        %1358 = vmatpush1.msra.mxu0 0.0
        %1359 = vmatprep.subr.mxu0 0.0
        %1360 = vmatpush1.msra.mxu0 0.0
        %1361 = vmatprep.subr.mxu0 0.0
        %1362 = vmatpush1.msra.mxu0 0.0
        %1363 = vmatprep.subr.mxu0 0.0
        %1364 = vmatpush1.msra.mxu0 0.0
        %1365 = vmatprep.subr.mxu0 0.0
        %1366 = vmatpush1.msra.mxu0 0.0
        %1367 = vmatprep.subr.mxu0 0.0
        %1368 = vmatpush1.msra.mxu0 0.0
        %1369 = vmatprep.subr.mxu0 0.0
        %1370 = vmatpush1.msra.mxu0 0.0
        %1371 = vmatprep.subr.mxu0 0.0
        %1372 = vmatpush1.msra.mxu0 0.0
        %1373 = vmatprep.subr.mxu0 0.0
        %1374 = vmatpush1.msra.mxu0 0.0
        %1375 = vmatprep.subr.mxu0 0.0
        %1376 = vmatpush1.msra.mxu0 0.0
        %1377 = vmatprep.subr.mxu0 0.0
        %1378 = vmatpush1.msra.mxu0 0.0
        %1379 = vmatprep.subr.mxu0 0.0
        %1380 = vmatpush1.msra.mxu0 0.0
        %1381 = vmatprep.subr.mxu0 0.0
        %1382 = vmatpush1.msra.mxu0 0.0
        %1383 = vmatprep.subr.mxu0 0.0
        %1384 = vmatpush1.msra.mxu0 0.0
        %1385 = vmatprep.subr.mxu0 0.0
        %1386 = vmatpush1.msra.mxu0 0.0
        %1387 = vmatprep.subr.mxu0 0.0
        %1388 = vmatpush1.msra.mxu0 0.0
        %1389 = vmatprep.subr.mxu0 0.0
        %1390 = vmatpush1.msra.mxu0 0.0
        %1391 = vmatprep.subr.mxu0 0.0
        %1392 = vmatpush1.msra.mxu0 0.0
        %1393 = vmatprep.subr.mxu0 0.0
        %1394 = vmatpush1.msra.mxu0 0.0
        %1395 = vmatprep.subr.mxu0 0.0
        %1396 = vmatpush1.msra.mxu0 0.0
        %1397 = vmatprep.subr.mxu0 0.0
        %1398 = vmatpush1.msra.mxu0 0.0
        %1399 = vmatprep.subr.mxu0 0.0
        %1400 = vmatpush1.msra.mxu0 0.0
        %1401 = vmatprep.subr.mxu0 0.0
        %1402 = vmatpush1.msra.mxu0 0.0
        %1403 = vmatprep.subr.mxu0 0.0
        %1404 = vmatpush1.msra.mxu0 0.0
        %1405 = vmatprep.subr.mxu0 0.0
        %1406 = vmatpush1.msra.mxu0 0.0
        %1407 = vmatprep.mubr.f32.mxu0 0.0
        %1408 = vmatmul.mubr.f32.gmra.mrb[0].mxu0 %v1335
        %v1409 = vpop.f32.mrb[0].mxu0
        %v1410 = vadd.f32 0.0, %v1409
        %v1411 = vpop.f32.mrb[0].mxu0
        %1412 = vmatprep.mubr.f32.mxu0 0.0
        %1413 = vmatmul.mubr.f32.gmra.mrb[0].mxu0 %v1338
        %v1414 = vpop.f32.mrb[0].mxu0
        %v1415 = vadd.f32 0.0, %v1414
        %v1416 = vpop.f32.mrb[0].mxu0
        %1417 = vmatprep.mubr.f32.mxu0 0.0
        %1418 = vmatmul.mubr.f32.gmra.mrb[0].mxu0 %v1341
        %v1419 = vpop.f32.mrb[0].mxu0
        %v1420 = vadd.f32 0.0, %v1419
        %v1421 = vpop.f32.mrb[0].mxu0
        %1422 = vdwg.mxu0
        %1423 = vmatprep.subr.mxu0 0.0
        %1424 = vmatpush1.msra.mxu0 %v1232
        %1425 = vmatprep.subr.mxu0 0.0
        %1426 = vmatpush1.msra.mxu0 %v1233
        %1427 = vmatprep.subr.mxu0 0.0
        %1428 = vmatpush1.msra.mxu0 %v1234
        %1429 = vmatprep.subr.mxu0 0.0
        %1430 = vmatpush1.msra.mxu0 %v1235
        %1431 = vmatprep.subr.mxu0 0.0
        %1432 = vmatpush1.msra.mxu0 0.0
        %1433 = vmatprep.subr.mxu0 0.0
        %1434 = vmatpush1.msra.mxu0 0.0
        %1435 = vmatprep.subr.mxu0 0.0
        %1436 = vmatpush1.msra.mxu0 0.0
        %1437 = vmatprep.subr.mxu0 0.0
        %1438 = vmatpush1.msra.mxu0 0.0
        %1439 = vmatprep.subr.mxu0 0.0
        %1440 = vmatpush1.msra.mxu0 0.0
        %1441 = vmatprep.subr.mxu0 0.0
        %1442 = vmatpush1.msra.mxu0 0.0
        %1443 = vmatprep.subr.mxu0 0.0
        %1444 = vmatpush1.msra.mxu0 0.0
        %1445 = vmatprep.subr.mxu0 0.0
        %1446 = vmatpush1.msra.mxu0 0.0
        %1447 = vmatprep.subr.mxu0 0.0
        %1448 = vmatpush1.msra.mxu0 0.0
        %1449 = vmatprep.subr.mxu0 0.0
        %1450 = vmatpush1.msra.mxu0 0.0
        %1451 = vmatprep.subr.mxu0 0.0
        %1452 = vmatpush1.msra.mxu0 0.0
        %1453 = vmatprep.subr.mxu0 0.0
        %1454 = vmatpush1.msra.mxu0 0.0
        %1455 = vmatprep.subr.mxu0 0.0
        %1456 = vmatpush1.msra.mxu0 0.0
        %1457 = vmatprep.subr.mxu0 0.0
        %1458 = vmatpush1.msra.mxu0 0.0
        %1459 = vmatprep.subr.mxu0 0.0
        %1460 = vmatpush1.msra.mxu0 0.0
        %1461 = vmatprep.subr.mxu0 0.0
        %1462 = vmatpush1.msra.mxu0 0.0
        %1463 = vmatprep.subr.mxu0 0.0
        %1464 = vmatpush1.msra.mxu0 0.0
        %1465 = vmatprep.subr.mxu0 0.0
        %1466 = vmatpush1.msra.mxu0 0.0
        %1467 = vmatprep.subr.mxu0 0.0
        %1468 = vmatpush1.msra.mxu0 0.0
        %1469 = vmatprep.subr.mxu0 0.0
        %1470 = vmatpush1.msra.mxu0 0.0
        %1471 = vmatprep.subr.mxu0 0.0
        %1472 = vmatpush1.msra.mxu0 0.0
        %1473 = vmatprep.subr.mxu0 0.0
        %1474 = vmatpush1.msra.mxu0 0.0
        %1475 = vmatprep.subr.mxu0 0.0
        %1476 = vmatpush1.msra.mxu0 0.0
        %1477 = vmatprep.subr.mxu0 0.0
        %1478 = vmatpush1.msra.mxu0 0.0
        %1479 = vmatprep.subr.mxu0 0.0
        %1480 = vmatpush1.msra.mxu0 0.0
        %1481 = vmatprep.subr.mxu0 0.0
        %1482 = vmatpush1.msra.mxu0 0.0
        %1483 = vmatprep.subr.mxu0 0.0
        %1484 = vmatpush1.msra.mxu0 0.0
        %1485 = vmatprep.subr.mxu0 0.0
        %1486 = vmatpush1.msra.mxu0 0.0
        %1487 = vmatprep.mubr.f32.mxu0 0.0
        %1488 = vmatmul.mubr.f32.gmra.mrb[0].mxu0 %v1335
        %v1489 = vpop.f32.mrb[0].mxu0
        %v1490 = vadd.f32 0.0, %v1489
        %v1491 = vpop.f32.mrb[0].mxu0
        %1492 = vmatprep.mubr.f32.mxu0 0.0
        %1493 = vmatmul.mubr.f32.gmra.mrb[0].mxu0 %v1338
        %v1494 = vpop.f32.mrb[0].mxu0
        %v1495 = vadd.f32 0.0, %v1494
        %v1496 = vpop.f32.mrb[0].mxu0
        %1497 = vmatprep.mubr.f32.mxu0 0.0
        %1498 = vmatmul.mubr.f32.gmra.mrb[0].mxu0 %v1341
        %v1499 = vpop.f32.mrb[0].mxu0
        %v1500 = vadd.f32 0.0, %v1499
        %v1501 = vpop.f32.mrb[0].mxu0
        %1502 = vdwg.mxu0
        %1503 = vmatprep.subr.mxu0 0.0
        %1504 = vmatpush1.msra.mxu0 %v1236
        %1505 = vmatprep.subr.mxu0 0.0
        %1506 = vmatpush1.msra.mxu0 %v1237
        %1507 = vmatprep.subr.mxu0 0.0
        %1508 = vmatpush1.msra.mxu0 %v1238
        %1509 = vmatprep.subr.mxu0 0.0
        %1510 = vmatpush1.msra.mxu0 %v1239
        %1511 = vmatprep.subr.mxu0 0.0
        %1512 = vmatpush1.msra.mxu0 0.0
        %1513 = vmatprep.subr.mxu0 0.0
        %1514 = vmatpush1.msra.mxu0 0.0
        %1515 = vmatprep.subr.mxu0 0.0
        %1516 = vmatpush1.msra.mxu0 0.0
        %1517 = vmatprep.subr.mxu0 0.0
        %1518 = vmatpush1.msra.mxu0 0.0
        %1519 = vmatprep.subr.mxu0 0.0
        %1520 = vmatpush1.msra.mxu0 0.0
        %1521 = vmatprep.subr.mxu0 0.0
        %1522 = vmatpush1.msra.mxu0 0.0
        %1523 = vmatprep.subr.mxu0 0.0
        %1524 = vmatpush1.msra.mxu0 0.0
        %1525 = vmatprep.subr.mxu0 0.0
        %1526 = vmatpush1.msra.mxu0 0.0
        %1527 = vmatprep.subr.mxu0 0.0
        %1528 = vmatpush1.msra.mxu0 0.0
        %1529 = vmatprep.subr.mxu0 0.0
        %1530 = vmatpush1.msra.mxu0 0.0
        %1531 = vmatprep.subr.mxu0 0.0
        %1532 = vmatpush1.msra.mxu0 0.0
        %1533 = vmatprep.subr.mxu0 0.0
        %1534 = vmatpush1.msra.mxu0 0.0
        %1535 = vmatprep.subr.mxu0 0.0
        %1536 = vmatpush1.msra.mxu0 0.0
        %1537 = vmatprep.subr.mxu0 0.0
        %1538 = vmatpush1.msra.mxu0 0.0
        %1539 = vmatprep.subr.mxu0 0.0
        %1540 = vmatpush1.msra.mxu0 0.0
        %1541 = vmatprep.subr.mxu0 0.0
        %1542 = vmatpush1.msra.mxu0 0.0
        %1543 = vmatprep.subr.mxu0 0.0
        %1544 = vmatpush1.msra.mxu0 0.0
        %1545 = vmatprep.subr.mxu0 0.0
        %1546 = vmatpush1.msra.mxu0 0.0
        %1547 = vmatprep.subr.mxu0 0.0
        %1548 = vmatpush1.msra.mxu0 0.0
        %1549 = vmatprep.subr.mxu0 0.0
        %1550 = vmatpush1.msra.mxu0 0.0
        %1551 = vmatprep.subr.mxu0 0.0
        %1552 = vmatpush1.msra.mxu0 0.0
        %1553 = vmatprep.subr.mxu0 0.0
        %1554 = vmatpush1.msra.mxu0 0.0
        %1555 = vmatprep.subr.mxu0 0.0
        %1556 = vmatpush1.msra.mxu0 0.0
        %1557 = vmatprep.subr.mxu0 0.0
        %1558 = vmatpush1.msra.mxu0 0.0
        %1559 = vmatprep.subr.mxu0 0.0
        %1560 = vmatpush1.msra.mxu0 0.0
        %1561 = vmatprep.subr.mxu0 0.0
        %1562 = vmatpush1.msra.mxu0 0.0
        %1563 = vmatprep.subr.mxu0 0.0
        %1564 = vmatpush1.msra.mxu0 0.0
        %1565 = vmatprep.subr.mxu0 0.0
        %1566 = vmatpush1.msra.mxu0 0.0
        %1567 = vmatprep.mubr.f32.mxu0 0.0
        %1568 = vmatmul.mubr.f32.gmra.mrb[0].mxu0 %v1335
        %v1569 = vpop.f32.mrb[0].mxu0
        %v1570 = vadd.f32 0.0, %v1569
        %v1571 = vpop.f32.mrb[0].mxu0
        %1572 = vmatprep.mubr.f32.mxu0 0.0
        %1573 = vmatmul.mubr.f32.gmra.mrb[0].mxu0 %v1338
        %v1574 = vpop.f32.mrb[0].mxu0
        %v1575 = vadd.f32 0.0, %v1574
        %v1576 = vpop.f32.mrb[0].mxu0
        %1577 = vmatprep.mubr.f32.mxu0 0.0
        %1578 = vmatmul.mubr.f32.gmra.mrb[0].mxu0 %v1341
        %v1579 = vpop.f32.mrb[0].mxu0
        %v1580 = vadd.f32 0.0, %v1579
        %v1581 = vpop.f32.mrb[0].mxu0
        %1582 = vdwg.mxu0
        %1583 = vxpose.xlu0.b32.start [1/16] %v1490, 128
        %1584 = vxpose.xlu0.b32.cont [2/16] %v1495, 128
        %1585 = vxpose.xlu0.b32.cont [3/16] %v1500, 128
        %1586 = vxpose.xlu0.b32.cont [4/16] 0.0, 128
        %1587 = vxpose.xlu0.b32.cont [5/16] 0.0, 128
        %1588 = vxpose.xlu0.b32.cont [6/16] 0.0, 128
        %1589 = vxpose.xlu0.b32.cont [7/16] 0.0, 128
        %1590 = vxpose.xlu0.b32.cont [8/16] 0.0, 128
        %1591 = vxpose.xlu0.b32.cont [9/16] 0.0, 128
        %1592 = vxpose.xlu0.b32.cont [10/16] 0.0, 128
        %1593 = vxpose.xlu0.b32.cont [11/16] 0.0, 128
        %1594 = vxpose.xlu0.b32.cont [12/16] 0.0, 128
        %1595 = vxpose.xlu0.b32.cont [13/16] 0.0, 128
        %1596 = vxpose.xlu0.b32.cont [14/16] 0.0, 128
        %1597 = vxpose.xlu0.b32.cont [15/16] 0.0, 128
        %1598 = vxpose.xlu0.b32.end [16/16] 0.0, 128
        %v1599 = vpop.trf.xlu0
        %v1600 = vpop.trf.xlu0
        %v1601 = vpop.trf.xlu0
        %v1602 = vpop.trf.xlu0
        %v1603 = vpop.trf.xlu0
        %v1604 = vpop.trf.xlu0
        %v1605 = vpop.trf.xlu0
        %v1606 = vpop.trf.xlu0
        %v1607 = vpop.trf.xlu0
        %v1608 = vpop.trf.xlu0
        %v1609 = vpop.trf.xlu0
        %v1610 = vpop.trf.xlu0
        %v1611 = vpop.trf.xlu0
        %v1612 = vpop.trf.xlu0
        %v1613 = vpop.trf.xlu0
        %v1614 = vpop.trf.xlu0
        %vm1615 = vcmask 138240
        %v1617 = vsel %vm1615, %v1599, 0
        %v1620 = vsel %vm1615, %v1600, 0
        %v1623 = vsel %vm1615, %v1601, 0
        %v1626 = vsel %vm1615, %v1602, 0
        %v1629 = vsel %vm1615, %v1212, 0
        %v1632 = vsel %vm1615, %v1213, 0
        %v1635 = vsel %vm1615, %v1214, 0
        %v1638 = vsel %vm1615, %v1215, 0
        %v1641 = vsel %vm1615, %v1216, 0
        %v1644 = vsel %vm1615, %v1217, 0
        %v1647 = vsel %vm1615, %v1218, 0
        %v1650 = vsel %vm1615, %v1219, 0
        %1652 = vmatprep.subr.mxu0 0.0
        %1653 = vmatpush1.xpose.msra.mxu0 %v1629
        %1654 = vmatprep.subr.mxu0 0.0
        %1655 = vmatpush1.xpose.msra.mxu0 %v1632
        %1656 = vmatprep.subr.mxu0 0.0
        %1657 = vmatpush1.xpose.msra.mxu0 %v1635
        %1658 = vmatprep.subr.mxu0 0.0
        %1659 = vmatpush1.xpose.msra.mxu0 %v1638
        %1660 = vmatprep.subr.mxu0 0.0
        %1661 = vmatpush1.xpose.msra.mxu0 %v1641
        %1662 = vmatprep.subr.mxu0 0.0
        %1663 = vmatpush1.xpose.msra.mxu0 %v1644
        %1664 = vmatprep.subr.mxu0 0.0
        %1665 = vmatpush1.xpose.msra.mxu0 %v1647
        %1666 = vmatprep.subr.mxu0 0.0
        %1667 = vmatpush1.xpose.msra.mxu0 %v1650
        %1668 = vmatprep.subr.mxu0 0.0
        %1669 = vmatpush1.xpose.msra.mxu0 0.0
        %1670 = vmatprep.subr.mxu0 0.0
        %1671 = vmatpush1.xpose.msra.mxu0 0.0
        %1672 = vmatprep.subr.mxu0 0.0
        %1673 = vmatpush1.xpose.msra.mxu0 0.0
        %1674 = vmatprep.subr.mxu0 0.0
        %1675 = vmatpush1.xpose.msra.mxu0 0.0
        %1676 = vmatprep.subr.mxu0 0.0
        %1677 = vmatpush1.xpose.msra.mxu0 0.0
        %1678 = vmatprep.subr.mxu0 0.0
        %1679 = vmatpush1.xpose.msra.mxu0 0.0
        %1680 = vmatprep.subr.mxu0 0.0
        %1681 = vmatpush1.xpose.msra.mxu0 0.0
        %1682 = vmatprep.subr.mxu0 0.0
        %1683 = vmatpush1.xpose.msra.mxu0 0.0
        %1684 = vmatprep.subr.mxu0 0.0
        %1685 = vmatpush1.xpose.msra.mxu0 0.0
        %1686 = vmatprep.subr.mxu0 0.0
        %1687 = vmatpush1.xpose.msra.mxu0 0.0
        %1688 = vmatprep.subr.mxu0 0.0
        %1689 = vmatpush1.xpose.msra.mxu0 0.0
        %1690 = vmatprep.subr.mxu0 0.0
        %1691 = vmatpush1.xpose.msra.mxu0 0.0
        %1692 = vmatprep.subr.mxu0 0.0
        %1693 = vmatpush1.xpose.msra.mxu0 0.0
        %1694 = vmatprep.subr.mxu0 0.0
        %1695 = vmatpush1.xpose.msra.mxu0 0.0
        %1696 = vmatprep.subr.mxu0 0.0
        %1697 = vmatpush1.xpose.msra.mxu0 0.0
        %1698 = vmatprep.subr.mxu0 0.0
        %1699 = vmatpush1.xpose.msra.mxu0 0.0
        %1700 = vmatprep.subr.mxu0 0.0
        %1701 = vmatpush1.xpose.msra.mxu0 0.0
        %1702 = vmatprep.subr.mxu0 0.0
        %1703 = vmatpush1.xpose.msra.mxu0 0.0
        %1704 = vmatprep.subr.mxu0 0.0
        %1705 = vmatpush1.xpose.msra.mxu0 0.0
        %1706 = vmatprep.subr.mxu0 0.0
        %1707 = vmatpush1.xpose.msra.mxu0 0.0
        %1708 = vmatprep.subr.mxu0 0.0
        %1709 = vmatpush1.xpose.msra.mxu0 0.0
        %1710 = vmatprep.subr.mxu0 0.0
        %1711 = vmatpush1.xpose.msra.mxu0 0.0
        %1712 = vmatprep.subr.mxu0 0.0
        %1713 = vmatpush1.xpose.msra.mxu0 0.0
        %1714 = vmatprep.subr.mxu0 0.0
        %1715 = vmatpush1.xpose.msra.mxu0 0.0
        %1716 = vmatprep.mubr.f32.mxu0 0.0
        %1717 = vmatmul.mubr.f32.gmra.mrb[0].mxu0 %v1617
        %v1718 = vpop.f32.mrb[0].mxu0
        %v1719 = vadd.f32 0.0, %v1718
        %v1720 = vpop.f32.mrb[0].mxu0
        %1721 = vmatprep.mubr.f32.mxu0 0.0
        %1722 = vmatmul.mubr.f32.gmra.mrb[0].mxu0 %v1620
        %v1723 = vpop.f32.mrb[0].mxu0
        %v1724 = vadd.f32 0.0, %v1723
        %v1725 = vpop.f32.mrb[0].mxu0
        %1726 = vmatprep.mubr.f32.mxu0 0.0
        %1727 = vmatmul.mubr.f32.gmra.mrb[0].mxu0 %v1623
        %v1728 = vpop.f32.mrb[0].mxu0
        %v1729 = vadd.f32 0.0, %v1728
        %v1730 = vpop.f32.mrb[0].mxu0
        %1731 = vmatprep.mubr.f32.mxu0 0.0
        %1732 = vmatmul.mubr.f32.gmra.mrb[0].mxu0 %v1626
        %v1733 = vpop.f32.mrb[0].mxu0
        %v1734 = vadd.f32 0.0, %v1733
        %v1735 = vpop.f32.mrb[0].mxu0
        %1736 = vdwg.mxu0
        %v1738 = vsel %vm1615, %v1220, 0
        %v1741 = vsel %vm1615, %v1221, 0
        %v1744 = vsel %vm1615, %v1222, 0
        %v1747 = vsel %vm1615, %v1223, 0
        %v1750 = vsel %vm1615, %v1224, 0
        %v1753 = vsel %vm1615, %v1225, 0
        %v1756 = vsel %vm1615, %v1226, 0
        %v1759 = vsel %vm1615, %v1227, 0
        %vm1761 = vcmask 1040384
        %v1763 = vsel %vm1761, %v1580, 0
        %1765 = vmatprep.subr.mxu0 0.0
        %1766 = vmatpush1.msra.mxu0 %v1570
        %1767 = vmatprep.subr.mxu0 0.0
        %1768 = vmatpush1.msra.mxu0 %v1575
        %1769 = vmatprep.subr.mxu0 0.0
        %1770 = vmatpush1.msra.mxu0 %v1763
        %1771 = vmatprep.subr.mxu0 0.0
        %1772 = vmatpush1.msra.mxu0 0.0
        %1773 = vmatprep.subr.mxu0 0.0
        %1774 = vmatpush1.msra.mxu0 0.0
        %1775 = vmatprep.subr.mxu0 0.0
        %1776 = vmatpush1.msra.mxu0 0.0
        %1777 = vmatprep.subr.mxu0 0.0
        %1778 = vmatpush1.msra.mxu0 0.0
        %1779 = vmatprep.subr.mxu0 0.0
        %1780 = vmatpush1.msra.mxu0 0.0
        %1781 = vmatprep.subr.mxu0 0.0
        %1782 = vmatpush1.msra.mxu0 0.0
        %1783 = vmatprep.subr.mxu0 0.0
        %1784 = vmatpush1.msra.mxu0 0.0
        %1785 = vmatprep.subr.mxu0 0.0
        %1786 = vmatpush1.msra.mxu0 0.0
        %1787 = vmatprep.subr.mxu0 0.0
        %1788 = vmatpush1.msra.mxu0 0.0
        %1789 = vmatprep.subr.mxu0 0.0
        %1790 = vmatpush1.msra.mxu0 0.0
        %1791 = vmatprep.subr.mxu0 0.0
        %1792 = vmatpush1.msra.mxu0 0.0
        %1793 = vmatprep.subr.mxu0 0.0
        %1794 = vmatpush1.msra.mxu0 0.0
        %1795 = vmatprep.subr.mxu0 0.0
        %1796 = vmatpush1.msra.mxu0 0.0
        %1797 = vmatprep.subr.mxu0 0.0
        %1798 = vmatpush1.msra.mxu0 0.0
        %1799 = vmatprep.subr.mxu0 0.0
        %1800 = vmatpush1.msra.mxu0 0.0
        %1801 = vmatprep.subr.mxu0 0.0
        %1802 = vmatpush1.msra.mxu0 0.0
        %1803 = vmatprep.subr.mxu0 0.0
        %1804 = vmatpush1.msra.mxu0 0.0
        %1805 = vmatprep.subr.mxu0 0.0
        %1806 = vmatpush1.msra.mxu0 0.0
        %1807 = vmatprep.subr.mxu0 0.0
        %1808 = vmatpush1.msra.mxu0 0.0
        %1809 = vmatprep.subr.mxu0 0.0
        %1810 = vmatpush1.msra.mxu0 0.0
        %1811 = vmatprep.subr.mxu0 0.0
        %1812 = vmatpush1.msra.mxu0 0.0
        %1813 = vmatprep.subr.mxu0 0.0
        %1814 = vmatpush1.msra.mxu0 0.0
        %1815 = vmatprep.subr.mxu0 0.0
        %1816 = vmatpush1.msra.mxu0 0.0
        %1817 = vmatprep.subr.mxu0 0.0
        %1818 = vmatpush1.msra.mxu0 0.0
        %1819 = vmatprep.subr.mxu0 0.0
        %1820 = vmatpush1.msra.mxu0 0.0
        %1821 = vmatprep.subr.mxu0 0.0
        %1822 = vmatpush1.msra.mxu0 0.0
        %1823 = vmatprep.subr.mxu0 0.0
        %1824 = vmatpush1.msra.mxu0 0.0
        %1825 = vmatprep.subr.mxu0 0.0
        %1826 = vmatpush1.msra.mxu0 0.0
        %1827 = vmatprep.subr.mxu0 0.0
        %1828 = vmatpush1.msra.mxu0 0.0
        %1829 = vmatprep.mubr.f32.mxu0 0.0
        %1830 = vmatmul.mubr.f32.gmra.mrb[0].mxu0 %v1738
        %v1831 = vpop.f32.mrb[0].mxu0
        %v1832 = vadd.f32 0.0, %v1831
        %v1833 = vpop.f32.mrb[0].mxu0
        %1834 = vmatprep.mubr.f32.mxu0 0.0
        %1835 = vmatmul.mubr.f32.gmra.mrb[0].mxu0 %v1741
        %v1836 = vpop.f32.mrb[0].mxu0
        %v1837 = vadd.f32 0.0, %v1836
        %v1838 = vpop.f32.mrb[0].mxu0
        %1839 = vmatprep.mubr.f32.mxu0 0.0
        %1840 = vmatmul.mubr.f32.gmra.mrb[0].mxu0 %v1744
        %v1841 = vpop.f32.mrb[0].mxu0
        %v1842 = vadd.f32 0.0, %v1841
        %v1843 = vpop.f32.mrb[0].mxu0
        %1844 = vmatprep.mubr.f32.mxu0 0.0
        %1845 = vmatmul.mubr.f32.gmra.mrb[0].mxu0 %v1747
        %v1846 = vpop.f32.mrb[0].mxu0
        %v1847 = vadd.f32 0.0, %v1846
        %v1848 = vpop.f32.mrb[0].mxu0
        %1849 = vmatprep.mubr.f32.mxu0 0.0
        %1850 = vmatmul.mubr.f32.gmra.mrb[0].mxu0 %v1750
        %v1851 = vpop.f32.mrb[0].mxu0
        %v1852 = vadd.f32 0.0, %v1851
        %v1853 = vpop.f32.mrb[0].mxu0
        %1854 = vmatprep.mubr.f32.mxu0 0.0
        %1855 = vmatmul.mubr.f32.gmra.mrb[0].mxu0 %v1753
        %v1856 = vpop.f32.mrb[0].mxu0
        %v1857 = vadd.f32 0.0, %v1856
        %v1858 = vpop.f32.mrb[0].mxu0
        %1859 = vmatprep.mubr.f32.mxu0 0.0
        %1860 = vmatmul.mubr.f32.gmra.mrb[0].mxu0 %v1756
        %v1861 = vpop.f32.mrb[0].mxu0
        %v1862 = vadd.f32 0.0, %v1861
        %v1863 = vpop.f32.mrb[0].mxu0
        %1864 = vmatprep.mubr.f32.mxu0 0.0
        %1865 = vmatmul.mubr.f32.gmra.mrb[0].mxu0 %v1759
        %v1866 = vpop.f32.mrb[0].mxu0
        %v1867 = vadd.f32 0.0, %v1866
        %v1868 = vpop.f32.mrb[0].mxu0
        %1869 = vdwg.mxu0
        %1874 = vrot.lane.b32.xlu0 %v1719, 64
        %v1875 = vpop.permute.xlu0 %1874
        %1876 = vrot.lane.b32.xlu0 %v1724, 64
        %v1877 = vpop.permute.xlu0 %1876
        %1878 = vrot.lane.b32.xlu0 %v1729, 64
        %v1879 = vpop.permute.xlu0 %1878
        %1880 = vrot.lane.b32.xlu0 %v1734, 64
        %v1881 = vpop.permute.xlu0 %1880
        %vm1886 = vcmask 523264
        %v1887 = vsel %vm1886, %v1719, %v1875
        %v1888 = vsel %vm1886, %v1724, %v1877
        %v1889 = vsel %vm1886, %v1729, %v1879
        %v1890 = vsel %vm1886, %v1734, %v1881
        %v1891 = vmul.f32 %v1887, %v1064
        %v1892 = vmul.f32 %v1887, %v1065
        %v1893 = vmul.f32 %v1887, %v1066
        %v1894 = vmul.f32 %v1887, %v1067
        %v1895 = vmul.f32 %v1888, %v1068
        %v1896 = vmul.f32 %v1888, %v1069
        %v1897 = vmul.f32 %v1888, %v1070
        %v1898 = vmul.f32 %v1888, %v1071
        %v1899 = vmul.f32 %v1889, %v1072
        %v1900 = vmul.f32 %v1889, %v1073
        %v1901 = vmul.f32 %v1889, %v1074
        %v1902 = vmul.f32 %v1889, %v1075
        %v1903 = vmul.f32 %v1890, %v1076
        %v1904 = vmul.f32 %v1890, %v1077
        %v1905 = vmul.f32 %v1890, %v1078
        %v1906 = vmul.f32 %v1890, %v1079
        %v1907 = vmul.f32 %v1832, %v1080
        %v1908 = vmul.f32 %v1837, %v1081
        %v1909 = vmul.f32 %v1842, %v1082
        %v1910 = vmul.f32 %v1847, %v1083
        %v1911 = vmul.f32 %v1852, %v1084
        %v1912 = vmul.f32 %v1857, %v1085
        %v1913 = vmul.f32 %v1862, %v1086
        %v1914 = vmul.f32 %v1867, %v1087
        %v1915 = vmul.f32 %v1832, %v1088
        %v1916 = vmul.f32 %v1837, %v1089
        %v1917 = vmul.f32 %v1842, %v1090
        %v1918 = vmul.f32 %v1847, %v1091
        %v1919 = vmul.f32 %v1852, %v1092
        %v1920 = vmul.f32 %v1857, %v1093
        %v1921 = vmul.f32 %v1862, %v1094
        %v1922 = vmul.f32 %v1867, %v1095
        %v1923 = vmul.f32 %v1832, %v1096
        %v1924 = vmul.f32 %v1837, %v1097
        %v1925 = vmul.f32 %v1842, %v1098
        %v1926 = vmul.f32 %v1847, %v1099
        %v1927 = vmul.f32 %v1852, %v1100
        %v1928 = vmul.f32 %v1857, %v1101
        %v1929 = vmul.f32 %v1862, %v1102
        %v1930 = vmul.f32 %v1867, %v1103
        %v1931 = vmul.f32 %v1832, %v1104
        %v1932 = vmul.f32 %v1837, %v1105
        %v1933 = vmul.f32 %v1842, %v1106
        %v1934 = vmul.f32 %v1847, %v1107
        %v1935 = vmul.f32 %v1852, %v1108
        %v1936 = vmul.f32 %v1857, %v1109
        %v1937 = vmul.f32 %v1862, %v1110
        %v1938 = vmul.f32 %v1867, %v1111
        %v1939 = vmul.f32 %v1832, %v1112
        %v1940 = vmul.f32 %v1837, %v1113
        %v1941 = vmul.f32 %v1842, %v1114
        %v1942 = vmul.f32 %v1847, %v1115
        %v1943 = vmul.f32 %v1852, %v1116
        %v1944 = vmul.f32 %v1857, %v1117
        %v1945 = vmul.f32 %v1862, %v1118
        %v1946 = vmul.f32 %v1867, %v1119
        %v1947 = vmul.f32 %v1832, %v1120
        %v1948 = vmul.f32 %v1837, %v1121
        %v1949 = vmul.f32 %v1842, %v1122
        %v1950 = vmul.f32 %v1847, %v1123
        %v1951 = vmul.f32 %v1852, %v1124
        %v1952 = vmul.f32 %v1857, %v1125
        %v1953 = vmul.f32 %v1862, %v1126
        %v1954 = vmul.f32 %v1867, %v1127
        %v1955 = vmul.f32 %v1832, %v1128
        %v1956 = vmul.f32 %v1837, %v1129
        %v1957 = vmul.f32 %v1842, %v1130
        %v1958 = vmul.f32 %v1847, %v1131
        %v1959 = vmul.f32 %v1852, %v1132
        %v1960 = vmul.f32 %v1857, %v1133
        %v1961 = vmul.f32 %v1862, %v1134
        %v1962 = vmul.f32 %v1867, %v1135
        %v1963 = vmul.f32 %v1832, %v1136
        %v1964 = vmul.f32 %v1837, %v1137
        %v1965 = vmul.f32 %v1842, %v1138
        %v1966 = vmul.f32 %v1847, %v1139
        %v1967 = vmul.f32 %v1852, %v1140
        %v1968 = vmul.f32 %v1857, %v1141
        %v1969 = vmul.f32 %v1862, %v1142
        %v1970 = vmul.f32 %v1867, %v1143
        %v1972 = vsel %vm1274, %v1410, 0
        %v1975 = vsel %vm1274, %v1415, 0
        %v1978 = vsel %vm1274, %v1420, 0
        %1980 = vmatprep.subr.mxu0 %v1892
        %1981 = vmatpush1.msra.mxu0 %v1891
        %1982 = vmatprep.subr.mxu0 %v1896
        %1983 = vmatpush1.msra.mxu0 %v1895
        %1984 = vmatprep.subr.mxu0 %v1900
        %1985 = vmatpush1.msra.mxu0 %v1899
        %1986 = vmatprep.subr.mxu0 %v1904
        %1987 = vmatpush1.msra.mxu0 %v1903
        %1988 = vmatprep.subr.mxu0 0.0
        %1989 = vmatpush1.msra.mxu0 0.0
        %1990 = vmatprep.subr.mxu0 0.0
        %1991 = vmatpush1.msra.mxu0 0.0
        %1992 = vmatprep.subr.mxu0 0.0
        %1993 = vmatpush1.msra.mxu0 0.0
        %1994 = vmatprep.subr.mxu0 0.0
        %1995 = vmatpush1.msra.mxu0 0.0
        %1996 = vmatprep.subr.mxu0 0.0
        %1997 = vmatpush1.msra.mxu0 0.0
        %1998 = vmatprep.subr.mxu0 0.0
        %1999 = vmatpush1.msra.mxu0 0.0
        %2000 = vmatprep.subr.mxu0 0.0
        %2001 = vmatpush1.msra.mxu0 0.0
        %2002 = vmatprep.subr.mxu0 0.0
        %2003 = vmatpush1.msra.mxu0 0.0
        %2004 = vmatprep.subr.mxu0 0.0
        %2005 = vmatpush1.msra.mxu0 0.0
        %2006 = vmatprep.subr.mxu0 0.0
        %2007 = vmatpush1.msra.mxu0 0.0
        %2008 = vmatprep.subr.mxu0 0.0
        %2009 = vmatpush1.msra.mxu0 0.0
        %2010 = vmatprep.subr.mxu0 0.0
        %2011 = vmatpush1.msra.mxu0 0.0
        %2012 = vmatprep.subr.mxu0 0.0
        %2013 = vmatpush1.msra.mxu0 0.0
        %2014 = vmatprep.subr.mxu0 0.0
        %2015 = vmatpush1.msra.mxu0 0.0
        %2016 = vmatprep.subr.mxu0 0.0
        %2017 = vmatpush1.msra.mxu0 0.0
        %2018 = vmatprep.subr.mxu0 0.0
        %2019 = vmatpush1.msra.mxu0 0.0
        %2020 = vmatprep.subr.mxu0 0.0
        %2021 = vmatpush1.msra.mxu0 0.0
        %2022 = vmatprep.subr.mxu0 0.0
        %2023 = vmatpush1.msra.mxu0 0.0
        %2024 = vmatprep.subr.mxu0 0.0
        %2025 = vmatpush1.msra.mxu0 0.0
        %2026 = vmatprep.subr.mxu0 0.0
        %2027 = vmatpush1.msra.mxu0 0.0
        %2028 = vmatprep.subr.mxu0 0.0
        %2029 = vmatpush1.msra.mxu0 0.0
        %2030 = vmatprep.subr.mxu0 0.0
        %2031 = vmatpush1.msra.mxu0 0.0
        %2032 = vmatprep.subr.mxu0 0.0
        %2033 = vmatpush1.msra.mxu0 0.0
        %2034 = vmatprep.subr.mxu0 0.0
        %2035 = vmatpush1.msra.mxu0 0.0
        %2036 = vmatprep.subr.mxu0 0.0
        %2037 = vmatpush1.msra.mxu0 0.0
        %2038 = vmatprep.subr.mxu0 0.0
        %2039 = vmatpush1.msra.mxu0 0.0
        %2040 = vmatprep.subr.mxu0 0.0
        %2041 = vmatpush1.msra.mxu0 0.0
        %2042 = vmatprep.subr.mxu0 0.0
        %2043 = vmatpush1.msra.mxu0 0.0
        %2044 = vmatprep.mubr.f32.mxu0 0.0
        %2045 = vmatmul.mubr.f32.gmra.mrb[0].mxu0 %v1972
        %v2046 = vpop.f32.mrb[0].mxu0
        %v2047 = vadd.f32 0.0, %v2046
        %v2048 = vpop.f32.mrb[0].mxu0
        %v2049 = vadd.f32 0.0, %v2048
        %2050 = vmatprep.mubr.f32.mxu0 0.0
        %2051 = vmatmul.mubr.f32.gmra.mrb[0].mxu0 %v1975
        %v2052 = vpop.f32.mrb[0].mxu0
        %v2053 = vadd.f32 0.0, %v2052
        %v2054 = vpop.f32.mrb[0].mxu0
        %v2055 = vadd.f32 0.0, %v2054
        %2056 = vmatprep.mubr.f32.mxu0 0.0
        %2057 = vmatmul.mubr.f32.gmra.mrb[0].mxu0 %v1978
        %v2058 = vpop.f32.mrb[0].mxu0
        %v2059 = vadd.f32 0.0, %v2058
        %v2060 = vpop.f32.mrb[0].mxu0
        %v2061 = vadd.f32 0.0, %v2060
        %2062 = vdwg.mxu0
        %2063 = vmatprep.subr.mxu0 %v1894
        %2064 = vmatpush1.msra.mxu0 %v1893
        %2065 = vmatprep.subr.mxu0 %v1898
        %2066 = vmatpush1.msra.mxu0 %v1897
        %2067 = vmatprep.subr.mxu0 %v1902
        %2068 = vmatpush1.msra.mxu0 %v1901
        %2069 = vmatprep.subr.mxu0 %v1906
        %2070 = vmatpush1.msra.mxu0 %v1905
        %2071 = vmatprep.subr.mxu0 0.0
        %2072 = vmatpush1.msra.mxu0 0.0
        %2073 = vmatprep.subr.mxu0 0.0
        %2074 = vmatpush1.msra.mxu0 0.0
        %2075 = vmatprep.subr.mxu0 0.0
        %2076 = vmatpush1.msra.mxu0 0.0
        %2077 = vmatprep.subr.mxu0 0.0
        %2078 = vmatpush1.msra.mxu0 0.0
        %2079 = vmatprep.subr.mxu0 0.0
        %2080 = vmatpush1.msra.mxu0 0.0
        %2081 = vmatprep.subr.mxu0 0.0
        %2082 = vmatpush1.msra.mxu0 0.0
        %2083 = vmatprep.subr.mxu0 0.0
        %2084 = vmatpush1.msra.mxu0 0.0
        %2085 = vmatprep.subr.mxu0 0.0
        %2086 = vmatpush1.msra.mxu0 0.0
        %2087 = vmatprep.subr.mxu0 0.0
        %2088 = vmatpush1.msra.mxu0 0.0
        %2089 = vmatprep.subr.mxu0 0.0
        %2090 = vmatpush1.msra.mxu0 0.0
        %2091 = vmatprep.subr.mxu0 0.0
        %2092 = vmatpush1.msra.mxu0 0.0
        %2093 = vmatprep.subr.mxu0 0.0
        %2094 = vmatpush1.msra.mxu0 0.0
        %2095 = vmatprep.subr.mxu0 0.0
        %2096 = vmatpush1.msra.mxu0 0.0
        %2097 = vmatprep.subr.mxu0 0.0
        %2098 = vmatpush1.msra.mxu0 0.0
        %2099 = vmatprep.subr.mxu0 0.0
        %2100 = vmatpush1.msra.mxu0 0.0
        %2101 = vmatprep.subr.mxu0 0.0
        %2102 = vmatpush1.msra.mxu0 0.0
        %2103 = vmatprep.subr.mxu0 0.0
        %2104 = vmatpush1.msra.mxu0 0.0
        %2105 = vmatprep.subr.mxu0 0.0
        %2106 = vmatpush1.msra.mxu0 0.0
        %2107 = vmatprep.subr.mxu0 0.0
        %2108 = vmatpush1.msra.mxu0 0.0
        %2109 = vmatprep.subr.mxu0 0.0
        %2110 = vmatpush1.msra.mxu0 0.0
        %2111 = vmatprep.subr.mxu0 0.0
        %2112 = vmatpush1.msra.mxu0 0.0
        %2113 = vmatprep.subr.mxu0 0.0
        %2114 = vmatpush1.msra.mxu0 0.0
        %2115 = vmatprep.subr.mxu0 0.0
        %2116 = vmatpush1.msra.mxu0 0.0
        %2117 = vmatprep.subr.mxu0 0.0
        %2118 = vmatpush1.msra.mxu0 0.0
        %2119 = vmatprep.subr.mxu0 0.0
        %2120 = vmatpush1.msra.mxu0 0.0
        %2121 = vmatprep.subr.mxu0 0.0
        %2122 = vmatpush1.msra.mxu0 0.0
        %2123 = vmatprep.subr.mxu0 0.0
        %2124 = vmatpush1.msra.mxu0 0.0
        %2125 = vmatprep.subr.mxu0 0.0
        %2126 = vmatpush1.msra.mxu0 0.0
        %2127 = vmatprep.mubr.f32.mxu0 0.0
        %2128 = vmatmul.mubr.f32.gmra.mrb[0].mxu0 %v1972
        %v2129 = vpop.f32.mrb[0].mxu0
        %v2130 = vadd.f32 0.0, %v2129
        %v2131 = vpop.f32.mrb[0].mxu0
        %v2132 = vadd.f32 0.0, %v2131
        %2133 = vmatprep.mubr.f32.mxu0 0.0
        %2134 = vmatmul.mubr.f32.gmra.mrb[0].mxu0 %v1975
        %v2135 = vpop.f32.mrb[0].mxu0
        %v2136 = vadd.f32 0.0, %v2135
        %v2137 = vpop.f32.mrb[0].mxu0
        %v2138 = vadd.f32 0.0, %v2137
        %2139 = vmatprep.mubr.f32.mxu0 0.0
        %2140 = vmatmul.mubr.f32.gmra.mrb[0].mxu0 %v1978
        %v2141 = vpop.f32.mrb[0].mxu0
        %v2142 = vadd.f32 0.0, %v2141
        %v2143 = vpop.f32.mrb[0].mxu0
        %v2144 = vadd.f32 0.0, %v2143
        %2145 = vdwg.mxu0
        %v2146 = vmax.f32 %v2047, %v2130
        %v2147 = vmax.f32 %v2049, %v2132
        %v2148 = vmax.f32 %v2146, %v2147
        %2149 = vmax.xlane.f32.xlu0 %v2148
        %v2150 = vpop.xlane.xlu0 %2149
        %v2151 = vmax.f32 %v2053, %v2136
        %v2152 = vmax.f32 %v2055, %v2138
        %v2153 = vmax.f32 %v2151, %v2152
        %2154 = vmax.xlane.f32.xlu0 %v2153
        %v2155 = vpop.xlane.xlu0 %2154
        %v2156 = vsel %vm1761, %v2059, -inf
        %v2157 = vsel %vm1761, %v2061, -inf
        %v2158 = vsel %vm1761, %v2142, -inf
        %v2159 = vmax.f32 %v2156, %v2158
        %v2160 = vsel %vm1761, %v2144, -inf
        %v2161 = vmax.f32 %v2157, %v2160
        %v2162 = vmax.f32 %v2159, %v2161
        %2163 = vmax.xlane.f32.xlu0 %v2162
        %v2164 = vpop.xlane.xlu0 %2163
        %v2165 = vsub.f32 %v2047, %v2150
        %v2166 = vsub.f32 %v2049, %v2150
        %v2167 = vsub.f32 %v2130, %v2150
        %v2168 = vsub.f32 %v2132, %v2150
        %v2169 = vsub.f32 %v2053, %v2155
        %v2170 = vsub.f32 %v2055, %v2155
        %v2171 = vsub.f32 %v2136, %v2155
        %v2172 = vsub.f32 %v2138, %v2155
        %v2173 = vsub.f32 %v2059, %v2164
        %v2174 = vsub.f32 %v2061, %v2164
        %v2175 = vsub.f32 %v2142, %v2164
        %v2176 = vsub.f32 %v2144, %v2164
        %v2177 = vmul.f32 %v2165, 1.442695
        %v2178 = vpow.pop %v2177
        %v2179 = vmul.f32 %v2166, 1.442695
        %v2180 = vpow.pop %v2179
        %v2181 = vmul.f32 %v2167, 1.442695
        %v2182 = vpow.pop %v2181
        %v2183 = vmul.f32 %v2168, 1.442695
        %v2184 = vpow.pop %v2183
        %v2185 = vmul.f32 %v2169, 1.442695
        %v2186 = vpow.pop %v2185
        %v2187 = vmul.f32 %v2170, 1.442695
        %v2188 = vpow.pop %v2187
        %v2189 = vmul.f32 %v2171, 1.442695
        %v2190 = vpow.pop %v2189
        %v2191 = vmul.f32 %v2172, 1.442695
        %v2192 = vpow.pop %v2191
        %v2193 = vmul.f32 %v2173, 1.442695
        %v2194 = vpow.pop %v2193
        %v2195 = vmul.f32 %v2174, 1.442695
        %v2196 = vpow.pop %v2195
        %v2197 = vmul.f32 %v2175, 1.442695
        %v2198 = vpow.pop %v2197
        %v2199 = vmul.f32 %v2176, 1.442695
        %v2200 = vpow.pop %v2199
        %2201 = vmatprep.subr.mxu0 0.0
        %2202 = vmatpush1.msra.mxu0 %v1144
        %2203 = vmatprep.subr.mxu0 0.0
        %2204 = vmatpush1.msra.mxu0 %v1145
        %2205 = vmatprep.subr.mxu0 0.0
        %2206 = vmatpush1.msra.mxu0 %v1146
        %2207 = vmatprep.subr.mxu0 0.0
        %2208 = vmatpush1.msra.mxu0 %v1147
        %2209 = vmatprep.subr.mxu0 0.0
        %2210 = vmatpush1.msra.mxu0 %v1148
        %2211 = vmatprep.subr.mxu0 0.0
        %2212 = vmatpush1.msra.mxu0 %v1149
        %2213 = vmatprep.subr.mxu0 0.0
        %2214 = vmatpush1.msra.mxu0 %v1150
        %2215 = vmatprep.subr.mxu0 0.0
        %2216 = vmatpush1.msra.mxu0 %v1151
        %2217 = vmatprep.subr.mxu0 0.0
        %2218 = vmatpush1.msra.mxu0 %v1152
        %2219 = vmatprep.subr.mxu0 0.0
        %2220 = vmatpush1.msra.mxu0 %v1153
        %2221 = vmatprep.subr.mxu0 0.0
        %2222 = vmatpush1.msra.mxu0 %v1154
        %2223 = vmatprep.subr.mxu0 0.0
        %2224 = vmatpush1.msra.mxu0 %v1155
        %2225 = vmatprep.subr.mxu0 0.0
        %2226 = vmatpush1.msra.mxu0 %v1156
        %2227 = vmatprep.subr.mxu0 0.0
        %2228 = vmatpush1.msra.mxu0 %v1157
        %2229 = vmatprep.subr.mxu0 0.0
        %2230 = vmatpush1.msra.mxu0 %v1158
        %2231 = vmatprep.subr.mxu0 0.0
        %2232 = vmatpush1.msra.mxu0 %v1159
        %2233 = vmatprep.subr.mxu0 0.0
        %2234 = vmatpush1.msra.mxu0 %v1160
        %2235 = vmatprep.subr.mxu0 0.0
        %2236 = vmatpush1.msra.mxu0 %v1161
        %2237 = vmatprep.subr.mxu0 0.0
        %2238 = vmatpush1.msra.mxu0 %v1162
        %2239 = vmatprep.subr.mxu0 0.0
        %2240 = vmatpush1.msra.mxu0 %v1163
        %2241 = vmatprep.subr.mxu0 0.0
        %2242 = vmatpush1.msra.mxu0 %v1164
        %2243 = vmatprep.subr.mxu0 0.0
        %2244 = vmatpush1.msra.mxu0 %v1165
        %2245 = vmatprep.subr.mxu0 0.0
        %2246 = vmatpush1.msra.mxu0 %v1166
        %2247 = vmatprep.subr.mxu0 0.0
        %2248 = vmatpush1.msra.mxu0 %v1167
        %2249 = vmatprep.subr.mxu0 0.0
        %2250 = vmatpush1.msra.mxu0 %v1168
        %2251 = vmatprep.subr.mxu0 0.0
        %2252 = vmatpush1.msra.mxu0 %v1169
        %2253 = vmatprep.subr.mxu0 0.0
        %2254 = vmatpush1.msra.mxu0 %v1170
        %2255 = vmatprep.subr.mxu0 0.0
        %2256 = vmatpush1.msra.mxu0 %v1171
        %2257 = vmatprep.subr.mxu0 0.0
        %2258 = vmatpush1.msra.mxu0 %v1172
        %2259 = vmatprep.subr.mxu0 0.0
        %2260 = vmatpush1.msra.mxu0 %v1173
        %2261 = vmatprep.subr.mxu0 0.0
        %2262 = vmatpush1.msra.mxu0 %v1174
        %2263 = vmatprep.subr.mxu0 0.0
        %2264 = vmatpush1.msra.mxu0 %v1175
        %2265 = vmatprep.mubr.f32.mxu0 %v2180
        %2266 = vmatmul.mubr.f32.gmra.mrb[0].mxu0 %v2178
        %v2267 = vpop.f32.mrb[0].mxu0
        %v2268 = vadd.f32 0.0, %v2267
        %v2269 = vpop.f32.mrb[0].mxu0
        %2270 = vmatprep.mubr.f32.mxu0 %v2188
        %2271 = vmatmul.mubr.f32.gmra.mrb[0].mxu0 %v2186
        %v2272 = vpop.f32.mrb[0].mxu0
        %v2273 = vadd.f32 0.0, %v2272
        %v2274 = vpop.f32.mrb[0].mxu0
        %2275 = vmatprep.mubr.f32.mxu0 %v2196
        %2276 = vmatmul.mubr.f32.gmra.mrb[0].mxu0 %v2194
        %v2277 = vpop.f32.mrb[0].mxu0
        %v2278 = vadd.f32 0.0, %v2277
        %v2279 = vpop.f32.mrb[0].mxu0
        %2280 = vdwg.mxu0
        %2281 = vmatprep.subr.mxu0 0.0
        %2282 = vmatpush1.msra.mxu0 %v1176
        %2283 = vmatprep.subr.mxu0 0.0
        %2284 = vmatpush1.msra.mxu0 %v1177
        %2285 = vmatprep.subr.mxu0 0.0
        %2286 = vmatpush1.msra.mxu0 %v1178
        %2287 = vmatprep.subr.mxu0 0.0
        %2288 = vmatpush1.msra.mxu0 %v1179
        %2289 = vmatprep.subr.mxu0 0.0
        %2290 = vmatpush1.msra.mxu0 %v1180
        %2291 = vmatprep.subr.mxu0 0.0
        %2292 = vmatpush1.msra.mxu0 %v1181
        %2293 = vmatprep.subr.mxu0 0.0
        %2294 = vmatpush1.msra.mxu0 %v1182
        %2295 = vmatprep.subr.mxu0 0.0
        %2296 = vmatpush1.msra.mxu0 %v1183
        %2297 = vmatprep.subr.mxu0 0.0
        %2298 = vmatpush1.msra.mxu0 %v1184
        %2299 = vmatprep.subr.mxu0 0.0
        %2300 = vmatpush1.msra.mxu0 %v1185
        %2301 = vmatprep.subr.mxu0 0.0
        %2302 = vmatpush1.msra.mxu0 %v1186
        %2303 = vmatprep.subr.mxu0 0.0
        %2304 = vmatpush1.msra.mxu0 %v1187
        %2305 = vmatprep.subr.mxu0 0.0
        %2306 = vmatpush1.msra.mxu0 %v1188
        %2307 = vmatprep.subr.mxu0 0.0
        %2308 = vmatpush1.msra.mxu0 %v1189
        %2309 = vmatprep.subr.mxu0 0.0
        %2310 = vmatpush1.msra.mxu0 %v1190
        %2311 = vmatprep.subr.mxu0 0.0
        %2312 = vmatpush1.msra.mxu0 %v1191
        %2313 = vmatprep.subr.mxu0 0.0
        %2314 = vmatpush1.msra.mxu0 %v1192
        %2315 = vmatprep.subr.mxu0 0.0
        %2316 = vmatpush1.msra.mxu0 %v1193
        %2317 = vmatprep.subr.mxu0 0.0
        %2318 = vmatpush1.msra.mxu0 %v1194
        %2319 = vmatprep.subr.mxu0 0.0
        %2320 = vmatpush1.msra.mxu0 %v1195
        %2321 = vmatprep.subr.mxu0 0.0
        %2322 = vmatpush1.msra.mxu0 %v1196
        %2323 = vmatprep.subr.mxu0 0.0
        %2324 = vmatpush1.msra.mxu0 %v1197
        %2325 = vmatprep.subr.mxu0 0.0
        %2326 = vmatpush1.msra.mxu0 %v1198
        %2327 = vmatprep.subr.mxu0 0.0
        %2328 = vmatpush1.msra.mxu0 %v1199
        %2329 = vmatprep.subr.mxu0 0.0
        %2330 = vmatpush1.msra.mxu0 %v1200
        %2331 = vmatprep.subr.mxu0 0.0
        %2332 = vmatpush1.msra.mxu0 %v1201
        %2333 = vmatprep.subr.mxu0 0.0
        %2334 = vmatpush1.msra.mxu0 %v1202
        %2335 = vmatprep.subr.mxu0 0.0
        %2336 = vmatpush1.msra.mxu0 %v1203
        %2337 = vmatprep.subr.mxu0 0.0
        %2338 = vmatpush1.msra.mxu0 %v1204
        %2339 = vmatprep.subr.mxu0 0.0
        %2340 = vmatpush1.msra.mxu0 %v1205
        %2341 = vmatprep.subr.mxu0 0.0
        %2342 = vmatpush1.msra.mxu0 %v1206
        %2343 = vmatprep.subr.mxu0 0.0
        %2344 = vmatpush1.msra.mxu0 %v1207
        %2345 = vmatprep.mubr.f32.mxu0 %v2184
        %2346 = vmatmul.mubr.f32.gmra.mrb[0].mxu0 %v2182
        %v2347 = vpop.f32.mrb[0].mxu0
        %v2348 = vadd.f32 %v2268, %v2347
        %v2349 = vpop.f32.mrb[0].mxu0
        %2350 = vmatprep.mubr.f32.mxu0 %v2192
        %2351 = vmatmul.mubr.f32.gmra.mrb[0].mxu0 %v2190
        %v2352 = vpop.f32.mrb[0].mxu0
        %v2353 = vadd.f32 %v2273, %v2352
        %v2354 = vpop.f32.mrb[0].mxu0
        %2355 = vmatprep.mubr.f32.mxu0 %v2200
        %2356 = vmatmul.mubr.f32.gmra.mrb[0].mxu0 %v2198
        %v2357 = vpop.f32.mrb[0].mxu0
        %v2358 = vadd.f32 %v2278, %v2357
        %v2359 = vpop.f32.mrb[0].mxu0
        %2360 = vdwg.mxu0
        %vm2361 = vcmask 64512
        %v2363 = vsel %vm2361, %v2348, 0
        %v2366 = vsel %vm2361, %v2353, 0
        %v2369 = vsel %vm2361, %v2358, 0
        %2371 = vmatprep.subr.mxu0 %v1209
        %2372 = vmatpush1.msra.mxu0 %v1208
        %2373 = vmatprep.subr.mxu0 0.0
        %2374 = vmatpush1.msra.mxu0 0.0
        %2375 = vmatprep.subr.mxu0 0.0
        %2376 = vmatpush1.msra.mxu0 0.0
        %2377 = vmatprep.subr.mxu0 0.0
        %2378 = vmatpush1.msra.mxu0 0.0
        %2379 = vmatprep.subr.mxu0 0.0
        %2380 = vmatpush1.msra.mxu0 0.0
        %2381 = vmatprep.subr.mxu0 0.0
        %2382 = vmatpush1.msra.mxu0 0.0
        %2383 = vmatprep.subr.mxu0 0.0
        %2384 = vmatpush1.msra.mxu0 0.0
        %2385 = vmatprep.subr.mxu0 0.0
        %2386 = vmatpush1.msra.mxu0 0.0
        %2387 = vmatprep.subr.mxu0 0.0
        %2388 = vmatpush1.msra.mxu0 0.0
        %2389 = vmatprep.subr.mxu0 0.0
        %2390 = vmatpush1.msra.mxu0 0.0
        %2391 = vmatprep.subr.mxu0 0.0
        %2392 = vmatpush1.msra.mxu0 0.0
        %2393 = vmatprep.subr.mxu0 0.0
        %2394 = vmatpush1.msra.mxu0 0.0
        %2395 = vmatprep.subr.mxu0 0.0
        %2396 = vmatpush1.msra.mxu0 0.0
        %2397 = vmatprep.subr.mxu0 0.0
        %2398 = vmatpush1.msra.mxu0 0.0
        %2399 = vmatprep.subr.mxu0 0.0
        %2400 = vmatpush1.msra.mxu0 0.0
        %2401 = vmatprep.subr.mxu0 0.0
        %2402 = vmatpush1.msra.mxu0 0.0
        %2403 = vmatprep.subr.mxu0 0.0
        %2404 = vmatpush1.msra.mxu0 0.0
        %2405 = vmatprep.subr.mxu0 0.0
        %2406 = vmatpush1.msra.mxu0 0.0
        %2407 = vmatprep.subr.mxu0 0.0
        %2408 = vmatpush1.msra.mxu0 0.0
        %2409 = vmatprep.subr.mxu0 0.0
        %2410 = vmatpush1.msra.mxu0 0.0
        %2411 = vmatprep.subr.mxu0 0.0
        %2412 = vmatpush1.msra.mxu0 0.0
        %2413 = vmatprep.subr.mxu0 0.0
        %2414 = vmatpush1.msra.mxu0 0.0
        %2415 = vmatprep.subr.mxu0 0.0
        %2416 = vmatpush1.msra.mxu0 0.0
        %2417 = vmatprep.subr.mxu0 0.0
        %2418 = vmatpush1.msra.mxu0 0.0
        %2419 = vmatprep.subr.mxu0 0.0
        %2420 = vmatpush1.msra.mxu0 0.0
        %2421 = vmatprep.subr.mxu0 0.0
        %2422 = vmatpush1.msra.mxu0 0.0
        %2423 = vmatprep.subr.mxu0 0.0
        %2424 = vmatpush1.msra.mxu0 0.0
        %2425 = vmatprep.subr.mxu0 0.0
        %2426 = vmatpush1.msra.mxu0 0.0
        %2427 = vmatprep.subr.mxu0 0.0
        %2428 = vmatpush1.msra.mxu0 0.0
        %2429 = vmatprep.subr.mxu0 0.0
        %2430 = vmatpush1.msra.mxu0 0.0
        %2431 = vmatprep.subr.mxu0 0.0
        %2432 = vmatpush1.msra.mxu0 0.0
        %2433 = vmatprep.subr.mxu0 0.0
        %2434 = vmatpush1.msra.mxu0 0.0
        %2435 = vmatprep.mubr.f32.mxu0 0.0
        %2436 = vmatmul.mubr.f32.gmra.mrb[0].mxu0 %v2363
        %v2437 = vpop.f32.mrb[0].mxu0
        %v2438 = vadd.f32 0.0, %v2437
        %v2439 = vpop.f32.mrb[0].mxu0
        %v2440 = vadd.f32 0.0, %v2439
        %2441 = vmatprep.mubr.f32.mxu0 0.0
        %2442 = vmatmul.mubr.f32.gmra.mrb[0].mxu0 %v2366
        %v2443 = vpop.f32.mrb[0].mxu0
        %v2444 = vadd.f32 0.0, %v2443
        %v2445 = vpop.f32.mrb[0].mxu0
        %v2446 = vadd.f32 0.0, %v2445
        %2447 = vmatprep.mubr.f32.mxu0 0.0
        %2448 = vmatmul.mubr.f32.gmra.mrb[0].mxu0 %v2369
        %v2449 = vpop.f32.mrb[0].mxu0
        %v2450 = vadd.f32 0.0, %v2449
        %v2451 = vpop.f32.mrb[0].mxu0
        %v2452 = vadd.f32 0.0, %v2451
        %2453 = vdwg.mxu0
        %2454 = vmatprep.subr.mxu0 %v1211
        %2455 = vmatpush1.msra.mxu0 %v1210
        %2456 = vmatprep.subr.mxu0 0.0
        %2457 = vmatpush1.msra.mxu0 0.0
        %2458 = vmatprep.subr.mxu0 0.0
        %2459 = vmatpush1.msra.mxu0 0.0
        %2460 = vmatprep.subr.mxu0 0.0
        %2461 = vmatpush1.msra.mxu0 0.0
        %2462 = vmatprep.subr.mxu0 0.0
        %2463 = vmatpush1.msra.mxu0 0.0
        %2464 = vmatprep.subr.mxu0 0.0
        %2465 = vmatpush1.msra.mxu0 0.0
        %2466 = vmatprep.subr.mxu0 0.0
        %2467 = vmatpush1.msra.mxu0 0.0
        %2468 = vmatprep.subr.mxu0 0.0
        %2469 = vmatpush1.msra.mxu0 0.0
        %2470 = vmatprep.subr.mxu0 0.0
        %2471 = vmatpush1.msra.mxu0 0.0
        %2472 = vmatprep.subr.mxu0 0.0
        %2473 = vmatpush1.msra.mxu0 0.0
        %2474 = vmatprep.subr.mxu0 0.0
        %2475 = vmatpush1.msra.mxu0 0.0
        %2476 = vmatprep.subr.mxu0 0.0
        %2477 = vmatpush1.msra.mxu0 0.0
        %2478 = vmatprep.subr.mxu0 0.0
        %2479 = vmatpush1.msra.mxu0 0.0
        %2480 = vmatprep.subr.mxu0 0.0
        %2481 = vmatpush1.msra.mxu0 0.0
        %2482 = vmatprep.subr.mxu0 0.0
        %2483 = vmatpush1.msra.mxu0 0.0
        %2484 = vmatprep.subr.mxu0 0.0
        %2485 = vmatpush1.msra.mxu0 0.0
        %2486 = vmatprep.subr.mxu0 0.0
        %2487 = vmatpush1.msra.mxu0 0.0
        %2488 = vmatprep.subr.mxu0 0.0
        %2489 = vmatpush1.msra.mxu0 0.0
        %2490 = vmatprep.subr.mxu0 0.0
        %2491 = vmatpush1.msra.mxu0 0.0
        %2492 = vmatprep.subr.mxu0 0.0
        %2493 = vmatpush1.msra.mxu0 0.0
        %2494 = vmatprep.subr.mxu0 0.0
        %2495 = vmatpush1.msra.mxu0 0.0
        %2496 = vmatprep.subr.mxu0 0.0
        %2497 = vmatpush1.msra.mxu0 0.0
        %2498 = vmatprep.subr.mxu0 0.0
        %2499 = vmatpush1.msra.mxu0 0.0
        %2500 = vmatprep.subr.mxu0 0.0
        %2501 = vmatpush1.msra.mxu0 0.0
        %2502 = vmatprep.subr.mxu0 0.0
        %2503 = vmatpush1.msra.mxu0 0.0
        %2504 = vmatprep.subr.mxu0 0.0
        %2505 = vmatpush1.msra.mxu0 0.0
        %2506 = vmatprep.subr.mxu0 0.0
        %2507 = vmatpush1.msra.mxu0 0.0
        %2508 = vmatprep.subr.mxu0 0.0
        %2509 = vmatpush1.msra.mxu0 0.0
        %2510 = vmatprep.subr.mxu0 0.0
        %2511 = vmatpush1.msra.mxu0 0.0
        %2512 = vmatprep.subr.mxu0 0.0
        %2513 = vmatpush1.msra.mxu0 0.0
        %2514 = vmatprep.subr.mxu0 0.0
        %2515 = vmatpush1.msra.mxu0 0.0
        %2516 = vmatprep.subr.mxu0 0.0
        %2517 = vmatpush1.msra.mxu0 0.0
        %2518 = vmatprep.mubr.f32.mxu0 0.0
        %2519 = vmatmul.mubr.f32.gmra.mrb[0].mxu0 %v2363
        %v2520 = vpop.f32.mrb[0].mxu0
        %v2521 = vadd.f32 0.0, %v2520
        %v2522 = vpop.f32.mrb[0].mxu0
        %v2523 = vadd.f32 0.0, %v2522
        %2524 = vmatprep.mubr.f32.mxu0 0.0
        %2525 = vmatmul.mubr.f32.gmra.mrb[0].mxu0 %v2366
        %v2526 = vpop.f32.mrb[0].mxu0
        %v2527 = vadd.f32 0.0, %v2526
        %v2528 = vpop.f32.mrb[0].mxu0
        %v2529 = vadd.f32 0.0, %v2528
        %2530 = vmatprep.mubr.f32.mxu0 0.0
        %2531 = vmatmul.mubr.f32.gmra.mrb[0].mxu0 %v2369
        %v2532 = vpop.f32.mrb[0].mxu0
        %v2533 = vadd.f32 0.0, %v2532
        %v2534 = vpop.f32.mrb[0].mxu0
        %v2535 = vadd.f32 0.0, %v2534
        %2536 = vdwg.mxu0
        %v2537 = vrcp.pop %v2438
        %v2538 = vmul.f32 %v2178, %v2537
        %v2539 = vrcp.pop %v2440
        %v2540 = vmul.f32 %v2180, %v2539
        %v2541 = vrcp.pop %v2521
        %v2542 = vmul.f32 %v2182, %v2541
        %v2543 = vrcp.pop %v2523
        %v2544 = vmul.f32 %v2184, %v2543
        %v2545 = vrcp.pop %v2444
        %v2546 = vmul.f32 %v2186, %v2545
        %v2547 = vrcp.pop %v2446
        %v2548 = vmul.f32 %v2188, %v2547
        %v2549 = vrcp.pop %v2527
        %v2550 = vmul.f32 %v2190, %v2549
        %v2551 = vrcp.pop %v2529
        %v2552 = vmul.f32 %v2192, %v2551
        %v2553 = vrcp.pop %v2450
        %v2554 = vmul.f32 %v2194, %v2553
        %v2555 = vrcp.pop %v2452
        %v2556 = vmul.f32 %v2196, %v2555
        %v2557 = vrcp.pop %v2533
        %v2558 = vmul.f32 %v2198, %v2557
        %v2559 = vrcp.pop %v2535
        %v2560 = vmul.f32 %v2200, %v2559
        %2561 = vmatprep.subr.mxu0 0.0
        %2562 = vmatpush1.msra.mxu0 %v1907
        %2563 = vmatprep.subr.mxu0 0.0
        %2564 = vmatpush1.msra.mxu0 %v1908
        %2565 = vmatprep.subr.mxu0 0.0
        %2566 = vmatpush1.msra.mxu0 %v1909
        %2567 = vmatprep.subr.mxu0 0.0
        %2568 = vmatpush1.msra.mxu0 %v1910
        %2569 = vmatprep.subr.mxu0 0.0
        %2570 = vmatpush1.msra.mxu0 %v1911
        %2571 = vmatprep.subr.mxu0 0.0
        %2572 = vmatpush1.msra.mxu0 %v1912
        %2573 = vmatprep.subr.mxu0 0.0
        %2574 = vmatpush1.msra.mxu0 %v1913
        %2575 = vmatprep.subr.mxu0 0.0
        %2576 = vmatpush1.msra.mxu0 %v1914
        %2577 = vmatprep.subr.mxu0 0.0
        %2578 = vmatpush1.msra.mxu0 %v1915
        %2579 = vmatprep.subr.mxu0 0.0
        %2580 = vmatpush1.msra.mxu0 %v1916
        %2581 = vmatprep.subr.mxu0 0.0
        %2582 = vmatpush1.msra.mxu0 %v1917
        %2583 = vmatprep.subr.mxu0 0.0
        %2584 = vmatpush1.msra.mxu0 %v1918
        %2585 = vmatprep.subr.mxu0 0.0
        %2586 = vmatpush1.msra.mxu0 %v1919
        %2587 = vmatprep.subr.mxu0 0.0
        %2588 = vmatpush1.msra.mxu0 %v1920
        %2589 = vmatprep.subr.mxu0 0.0
        %2590 = vmatpush1.msra.mxu0 %v1921
        %2591 = vmatprep.subr.mxu0 0.0
        %2592 = vmatpush1.msra.mxu0 %v1922
        %2593 = vmatprep.subr.mxu0 0.0
        %2594 = vmatpush1.msra.mxu0 %v1923
        %2595 = vmatprep.subr.mxu0 0.0
        %2596 = vmatpush1.msra.mxu0 %v1924
        %2597 = vmatprep.subr.mxu0 0.0
        %2598 = vmatpush1.msra.mxu0 %v1925
        %2599 = vmatprep.subr.mxu0 0.0
        %2600 = vmatpush1.msra.mxu0 %v1926
        %2601 = vmatprep.subr.mxu0 0.0
        %2602 = vmatpush1.msra.mxu0 %v1927
        %2603 = vmatprep.subr.mxu0 0.0
        %2604 = vmatpush1.msra.mxu0 %v1928
        %2605 = vmatprep.subr.mxu0 0.0
        %2606 = vmatpush1.msra.mxu0 %v1929
        %2607 = vmatprep.subr.mxu0 0.0
        %2608 = vmatpush1.msra.mxu0 %v1930
        %2609 = vmatprep.subr.mxu0 0.0
        %2610 = vmatpush1.msra.mxu0 %v1931
        %2611 = vmatprep.subr.mxu0 0.0
        %2612 = vmatpush1.msra.mxu0 %v1932
        %2613 = vmatprep.subr.mxu0 0.0
        %2614 = vmatpush1.msra.mxu0 %v1933
        %2615 = vmatprep.subr.mxu0 0.0
        %2616 = vmatpush1.msra.mxu0 %v1934
        %2617 = vmatprep.subr.mxu0 0.0
        %2618 = vmatpush1.msra.mxu0 %v1935
        %2619 = vmatprep.subr.mxu0 0.0
        %2620 = vmatpush1.msra.mxu0 %v1936
        %2621 = vmatprep.subr.mxu0 0.0
        %2622 = vmatpush1.msra.mxu0 %v1937
        %2623 = vmatprep.subr.mxu0 0.0
        %2624 = vmatpush1.msra.mxu0 %v1938
        %2625 = vmatprep.mubr.f32.mxu0 %v2540
        %2626 = vmatmul.mubr.f32.gmra.mrb[0].mxu0 %v2538
        %v2627 = vpop.f32.mrb[0].mxu0
        %v2628 = vadd.f32 0.0, %v2627
        %v2629 = vpop.f32.mrb[0].mxu0
        %2630 = vmatprep.mubr.f32.mxu0 %v2548
        %2631 = vmatmul.mubr.f32.gmra.mrb[0].mxu0 %v2546
        %v2632 = vpop.f32.mrb[0].mxu0
        %v2633 = vadd.f32 0.0, %v2632
        %v2634 = vpop.f32.mrb[0].mxu0
        %2635 = vmatprep.mubr.f32.mxu0 %v2556
        %2636 = vmatmul.mubr.f32.gmra.mrb[0].mxu0 %v2554
        %v2637 = vpop.f32.mrb[0].mxu0
        %v2638 = vadd.f32 0.0, %v2637
        %v2639 = vpop.f32.mrb[0].mxu0
        %2640 = vdwg.mxu0
        %2641 = vmatprep.subr.mxu0 0.0
        %2642 = vmatpush1.msra.mxu0 %v1939
        %2643 = vmatprep.subr.mxu0 0.0
        %2644 = vmatpush1.msra.mxu0 %v1940
        %2645 = vmatprep.subr.mxu0 0.0
        %2646 = vmatpush1.msra.mxu0 %v1941
        %2647 = vmatprep.subr.mxu0 0.0
        %2648 = vmatpush1.msra.mxu0 %v1942
        %2649 = vmatprep.subr.mxu0 0.0
        %2650 = vmatpush1.msra.mxu0 %v1943
        %2651 = vmatprep.subr.mxu0 0.0
        %2652 = vmatpush1.msra.mxu0 %v1944
        %2653 = vmatprep.subr.mxu0 0.0
        %2654 = vmatpush1.msra.mxu0 %v1945
        %2655 = vmatprep.subr.mxu0 0.0
        %2656 = vmatpush1.msra.mxu0 %v1946
        %2657 = vmatprep.subr.mxu0 0.0
        %2658 = vmatpush1.msra.mxu0 %v1947
        %2659 = vmatprep.subr.mxu0 0.0
        %2660 = vmatpush1.msra.mxu0 %v1948
        %2661 = vmatprep.subr.mxu0 0.0
        %2662 = vmatpush1.msra.mxu0 %v1949
        %2663 = vmatprep.subr.mxu0 0.0
        %2664 = vmatpush1.msra.mxu0 %v1950
        %2665 = vmatprep.subr.mxu0 0.0
        %2666 = vmatpush1.msra.mxu0 %v1951
        %2667 = vmatprep.subr.mxu0 0.0
        %2668 = vmatpush1.msra.mxu0 %v1952
        %2669 = vmatprep.subr.mxu0 0.0
        %2670 = vmatpush1.msra.mxu0 %v1953
        %2671 = vmatprep.subr.mxu0 0.0
        %2672 = vmatpush1.msra.mxu0 %v1954
        %2673 = vmatprep.subr.mxu0 0.0
        %2674 = vmatpush1.msra.mxu0 %v1955
        %2675 = vmatprep.subr.mxu0 0.0
        %2676 = vmatpush1.msra.mxu0 %v1956
        %2677 = vmatprep.subr.mxu0 0.0
        %2678 = vmatpush1.msra.mxu0 %v1957
        %2679 = vmatprep.subr.mxu0 0.0
        %2680 = vmatpush1.msra.mxu0 %v1958
        %2681 = vmatprep.subr.mxu0 0.0
        %2682 = vmatpush1.msra.mxu0 %v1959
        %2683 = vmatprep.subr.mxu0 0.0
        %2684 = vmatpush1.msra.mxu0 %v1960
        %2685 = vmatprep.subr.mxu0 0.0
        %2686 = vmatpush1.msra.mxu0 %v1961
        %2687 = vmatprep.subr.mxu0 0.0
        %2688 = vmatpush1.msra.mxu0 %v1962
        %2689 = vmatprep.subr.mxu0 0.0
        %2690 = vmatpush1.msra.mxu0 %v1963
        %2691 = vmatprep.subr.mxu0 0.0
        %2692 = vmatpush1.msra.mxu0 %v1964
        %2693 = vmatprep.subr.mxu0 0.0
        %2694 = vmatpush1.msra.mxu0 %v1965
        %2695 = vmatprep.subr.mxu0 0.0
        %2696 = vmatpush1.msra.mxu0 %v1966
        %2697 = vmatprep.subr.mxu0 0.0
        %2698 = vmatpush1.msra.mxu0 %v1967
        %2699 = vmatprep.subr.mxu0 0.0
        %2700 = vmatpush1.msra.mxu0 %v1968
        %2701 = vmatprep.subr.mxu0 0.0
        %2702 = vmatpush1.msra.mxu0 %v1969
        %2703 = vmatprep.subr.mxu0 0.0
        %2704 = vmatpush1.msra.mxu0 %v1970
        %2705 = vmatprep.mubr.f32.mxu0 %v2544
        %2706 = vmatmul.mubr.f32.gmra.mrb[0].mxu0 %v2542
        %v2707 = vpop.f32.mrb[0].mxu0
        %v2708 = vadd.f32 %v2628, %v2707
        %v2709 = vpop.f32.mrb[0].mxu0
        %2710 = vmatprep.mubr.f32.mxu0 %v2552
        %2711 = vmatmul.mubr.f32.gmra.mrb[0].mxu0 %v2550
        %v2712 = vpop.f32.mrb[0].mxu0
        %v2713 = vadd.f32 %v2633, %v2712
        %v2714 = vpop.f32.mrb[0].mxu0
        %2715 = vmatprep.mubr.f32.mxu0 %v2560
        %2716 = vmatmul.mubr.f32.gmra.mrb[0].mxu0 %v2558
        %v2717 = vpop.f32.mrb[0].mxu0
        %v2718 = vadd.f32 %v2638, %v2717
        %v2719 = vpop.f32.mrb[0].mxu0
        %2720 = vdwg.mxu0
        %v2722 = vsel %vm1274, %v2708, 0
        %v2725 = vsel %vm1274, %v2713, 0
        %v2728 = vsel %vm1274, %v2718, 0
        %2730 = vmatprep.subr.mxu0 0.0
        %2731 = vmatpush1.msra.mxu0 %v1240
        %2732 = vmatprep.subr.mxu0 0.0
        %2733 = vmatpush1.msra.mxu0 %v1241
        %2734 = vmatprep.subr.mxu0 0.0
        %2735 = vmatpush1.msra.mxu0 %v1242
        %2736 = vmatprep.subr.mxu0 0.0
        %2737 = vmatpush1.msra.mxu0 %v1243
        %2738 = vmatprep.subr.mxu0 0.0
        %2739 = vmatpush1.msra.mxu0 0.0
        %2740 = vmatprep.subr.mxu0 0.0
        %2741 = vmatpush1.msra.mxu0 0.0
        %2742 = vmatprep.subr.mxu0 0.0
        %2743 = vmatpush1.msra.mxu0 0.0
        %2744 = vmatprep.subr.mxu0 0.0
        %2745 = vmatpush1.msra.mxu0 0.0
        %2746 = vmatprep.subr.mxu0 0.0
        %2747 = vmatpush1.msra.mxu0 0.0
        %2748 = vmatprep.subr.mxu0 0.0
        %2749 = vmatpush1.msra.mxu0 0.0
        %2750 = vmatprep.subr.mxu0 0.0
        %2751 = vmatpush1.msra.mxu0 0.0
        %2752 = vmatprep.subr.mxu0 0.0
        %2753 = vmatpush1.msra.mxu0 0.0
        %2754 = vmatprep.subr.mxu0 0.0
        %2755 = vmatpush1.msra.mxu0 0.0
        %2756 = vmatprep.subr.mxu0 0.0
        %2757 = vmatpush1.msra.mxu0 0.0
        %2758 = vmatprep.subr.mxu0 0.0
        %2759 = vmatpush1.msra.mxu0 0.0
        %2760 = vmatprep.subr.mxu0 0.0
        %2761 = vmatpush1.msra.mxu0 0.0
        %2762 = vmatprep.subr.mxu0 0.0
        %2763 = vmatpush1.msra.mxu0 0.0
        %2764 = vmatprep.subr.mxu0 0.0
        %2765 = vmatpush1.msra.mxu0 0.0
        %2766 = vmatprep.subr.mxu0 0.0
        %2767 = vmatpush1.msra.mxu0 0.0
        %2768 = vmatprep.subr.mxu0 0.0
        %2769 = vmatpush1.msra.mxu0 0.0
        %2770 = vmatprep.subr.mxu0 0.0
        %2771 = vmatpush1.msra.mxu0 0.0
        %2772 = vmatprep.subr.mxu0 0.0
        %2773 = vmatpush1.msra.mxu0 0.0
        %2774 = vmatprep.subr.mxu0 0.0
        %2775 = vmatpush1.msra.mxu0 0.0
        %2776 = vmatprep.subr.mxu0 0.0
        %2777 = vmatpush1.msra.mxu0 0.0
        %2778 = vmatprep.subr.mxu0 0.0
        %2779 = vmatpush1.msra.mxu0 0.0
        %2780 = vmatprep.subr.mxu0 0.0
        %2781 = vmatpush1.msra.mxu0 0.0
        %2782 = vmatprep.subr.mxu0 0.0
        %2783 = vmatpush1.msra.mxu0 0.0
        %2784 = vmatprep.subr.mxu0 0.0
        %2785 = vmatpush1.msra.mxu0 0.0
        %2786 = vmatprep.subr.mxu0 0.0
        %2787 = vmatpush1.msra.mxu0 0.0
        %2788 = vmatprep.subr.mxu0 0.0
        %2789 = vmatpush1.msra.mxu0 0.0
        %2790 = vmatprep.subr.mxu0 0.0
        %2791 = vmatpush1.msra.mxu0 0.0
        %2792 = vmatprep.subr.mxu0 0.0
        %2793 = vmatpush1.msra.mxu0 0.0
        %2794 = vmatprep.mubr.f32.mxu0 0.0
        %2795 = vmatmul.mubr.f32.gmra.mrb[0].mxu0 %v2722
        %v2796 = vpop.f32.mrb[0].mxu0
        %v2797 = vadd.f32 0.0, %v2796
        %v2798 = vpop.f32.mrb[0].mxu0
        %2799 = vmatprep.mubr.f32.mxu0 0.0
        %2800 = vmatmul.mubr.f32.gmra.mrb[0].mxu0 %v2725
        %v2801 = vpop.f32.mrb[0].mxu0
        %v2802 = vadd.f32 0.0, %v2801
        %v2803 = vpop.f32.mrb[0].mxu0
        %2804 = vmatprep.mubr.f32.mxu0 0.0
        %2805 = vmatmul.mubr.f32.gmra.mrb[0].mxu0 %v2728
        %v2806 = vpop.f32.mrb[0].mxu0
        %v2807 = vadd.f32 0.0, %v2806
        %v2808 = vpop.f32.mrb[0].mxu0
        %2809 = vdwg.mxu0
        %v2810 = vadd.f32 %v1271, %v2797
        %v2811 = vadd.f32 %v1272, %v2802
        %v2812 = vadd.f32 %v1273, %v2807
        %v2814 = vlaneseq
        %v2815 = vshrl.u32 %v2814, 7
        %v2816 = vsub.s32 0, %v2815
        %v2817 = vrot.slane %v1246, %v2816
        %v2819 = vadd.f32 %v2810, %v2817
        %v2820 = vadd.f32 %v2811, %v2817
        %v2821 = vadd.f32 %v2812, %v2817
        %v2822 = vsel %vm1274, %v2819, 0.0
        %2823 = vadd.xlane.f32.xlu0 %v2822
        %v2824 = vpop.xlane.xlu0 %2823
        %v2825 = vsel %vm1274, %v2820, 0.0
        %2826 = vadd.xlane.f32.xlu0 %v2825
        %v2827 = vpop.xlane.xlu0 %2826
        %v2828 = vsel %vm1281, %v2821, 0.0
        %2829 = vadd.xlane.f32.xlu0 %v2828
        %v2830 = vpop.xlane.xlu0 %2829
        %v2831 = vmul.f32 %v2824, %v1285
        %v2832 = vmul.f32 %v2827, %v1285
        %v2833 = vmul.f32 %v2830, %v1285
        %v2834 = vsub.f32 %v2819, %v2831
        %v2835 = vsub.f32 %v2820, %v2832
        %v2836 = vsub.f32 %v2821, %v2833
        %v2837 = vmul.f32 %v2834, %v2834
        %v2838 = vmul.f32 %v2835, %v2835
        %v2839 = vmul.f32 %v2836, %v2836
        %v2840 = vsel %vm1274, %v2837, 0.0
        %2841 = vadd.xlane.f32.xlu0 %v2840
        %v2842 = vpop.xlane.xlu0 %2841
        %v2843 = vsel %vm1274, %v2838, 0.0
        %2844 = vadd.xlane.f32.xlu0 %v2843
        %v2845 = vpop.xlane.xlu0 %2844
        %v2846 = vsel %vm1281, %v2839, 0.0
        %2847 = vadd.xlane.f32.xlu0 %v2846
        %v2848 = vpop.xlane.xlu0 %2847
        %v2849 = vmul.f32 %v2842, %v1285
        %v2850 = vmul.f32 %v2845, %v1285
        %v2851 = vmul.f32 %v2848, %v1285
        %v2852 = vadd.f32 %v2849, 1e-05
        %v2853 = vadd.f32 %v2850, 1e-05
        %v2854 = vadd.f32 %v2851, 1e-05
        %v2855 = vrsqrt.pop %v2852
        %v2856 = vrsqrt.pop %v2853
        %v2857 = vrsqrt.pop %v2854
        %v2858 = vmul.f32 %v2834, %v2855
        %v2859 = vmul.f32 %v2835, %v2856
        %v2860 = vmul.f32 %v2836, %v2857
        %v2862 = vlaneseq
        %v2863 = vshrl.u32 %v2862, 7
        %v2864 = vsub.s32 0, %v2863
        %v2865 = vrot.slane %v1247, %v2864
        %v2867 = vmul.f32 %v2858, %v2865
        %v2868 = vmul.f32 %v2859, %v2865
        %v2869 = vmul.f32 %v2860, %v2865
        %v2871 = vlaneseq
        %v2872 = vshrl.u32 %v2871, 7
        %v2873 = vsub.s32 0, %v2872
        %v2874 = vrot.slane %v1248, %v2873
        %v2876 = vadd.f32 %v2867, %v2874
        %v2877 = vadd.f32 %v2868, %v2874
        %v2878 = vadd.f32 %v2869, %v2874
        %v2880 = vlaneseq
        %v2881 = vshrl.u32 %v2880, 7
        %v2882 = vsub.s32 0, %v2881
        %v2883 = vrot.slane %v1253, %v2882
        %v2886 = vsel %vm1274, %v2876, 0
        %v2889 = vsel %vm1274, %v2877, 0
        %v2892 = vsel %vm1274, %v2878, 0
        %2894 = vmatprep.subr.mxu0 0.0
        %2895 = vmatpush1.msra.mxu0 %v1249
        %2896 = vmatprep.subr.mxu0 0.0
        %2897 = vmatpush1.msra.mxu0 %v1250
        %2898 = vmatprep.subr.mxu0 0.0
        %2899 = vmatpush1.msra.mxu0 %v1251
        %2900 = vmatprep.subr.mxu0 0.0
        %2901 = vmatpush1.msra.mxu0 %v1252
        %2902 = vmatprep.subr.mxu0 0.0
        %2903 = vmatpush1.msra.mxu0 0.0
        %2904 = vmatprep.subr.mxu0 0.0
        %2905 = vmatpush1.msra.mxu0 0.0
        %2906 = vmatprep.subr.mxu0 0.0
        %2907 = vmatpush1.msra.mxu0 0.0
        %2908 = vmatprep.subr.mxu0 0.0
        %2909 = vmatpush1.msra.mxu0 0.0
        %2910 = vmatprep.subr.mxu0 0.0
        %2911 = vmatpush1.msra.mxu0 0.0
        %2912 = vmatprep.subr.mxu0 0.0
        %2913 = vmatpush1.msra.mxu0 0.0
        %2914 = vmatprep.subr.mxu0 0.0
        %2915 = vmatpush1.msra.mxu0 0.0
        %2916 = vmatprep.subr.mxu0 0.0
        %2917 = vmatpush1.msra.mxu0 0.0
        %2918 = vmatprep.subr.mxu0 0.0
        %2919 = vmatpush1.msra.mxu0 0.0
        %2920 = vmatprep.subr.mxu0 0.0
        %2921 = vmatpush1.msra.mxu0 0.0
        %2922 = vmatprep.subr.mxu0 0.0
        %2923 = vmatpush1.msra.mxu0 0.0
        %2924 = vmatprep.subr.mxu0 0.0
        %2925 = vmatpush1.msra.mxu0 0.0
        %2926 = vmatprep.subr.mxu0 0.0
        %2927 = vmatpush1.msra.mxu0 0.0
        %2928 = vmatprep.subr.mxu0 0.0
        %2929 = vmatpush1.msra.mxu0 0.0
        %2930 = vmatprep.subr.mxu0 0.0
        %2931 = vmatpush1.msra.mxu0 0.0
        %2932 = vmatprep.subr.mxu0 0.0
        %2933 = vmatpush1.msra.mxu0 0.0
        %2934 = vmatprep.subr.mxu0 0.0
        %2935 = vmatpush1.msra.mxu0 0.0
        %2936 = vmatprep.subr.mxu0 0.0
        %2937 = vmatpush1.msra.mxu0 0.0
        %2938 = vmatprep.subr.mxu0 0.0
        %2939 = vmatpush1.msra.mxu0 0.0
        %2940 = vmatprep.subr.mxu0 0.0
        %2941 = vmatpush1.msra.mxu0 0.0
        %2942 = vmatprep.subr.mxu0 0.0
        %2943 = vmatpush1.msra.mxu0 0.0
        %2944 = vmatprep.subr.mxu0 0.0
        %2945 = vmatpush1.msra.mxu0 0.0
        %2946 = vmatprep.subr.mxu0 0.0
        %2947 = vmatpush1.msra.mxu0 0.0
        %2948 = vmatprep.subr.mxu0 0.0
        %2949 = vmatpush1.msra.mxu0 0.0
        %2950 = vmatprep.subr.mxu0 0.0
        %2951 = vmatpush1.msra.mxu0 0.0
        %2952 = vmatprep.subr.mxu0 0.0
        %2953 = vmatpush1.msra.mxu0 0.0
        %2954 = vmatprep.subr.mxu0 0.0
        %2955 = vmatpush1.msra.mxu0 0.0
        %2956 = vmatprep.subr.mxu0 0.0
        %2957 = vmatpush1.msra.mxu0 0.0
        %2958 = vmatprep.mubr.f32.mxu0 0.0
        %2959 = vmatmul.mubr.f32.gmra.mrb[0].mxu0 %v2886
        %v2960 = vpop.f32.mrb[0].mxu0
        %v2961 = vadd.f32 %v2883, %v2960
        %v2962 = vpop.f32.mrb[0].mxu0
        %2963 = vmatprep.mubr.f32.mxu0 0.0
        %2964 = vmatmul.mubr.f32.gmra.mrb[0].mxu0 %v2889
        %v2965 = vpop.f32.mrb[0].mxu0
        %v2966 = vadd.f32 %v2883, %v2965
        %v2967 = vpop.f32.mrb[0].mxu0
        %2968 = vmatprep.mubr.f32.mxu0 0.0
        %2969 = vmatmul.mubr.f32.gmra.mrb[0].mxu0 %v2892
        %v2970 = vpop.f32.mrb[0].mxu0
        %v2971 = vadd.f32 %v2883, %v2970
        %v2972 = vpop.f32.mrb[0].mxu0
        %2973 = vdwg.mxu0
        %v2974 = vmul.f32 %v2961, 0.5
        %v2975 = vmul.f32 %v2966, 0.5
        %v2976 = vmul.f32 %v2971, 0.5
        %v2977 = vmul.f32 %v2961, 0.70710677
        %v2978 = vmul.f32 %v2966, 0.70710677
        %v2979 = vmul.f32 %v2971, 0.70710677
        %v2980 = verf.f32.pop %v2977
        %v2981 = verf.f32.pop %v2978
        %v2982 = verf.f32.pop %v2979
        %v2983 = vadd.f32 %v2980, 1.0
        %v2984 = vadd.f32 %v2981, 1.0
        %v2985 = vadd.f32 %v2982, 1.0
        %v2986 = vmul.f32 %v2974, %v2983
        %v2987 = vmul.f32 %v2975, %v2984
        %v2988 = vmul.f32 %v2976, %v2985
        %v2990 = vlaneseq
        %v2991 = vshrl.u32 %v2990, 7
        %v2992 = vsub.s32 0, %v2991
        %v2993 = vrot.slane %v1270, %v2992
        %2995 = vmatprep.subr.mxu0 0.0
        %2996 = vmatpush1.msra.mxu0 %v1254
        %2997 = vmatprep.subr.mxu0 0.0
        %2998 = vmatpush1.msra.mxu0 %v1255
        %2999 = vmatprep.subr.mxu0 0.0
        %3000 = vmatpush1.msra.mxu0 %v1256
        %3001 = vmatprep.subr.mxu0 0.0
        %3002 = vmatpush1.msra.mxu0 %v1257
        %3003 = vmatprep.subr.mxu0 0.0
        %3004 = vmatpush1.msra.mxu0 %v1258
        %3005 = vmatprep.subr.mxu0 0.0
        %3006 = vmatpush1.msra.mxu0 %v1259
        %3007 = vmatprep.subr.mxu0 0.0
        %3008 = vmatpush1.msra.mxu0 %v1260
        %3009 = vmatprep.subr.mxu0 0.0
        %3010 = vmatpush1.msra.mxu0 %v1261
        %3011 = vmatprep.subr.mxu0 0.0
        %3012 = vmatpush1.msra.mxu0 %v1262
        %3013 = vmatprep.subr.mxu0 0.0
        %3014 = vmatpush1.msra.mxu0 %v1263
        %3015 = vmatprep.subr.mxu0 0.0
        %3016 = vmatpush1.msra.mxu0 %v1264
        %3017 = vmatprep.subr.mxu0 0.0
        %3018 = vmatpush1.msra.mxu0 %v1265
        %3019 = vmatprep.subr.mxu0 0.0
        %3020 = vmatpush1.msra.mxu0 %v1266
        %3021 = vmatprep.subr.mxu0 0.0
        %3022 = vmatpush1.msra.mxu0 %v1267
        %3023 = vmatprep.subr.mxu0 0.0
        %3024 = vmatpush1.msra.mxu0 %v1268
        %3025 = vmatprep.subr.mxu0 0.0
        %3026 = vmatpush1.msra.mxu0 %v1269
        %3027 = vmatprep.subr.mxu0 0.0
        %3028 = vmatpush1.msra.mxu0 0.0
        %3029 = vmatprep.subr.mxu0 0.0
        %3030 = vmatpush1.msra.mxu0 0.0
        %3031 = vmatprep.subr.mxu0 0.0
        %3032 = vmatpush1.msra.mxu0 0.0
        %3033 = vmatprep.subr.mxu0 0.0
        %3034 = vmatpush1.msra.mxu0 0.0
        %3035 = vmatprep.subr.mxu0 0.0
        %3036 = vmatpush1.msra.mxu0 0.0
        %3037 = vmatprep.subr.mxu0 0.0
        %3038 = vmatpush1.msra.mxu0 0.0
        %3039 = vmatprep.subr.mxu0 0.0
        %3040 = vmatpush1.msra.mxu0 0.0
        %3041 = vmatprep.subr.mxu0 0.0
        %3042 = vmatpush1.msra.mxu0 0.0
        %3043 = vmatprep.subr.mxu0 0.0
        %3044 = vmatpush1.msra.mxu0 0.0
        %3045 = vmatprep.subr.mxu0 0.0
        %3046 = vmatpush1.msra.mxu0 0.0
        %3047 = vmatprep.subr.mxu0 0.0
        %3048 = vmatpush1.msra.mxu0 0.0
        %3049 = vmatprep.subr.mxu0 0.0
        %3050 = vmatpush1.msra.mxu0 0.0
        %3051 = vmatprep.subr.mxu0 0.0
        %3052 = vmatpush1.msra.mxu0 0.0
        %3053 = vmatprep.subr.mxu0 0.0
        %3054 = vmatpush1.msra.mxu0 0.0
        %3055 = vmatprep.subr.mxu0 0.0
        %3056 = vmatpush1.msra.mxu0 0.0
        %3057 = vmatprep.subr.mxu0 0.0
        %3058 = vmatpush1.msra.mxu0 0.0
        %3059 = vmatprep.mubr.f32.mxu0 0.0
        %3060 = vmatmul.mubr.f32.gmra.mrb[0].mxu0 %v2986
        %v3061 = vpop.f32.mrb[0].mxu0
        %v3062 = vadd.f32 %v2993, %v3061
        %v3063 = vpop.f32.mrb[0].mxu0
        %3064 = vmatprep.mubr.f32.mxu0 0.0
        %3065 = vmatmul.mubr.f32.gmra.mrb[0].mxu0 %v2987
        %v3066 = vpop.f32.mrb[0].mxu0
        %v3067 = vadd.f32 %v2993, %v3066
        %v3068 = vpop.f32.mrb[0].mxu0
        %3069 = vmatprep.mubr.f32.mxu0 0.0
        %3070 = vmatmul.mubr.f32.gmra.mrb[0].mxu0 %v2988
        %v3071 = vpop.f32.mrb[0].mxu0
        %v3072 = vadd.f32 %v2993, %v3071
        %v3073 = vpop.f32.mrb[0].mxu0
        %3074 = vdwg.mxu0
        %v3075 = vadd.f32 %v2819, %v3062
        %v3076 = vadd.f32 %v2820, %v3067
        %v3077 = vadd.f32 %v2821, %v3072
        %3078 = vst.msk [vmem:[#allocation2] sm:$0xff] %vm1274, %v3075
        %3079 = vst.msk [vmem:[#allocation2 + $0x8] sm:$0xff] %vm1274, %v3076
        %3080 = vst.msk [vmem:[#allocation2 + $0x10] sm:$0x1] %vm1281, %v3077
        %p3081 = scmp.eq.s32.totalorder %s41, 11
        // Predicated region
        $region113: #{vit_forward.1} parent=107 // pred_check
          %p3082 = pneg %p3081
        $region114: #{vit_forward.1} parent=107 // pred_check_branch
          %3084 = sbr.rel (%p3082) target = $region116
        $region115: #{vit_forward.1} parent=107 // pred_region
          %v3085 = vsel %vm1274, %v3075, 0.0
          %3086 = vst [vmem:[%s884] sm:$0x1] %v3085
        $region116: #{vit_forward.1} parent=107 // pred_fallthru
          _
        %s3087 = sand.u32 %s598, 1
        %s3088 = scalar_lea.sflag [#allocation4], %s3087
        %s3089 = sand.u32 %s598, 1
        %s3090 = scalar_lea.vmem [#allocation3], %s3089
        // Predicated region
        $region117: #{vit_forward.1} parent=107 // pred_check
          %p3091 = pneg %p608
        $region118: #{vit_forward.1} parent=107 // pred_check_branch
          %3093 = sbr.rel (%p3091) target = $region120
        $region119: #{vit_forward.1} parent=107 // pred_region
          %s3095 = ssub.s32 16, 16
          %3096 = vsyncadd %s3088, %s3095
          %s3097 = smul.addr %s40, 16
          %s3098 = scalar_lea.hbm %s22, %s3097
          %s3100 = sshll.u32 %s3090, 4
          %s3101 = int_to_ptr.vmem [resolvable:$true] %s3100
          %3103 = dma.vmem_to_hbm [thread:$0]  %s3101, 16, %s3098, %s3088
        $region120: #{vit_forward.1} parent=107 // pred_fallthru
          _
      $region108: #{vit_forward.1} parent=5 // pred_fallthru
        _
      %p3104 = scmp.le.s32.totalorder 2, %s31
      // Predicated region
      $region121: #{vit_forward.1} parent=5 // pred_check
        %p3105 = pneg %p3104
      $region122: #{vit_forward.1} parent=5 // pred_check_branch
        %3107 = sbr.rel (%p3105) target = $region124
      $region123: #{vit_forward.1} parent=5 // pred_region
        %s3108 = ssub.s32 %s31, 2
        // Predicated region
        $region125: #{vit_forward.1} parent=123 // pred_check
          %p3109 = pneg %p614
        $region126: #{vit_forward.1} parent=123 // pred_check_branch
          %3111 = sbr.rel (%p3109) target = $region128
        $region127: #{vit_forward.1} parent=123 // pred_region
          %s3112 = sand.u32 %s599, 1
          %s3113 = scalar_lea.sflag [#allocation4], %s3112
          %s3114 = sand.u32 %s599, 1
          %s3115 = scalar_lea.vmem [#allocation3], %s3114
          %3116 = dma.done %s3113, 16
        $region128: #{vit_forward.1} parent=123 // pred_fallthru
          _
      $region124: #{vit_forward.1} parent=5 // pred_fallthru
        _
    $region6: #{vit_forward.1} parent=1 // loop_footer
      %s35 = sadd.s32 1, %s31
    $region7: #{vit_forward.1} parent=1 // loop_footer_branch
      %30 = sbr.rel target = $region3
    $region8: #{vit_forward.1} parent=1 // loop_exit
      _
    %3117 = vsyncpa [#allocation4], 1
    %s3118 = scalar_lea.sflag [#allocation4], 1
    %3119 = vsyncpa %s3118, 1

</llo_original>
